<compile_context>
chip_gen: v5e
topology: v5e:2x2
jax: 0.10.0
libtpu: 0.0.40
codegen_flags: <defaults>
</compile_context>

<pallas_src>
import jax
import jax.numpy as jnp
from jax.experimental import pallas as pl
from jax.experimental.pallas import tpu as pltpu


# --------------------------------------------------------------------------- small helpers

def _round_up(x, m):
    return (x + m - 1) // m * m


def _pad_rows(x, rows):
    if x.shape[0] == rows:
        return x
    pad = [(0, rows - x.shape[0])] + [(0, 0)] * (x.ndim - 1)
    return jnp.pad(x, pad)


def _bf16_elementwise():
    """bf16 VPU/EUP exists on v6e / v7x; keep f32 elementwise math on v5e and older."""
    try:
        kind = jax.devices()[0].device_kind.lower()
    except Exception:
        return False
    return ("v6" in kind) or ("v7" in kind) or ("tpu7" in kind)


def _pick_rows_per_step(lp, max_rows=4096):
    """Largest divisor R of lp with R*lp <= max_rows; keep >=2 grid steps for v7x's 2 TCs."""
    target = max(1, max_rows // lp)
    r = 1
    for cand in range(min(target, lp), 0, -1):
        if lp % cand == 0:
            r = cand
            break
    if lp // r < 2:
        cand = r // 2
        while cand >= 1 and lp % cand:
            cand -= 1
        r = max(1, cand)
    return r


def _lin_relu_ln(pre, vec):
    """ReLU(pre + b) -> LayerNorm(eps=1e-5) -> *gamma + beta.  vec = stack([b, gamma, beta])."""
    y = jnp.maximum(pre + vec[0:1, :], 0.0)
    mu = jnp.mean(y, axis=-1, keepdims=True)
    var = jnp.mean(jnp.square(y - mu), axis=-1, keepdims=True)
    return (y - mu) * jax.lax.rsqrt(var + 1e-5) * vec[1:2, :] + vec[2:3, :]


# -------------------------------------------------------------------------------- kernels

def _node_fused_kernel(bert_ref, od_ref,
                       w_str_ref, v_str_ref, w_emb_ref, v_emb_ref,
                       w_devn_ref, v_devn_ref,
                       w_fma_ref, w_fmb_ref, v_fm_ref,
                       w_f1_ref, w_f2_ref, b_qa_ref,
                       str_ref, a_ref, b_ref):
    bert = bert_ref[...]          # (tm, 1280) bf16 straight from HBM
    od = od_ref[...]              # (tm, 1235) bf16

    # str_node_transform (1280->64) + feat_emb (1235->64), lane-dense single 128-wide output.
    # TODO(synk): str_nodes feeds structure_ipa (IPATransformer) which is undefined; returned as aux.
    s_nodes = _lin_relu_ln(
        jnp.dot(bert, w_str_ref[...], preferred_element_type=jnp.float32), v_str_ref[...])
    f_emb = _lin_relu_ln(
        jnp.dot(od, w_emb_ref[...], preferred_element_type=jnp.float32), v_emb_ref[...])
    str_ref[:, 0:64] = s_nodes
    str_ref[:, 64:128] = f_emb

    # dev_node_transform (1280->128).
    # TODO(synk): err_ipa (IPAEncoder) is undefined; its slot is filled with dev_nodes.
    dev_n = _lin_relu_ln(
        jnp.dot(bert, w_devn_ref[...], preferred_element_type=jnp.float32), v_devn_ref[...])

    # feat_model over cat([dev_nodes, _1d_feature]) without the concat: split weight rows.
    fm_pre = (jnp.dot(dev_n.astype(jnp.bfloat16), w_fma_ref[...],
                      preferred_element_type=jnp.float32)
              + jnp.dot(od, w_fmb_ref[...], preferred_element_type=jnp.float32))
    fm = _lin_relu_ln(fm_pre, v_fm_ref[...])

    # Row / column contributions of the qa 1x1 projection.  qa_proj bias folded into B here so
    # the pair kernel never adds a per-step (rows,128) bias broadcast.
    fmb = fm.astype(jnp.bfloat16)
    a_ref[...] = jnp.dot(fmb, w_f1_ref[...], preferred_element_type=jnp.float32)
    b_ref[...] = (jnp.dot(fmb, w_f2_ref[...], preferred_element_type=jnp.float32)
                  + b_qa_ref[...])


def _make_pair_kernel(R, Lp, bf16_gelu):
    """Pair kernel: R spatial rows (R*Lp pair rows) per grid step, logits computed once per (i,j)."""

    def kernel(tbt_ref, a_ref, b_ref, w_cat_ref, v_de_ref, w_dev_ref,
               w_head_ref, b_head_ref, out_ref):
        i0 = pl.program_id(0) * R
        a_blk = a_ref[pl.ds(i0, R), :]          # (R, 128)  = feat_model[i] @ W_f1
        b_all = b_ref[...]                      # (Lp, 128) = feat_model[j] @ W_f2 + b_qa

        t = tbt_ref[...]                        # (R*Lp, 34) bf16
        # dev_edge_qa pre-activation and the tbt slice of the qa projection share LHS t:
        # one (34,256) MXU pass instead of two badly shaped K=34 matmuls.
        both = jnp.dot(t, w_cat_ref[...], preferred_element_type=jnp.float32)   # (R*Lp, 256)

        # dev_edge_qa: Linear(34,128)+ReLU+LN (f32 statistics); dev_edges never hit HBM.
        de = _lin_relu_ln(both[:, 0:128], v_de_ref[...])
        base = both[:, 128:256] + jnp.dot(de.astype(jnp.bfloat16), w_dev_ref[...],
                                          preferred_element_type=jnp.float32)

        # qa initial 1x1 projection over the never-materialized 418-channel concat:
        #   proj[i,j] = A[i] + B[j](+b) + tbt[i,j]@W_tbt + dev_edges[i,j]@W_dev
        proj = (base.reshape(R, Lp, 128)
                + a_blk[:, None, :]
                + b_all[None, :, :]).reshape(R * Lp, 128)

        # qa_model trailing GELU, then err/mask trailing GELU.
        # TODO(synk): Transformer_ResNet residual bodies are undefined -> treated as identity,
        # so err/mask paths share gelu(gelu(proj)) and one fused (128,16) head matmul.
        if bf16_gelu:
            h = jax.nn.gelu(jax.nn.gelu(proj.astype(jnp.bfloat16)))     # v6e/v7x bf16 VPU/EUP
        else:
            h = jax.nn.gelu(jax.nn.gelu(proj)).astype(jnp.bfloat16)      # v5e: f32 elementwise

        out_ref[...] = (jnp.dot(h, w_head_ref[...], preferred_element_type=jnp.float32)
                        + b_head_ref[...])

    return kernel


# --------------------------------------------------------------------------------- forward

def qa_forward(params, bert_feat, _1d_feature, tbt):
    """
    bert_feat   : (1, L, 1280)
    _1d_feature : (1, L, 1235)   (= cat(voxel_emb, obt) in the reference module)
    tbt         : (1, 34, L, L)  (NCHW, like the PyTorch reference)
    """
    L = bert_feat.shape[1]
    bf16 = jnp.bfloat16
    bf16_elem = _bf16_elementwise()

    w_str, b_str, g_str, be_str = params["str_node_transform"]
    w_emb, b_emb, g_emb, be_emb = params["feat_emb"]
    w_devn, b_devn, g_devn, be_devn = params["dev_node_transform"]
    w_fm, b_fm, g_fm, be_fm = params["feat_model"]
    w_de, b_de, g_de, be_de = params["dev_edge_qa"]
    w_qa = params["qa_proj_w"]

    v_str = jnp.stack([b_str, g_str, be_str])
    v_emb = jnp.stack([b_emb, g_emb, be_emb])
    v_devn = jnp.stack([b_devn, g_devn, be_devn])
    v_fm = jnp.stack([b_fm, g_fm, be_fm])
    v_de = jnp.stack([b_de, g_de, be_de])

    # ---------------- node-level stage (row-tiled, bf16 HBM operands, f32 LayerNorm) ----------------
    tm = min(512, _round_up(L, 8))
    Mp = _round_up(L, tm)
    if Mp // tm < 2 and L > 8:                 # keep >=2 "parallel" steps (v7x has 2 TensorCores)
        tm = _round_up((L + 1) // 2, 8)
        Mp = _round_up(L, tm)

    bert_p = _pad_rows(bert_feat[0].astype(bf16), Mp)
    od_p = _pad_rows(_1d_feature[0].astype(bf16), Mp)

    row_spec = lambda cols: pl.BlockSpec((tm, cols), lambda i: (i, 0))
    fix_spec = lambda r, c: pl.BlockSpec((r, c), lambda i: (0, 0))

    str_nodes_p, a_p, b_p = pl.pallas_call(
        _node_fused_kernel,
        out_shape=(jax.ShapeDtypeStruct((Mp, 128), jnp.float32),) * 3,
        grid=(Mp // tm,),
        in_specs=[
            row_spec(1280), row_spec(1235),
            fix_spec(1280, 64), fix_spec(3, 64),
            fix_spec(1235, 64), fix_spec(3, 64),
            fix_spec(1280, 128), fix_spec(3, 128),
            fix_spec(128, 128), fix_spec(1235, 128), fix_spec(3, 128),
            fix_spec(128, 128), fix_spec(128, 128), fix_spec(1, 128),
        ],
        out_specs=(pl.BlockSpec((tm, 128), lambda i: (i, 0)),) * 3,
        compiler_params=pltpu.CompilerParams(
            dimension_semantics=("parallel",), vmem_limit_bytes=32 * 1024 * 1024),
    )(bert_p, od_p,
      w_str.astype(bf16), v_str,
      w_emb.astype(bf16), v_emb,
      w_devn.astype(bf16), v_devn,
      w_fm[0:128].astype(bf16), w_fm[128:1363].astype(bf16), v_fm,
      w_qa[0:128].astype(bf16), w_qa[128:256].astype(bf16),
      params["qa_proj_b"].reshape(1, 128))

    str_nodes = str_nodes_p[:L]
    A = a_p[:L]
    B = b_p[:L]

    # ---------------- pairwise stage (R spatial rows per step, logits computed once) ----------------
    Lp = _round_up(L, 8)
    A = _pad_rows(A, Lp)
    B = _pad_rows(B, Lp)
    tbt_hwc = jnp.transpose(tbt[0].astype(bf16), (1, 2, 0))        # (L, L, 34) channels-last, bf16
    if Lp != L:
        tbt_hwc = jnp.pad(tbt_hwc, ((0, Lp - L), (0, Lp - L), (0, 0)))
    Mpair = Lp * Lp
    tbt_flat = tbt_hwc.reshape(Mpair, 34)

    R = _pick_rows_per_step(Lp)                                    # R divides Lp, R*Lp ~ 4096 rows

    w_cat = jnp.concatenate([w_de, w_qa[256:290]], axis=1).astype(bf16)          # (34, 256)
    w_dev = w_qa[290:418].astype(bf16)                                            # (128, 128)
    w_head = jnp.concatenate([params["conv_err_w"], params["conv_mask_w"]], axis=1).astype(bf16)
    b_head = jnp.concatenate([params["conv_err_b"], params["conv_mask_b"]]).reshape(1, 16)

    raw_flat = pl.pallas_call(
        _make_pair_kernel(R, Lp, bf16_elem),
        out_shape=jax.ShapeDtypeStruct((Mpair, 16), jnp.float32),
        grid=(Lp // R,),
        in_specs=[
            pl.BlockSpec((R * Lp, 34), lambda i: (i, 0)),      # tbt rows for this step (bf16)
            pl.BlockSpec((Lp, 128), lambda i: (0, 0)),          # A (resident, sliced in-kernel)
            pl.BlockSpec((Lp, 128), lambda i: (0, 0)),          # B (+ qa bias, resident)
            pl.BlockSpec((34, 256), lambda i: (0, 0)),          # [W_de | W_tbt]
            pl.BlockSpec((3, 128), lambda i: (0, 0)),           # dev_edge_qa b/gamma/beta
            pl.BlockSpec((128, 128), lambda i: (0, 0)),         # W_dev
            pl.BlockSpec((128, 16), lambda i: (0, 0)),          # [conv_err | conv_mask] weights
            pl.BlockSpec((1, 16), lambda i: (0, 0)),            # head biases
        ],
        out_specs=pl.BlockSpec((R * Lp, 16), lambda i: (i, 0)),
        compiler_params=pltpu.CompilerParams(
            dimension_semantics=("parallel",), vmem_limit_bytes=48 * 1024 * 1024),
    )(tbt_flat, A, B, w_cat, v_de, w_dev, w_head, b_head)

    # Cheap XLA epilogue over (L,L,16): symmetrize once, exact softmax / sigmoid.
    raw = raw_flat.reshape(Lp, Lp, 16)[:L, :L]
    sym = 0.5 * (raw + jnp.swapaxes(raw, 0, 1))
    deviation_logits = sym[..., 0:15]
    deviation_prediction = jax.nn.softmax(deviation_logits, axis=-1)
    mask_logits = sym[..., 15]
    mask_prediction = jax.nn.sigmoid(mask_logits)

    # TODO(synk): calculate_LDDT / kabsch_mse / bond_length_l1 losses and the coordinate
    # (IPA / EGNN) outputs depend on undefined submodules and are not implemented.
    return deviation_logits, deviation_prediction, mask_logits, mask_prediction, str_nodes


# ------------------------------------------------------------------- pure-JAX f32 reference

def _ref_lin_relu_ln(x, w, b, g, be):
    y = jnp.maximum(x @ w + b, 0.0)
    mu = y.mean(-1, keepdims=True)
    var = jnp.square(y - mu).mean(-1, keepdims=True)
    return (y - mu) / jnp.sqrt(var + 1e-5) * g + be


def qa_forward_ref(params, bert_feat, _1d_feature, tbt):
    L = bert_feat.shape[1]
    bert = bert_feat[0]
    od = _1d_feature[0]
    str_nodes = jnp.concatenate([_ref_lin_relu_ln(bert, *params["str_node_transform"]),
                                 _ref_lin_relu_ln(od, *params["feat_emb"])], axis=-1)
    dev_nodes = _ref_lin_relu_ln(bert, *params["dev_node_transform"])
    qa_f1d = jnp.concatenate([dev_nodes, od], axis=-1)          # err_ipa undefined -> identity
    fm = _ref_lin_relu_ln(qa_f1d, *params["feat_model"])
    tbt_hwc = jnp.transpose(tbt[0], (1, 2, 0))
    dev_edges = _ref_lin_relu_ln(tbt_hwc.reshape(L * L, 34),
                                 *params["dev_edge_qa"]).reshape(L, L, 128)
    f1 = jnp.broadcast_to(fm[:, None, :], (L, L, 128))
    f2 = jnp.broadcast_to(fm[None, :, :], (L, L, 128))
    f2d = jnp.concatenate([f1, f2, tbt_hwc, dev_edges], axis=-1)
    proj = f2d @ params["qa_proj_w"] + params["qa_proj_b"]
    h = jax.nn.gelu(jax.nn.gelu(proj))
    err = h @ params["conv_err_w"] + params["conv_err_b"]
    msk = (h @ params["conv_mask_w"] + params["conv_mask_b"])[..., 0]
    dev_logits = 0.5 * (err + jnp.swapaxes(err, 0, 1))
    dev_pred = jax.nn.softmax(dev_logits, axis=-1)
    mask_logits = 0.5 * (msk + msk.T)
    mask_pred = jax.nn.sigmoid(mask_logits)
    return dev_logits, dev_pred, mask_logits, mask_pred, str_nodes


# ------------------------------------------------------------------------------- parameters

def _lin_ln_params(key, din, dout):
    k1, k2 = jax.random.split(key)
    w = jax.random.normal(k1, (din, dout), jnp.float32) / jnp.sqrt(din)
    b = jax.random.normal(k2, (dout,), jnp.float32) * 0.01
    return (w, b, jnp.ones((dout,), jnp.float32), jnp.zeros((dout,), jnp.float32))


def init_params(key, num_channel=128, node_dim=64, bert_feat_dim=1280):
    ks = jax.random.split(key, 10)
    p = {}
    p["str_node_transform"] = _lin_ln_params(ks[0], bert_feat_dim, node_dim)        # 1280 -> 64
    p["feat_emb"] = _lin_ln_params(ks[1], 1235, num_channel // 2)                    # 1235 -> 64
    p["feat_model"] = _lin_ln_params(ks[2], 1363, num_channel)                       # 1363 -> 128
    p["dev_node_transform"] = _lin_ln_params(ks[3], bert_feat_dim, node_dim * 2)     # 1280 -> 128
    p["dev_edge_qa"] = _lin_ln_params(ks[4], 34, node_dim * 2)                       # 34 -> 128
    # qa_model: Transformer_ResNet initial 1x1 projection (2*128 + 34 + 128 = 418 -> 128)
    p["qa_proj_w"] = jax.random.normal(ks[5], (418, num_channel), jnp.float32) / jnp.sqrt(418.0)
    p["qa_proj_b"] = jnp.zeros((num_channel,), jnp.float32)
    p["conv_err_w"] = jax.random.normal(ks[6], (num_channel, 15), jnp.float32) / jnp.sqrt(128.0)
    p["conv_err_b"] = jax.random.normal(ks[7], (15,), jnp.float32) * 0.01
    p["conv_mask_w"] = jax.random.normal(ks[8], (num_channel, 1), jnp.float32) / jnp.sqrt(128.0)
    p["conv_mask_b"] = jax.random.normal(ks[9], (1,), jnp.float32) * 0.01
    return p


# -------------------------------------------------------------------------------------- main

if __name__ == "__main__":
    nres = 16
    key = jax.random.PRNGKey(0)
    kp, k1, k2, k3 = jax.random.split(key, 4)

    params = init_params(kp)
    bert_feat = jax.random.normal(k1, (1, nres, 1280), jnp.float32)
    _1d_feature = jax.random.normal(k2, (1, nres, 1235), jnp.float32)
    tbt = jax.random.normal(k3, (1, 34, nres, nres), jnp.float32)

    outs = jax.jit(qa_forward)(params, bert_feat, _1d_feature, tbt)
    outs = jax.block_until_ready(outs)
    dev_logits, dev_pred, mask_logits, mask_pred, str_nodes = outs

    # shapes
    assert dev_logits.shape == (nres, nres, 15)
    assert dev_pred.shape == (nres, nres, 15)
    assert mask_logits.shape == (nres, nres)
    assert mask_pred.shape == (nres, nres)
    assert str_nodes.shape == (nres, 128)

    # structural sanity: channel softmax normalizes, spatial symmetry holds exactly
    assert jnp.allclose(jnp.sum(dev_pred, axis=-1), 1.0, atol=1e-3)
    assert jnp.max(jnp.abs(dev_logits - jnp.swapaxes(dev_logits, 0, 1))) < 1e-5
    assert jnp.max(jnp.abs(mask_logits - mask_logits.T)) < 1e-5

    # numerical check against a pure-JAX f32 reference (kernel uses bf16 MXU operands with
    # f32 accumulation and optionally bf16 GELU on v6e/v7x, so tolerances are deliberately loose).
    r_dlog, r_dpred, r_mlog, r_mpred, r_str = jax.block_until_ready(
        jax.jit(qa_forward_ref)(params, bert_feat, _1d_feature, tbt))
    assert jnp.max(jnp.abs(dev_logits - r_dlog)) < 0.25
    assert jnp.max(jnp.abs(dev_pred - r_dpred)) < 0.1
    assert jnp.max(jnp.abs(mask_logits - r_mlog)) < 0.25
    assert jnp.max(jnp.abs(mask_pred - r_mpred)) < 0.1
    assert jnp.max(jnp.abs(str_nodes - r_str)) < 0.1

    print("KERNEL_OK")
</pallas_src>

<mosaic_0001>
module attributes {stable_mosaic.version = 11 : i64} {
  func.func @_node_fused_kernel(%arg0: i32, %arg1: memref<8x1280xbf16, #tpu.memory_space<vmem>>, %arg2: memref<8x1235xbf16, #tpu.memory_space<vmem>>, %arg3: memref<1280x64xbf16, #tpu.memory_space<vmem>>, %arg4: memref<3x64xf32, #tpu.memory_space<vmem>>, %arg5: memref<1235x64xbf16, #tpu.memory_space<vmem>>, %arg6: memref<3x64xf32, #tpu.memory_space<vmem>>, %arg7: memref<1280x128xbf16, #tpu.memory_space<vmem>>, %arg8: memref<3x128xf32, #tpu.memory_space<vmem>>, %arg9: memref<128x128xbf16, #tpu.memory_space<vmem>>, %arg10: memref<1235x128xbf16, #tpu.memory_space<vmem>>, %arg11: memref<3x128xf32, #tpu.memory_space<vmem>>, %arg12: memref<128x128xbf16, #tpu.memory_space<vmem>>, %arg13: memref<128x128xbf16, #tpu.memory_space<vmem>>, %arg14: memref<1x128xf32, #tpu.memory_space<vmem>>, %arg15: memref<8x128xf32, #tpu.memory_space<vmem>>, %arg16: memref<8x128xf32, #tpu.memory_space<vmem>>, %arg17: memref<8x128xf32, #tpu.memory_space<vmem>>) attributes {dimension_semantics = [#tpu.dimension_semantics<parallel>], iteration_bounds = array<i64: 2>, scalar_prefetch = 0 : i64, scratch_operands = 0 : i64, tpu.core_type = #tpu.core_type<tc>, window_params = [{transform_indices = @transform_0, window_bounds = array<i64: 8, 1280>}, {transform_indices = @transform_1, window_bounds = array<i64: 8, 1235>}, {pipeline_mode = #tpu.pipeline_mode<synchronous>, transform_indices = @transform_2, window_bounds = array<i64: 1280, 64>}, {pipeline_mode = #tpu.pipeline_mode<synchronous>, transform_indices = @transform_3, window_bounds = array<i64: 3, 64>}, {pipeline_mode = #tpu.pipeline_mode<synchronous>, transform_indices = @transform_4, window_bounds = array<i64: 1235, 64>}, {pipeline_mode = #tpu.pipeline_mode<synchronous>, transform_indices = @transform_5, window_bounds = array<i64: 3, 64>}, {pipeline_mode = #tpu.pipeline_mode<synchronous>, transform_indices = @transform_6, window_bounds = array<i64: 1280, 128>}, {pipeline_mode = #tpu.pipeline_mode<synchronous>, transform_indices = @transform_7, window_bounds = array<i64: 3, 128>}, {pipeline_mode = #tpu.pipeline_mode<synchronous>, transform_indices = @transform_8, window_bounds = array<i64: 128, 128>}, {pipeline_mode = #tpu.pipeline_mode<synchronous>, transform_indices = @transform_9, window_bounds = array<i64: 1235, 128>}, {pipeline_mode = #tpu.pipeline_mode<synchronous>, transform_indices = @transform_10, window_bounds = array<i64: 3, 128>}, {pipeline_mode = #tpu.pipeline_mode<synchronous>, transform_indices = @transform_11, window_bounds = array<i64: 128, 128>}, {pipeline_mode = #tpu.pipeline_mode<synchronous>, transform_indices = @transform_12, window_bounds = array<i64: 128, 128>}, {pipeline_mode = #tpu.pipeline_mode<synchronous>, transform_indices = @transform_13, window_bounds = array<i64: 1, 128>}, {transform_indices = @transform_14, window_bounds = array<i64: 8, 128>}, {transform_indices = @transform_15, window_bounds = array<i64: 8, 128>}, {transform_indices = @transform_16, window_bounds = array<i64: 8, 128>}]} {
    %c0 = arith.constant 0 : index
    %c0_0 = arith.constant 0 : index
    %0 = vector.load %arg1[%c0, %c0_0] : memref<8x1280xbf16, #tpu.memory_space<vmem>>, vector<8x1280xbf16>
    %c0_1 = arith.constant 0 : index
    %c0_2 = arith.constant 0 : index
    %1 = vector.load %arg2[%c0_1, %c0_2] : memref<8x1235xbf16, #tpu.memory_space<vmem>>, vector<8x1235xbf16>
    %c0_3 = arith.constant 0 : index
    %c0_4 = arith.constant 0 : index
    %2 = vector.load %arg3[%c0_3, %c0_4] : memref<1280x64xbf16, #tpu.memory_space<vmem>>, vector<1280x64xbf16>
    %cst = arith.constant dense<0.000000e+00> : vector<8x64xf32>
    %3 = tpu.matmul %0, %2, %cst {dimension_numbers = #tpu.dot_dimension_numbers<[1], [0], [0], [1], [0, 0, 1, 1], [], []>} : vector<8x1280xbf16>, vector<1280x64xbf16>, vector<8x64xf32> -> vector<8x64xf32>
    %c0_5 = arith.constant 0 : index
    %c0_6 = arith.constant 0 : index
    %4 = vector.load %arg4[%c0_5, %c0_6] : memref<3x64xf32, #tpu.memory_space<vmem>>, vector<3x64xf32>
    %5 = vector.extract_strided_slice %4 {offsets = [0, 0], sizes = [1, 64], strides = [1, 1]} : vector<3x64xf32> to vector<1x64xf32>
    %6 = vector.broadcast %5 : vector<1x64xf32> to vector<8x64xf32>
    %7 = arith.addf %3, %6 : vector<8x64xf32>
    %cst_7 = arith.constant 0.000000e+00 : f32
    %8 = vector.broadcast %cst_7 : f32 to vector<8x64xf32>
    %9 = arith.maximumf %7, %8 : vector<8x64xf32>
    %cst_8 = arith.constant dense<0.000000e+00> : vector<8xf32>
    %10 = vector.multi_reduction <add>, %9, %cst_8 [1] : vector<8x64xf32> to vector<8xf32>
    %11 = vector.shape_cast %10 : vector<8xf32> to vector<8x1xf32>
    %cst_9 = arith.constant 6.400000e+01 : f32
    %12 = vector.broadcast %cst_9 : f32 to vector<8x1xf32>
    %13 = arith.divf %11, %12 : vector<8x1xf32>
    %14 = vector.broadcast %13 : vector<8x1xf32> to vector<8x64xf32>
    %15 = arith.subf %9, %14 : vector<8x64xf32>
    %16 = arith.mulf %15, %15 : vector<8x64xf32>
    %cst_10 = arith.constant dense<0.000000e+00> : vector<8xf32>
    %17 = vector.multi_reduction <add>, %16, %cst_10 [1] : vector<8x64xf32> to vector<8xf32>
    %18 = vector.shape_cast %17 : vector<8xf32> to vector<8x1xf32>
    %cst_11 = arith.constant 6.400000e+01 : f32
    %19 = vector.broadcast %cst_11 : f32 to vector<8x1xf32>
    %20 = arith.divf %18, %19 : vector<8x1xf32>
    %21 = vector.broadcast %13 : vector<8x1xf32> to vector<8x64xf32>
    %22 = arith.subf %9, %21 : vector<8x64xf32>
    %cst_12 = arith.constant 9.99999974E-6 : f32
    %23 = vector.broadcast %cst_12 : f32 to vector<8x1xf32>
    %24 = arith.addf %20, %23 : vector<8x1xf32>
    %25 = math.rsqrt %24 : vector<8x1xf32>
    %26 = vector.broadcast %25 : vector<8x1xf32> to vector<8x64xf32>
    %27 = arith.mulf %22, %26 : vector<8x64xf32>
    %28 = vector.extract_strided_slice %4 {offsets = [1, 0], sizes = [1, 64], strides = [1, 1]} : vector<3x64xf32> to vector<1x64xf32>
    %29 = vector.broadcast %28 : vector<1x64xf32> to vector<8x64xf32>
    %30 = arith.mulf %27, %29 : vector<8x64xf32>
    %31 = vector.extract_strided_slice %4 {offsets = [2, 0], sizes = [1, 64], strides = [1, 1]} : vector<3x64xf32> to vector<1x64xf32>
    %32 = vector.broadcast %31 : vector<1x64xf32> to vector<8x64xf32>
    %33 = arith.addf %30, %32 : vector<8x64xf32>
    %c0_13 = arith.constant 0 : index
    %c0_14 = arith.constant 0 : index
    %34 = vector.load %arg5[%c0_13, %c0_14] : memref<1235x64xbf16, #tpu.memory_space<vmem>>, vector<1235x64xbf16>
    %cst_15 = arith.constant dense<0.000000e+00> : vector<8x64xf32>
    %35 = tpu.matmul %1, %34, %cst_15 {dimension_numbers = #tpu.dot_dimension_numbers<[1], [0], [0], [1], [0, 0, 1, 1], [], []>} : vector<8x1235xbf16>, vector<1235x64xbf16>, vector<8x64xf32> -> vector<8x64xf32>
    %c0_16 = arith.constant 0 : index
    %c0_17 = arith.constant 0 : index
    %36 = vector.load %arg6[%c0_16, %c0_17] : memref<3x64xf32, #tpu.memory_space<vmem>>, vector<3x64xf32>
    %37 = vector.extract_strided_slice %36 {offsets = [0, 0], sizes = [1, 64], strides = [1, 1]} : vector<3x64xf32> to vector<1x64xf32>
    %38 = vector.broadcast %37 : vector<1x64xf32> to vector<8x64xf32>
    %39 = arith.addf %35, %38 : vector<8x64xf32>
    %cst_18 = arith.constant 0.000000e+00 : f32
    %40 = vector.broadcast %cst_18 : f32 to vector<8x64xf32>
    %41 = arith.maximumf %39, %40 : vector<8x64xf32>
    %cst_19 = arith.constant dense<0.000000e+00> : vector<8xf32>
    %42 = vector.multi_reduction <add>, %41, %cst_19 [1] : vector<8x64xf32> to vector<8xf32>
    %43 = vector.shape_cast %42 : vector<8xf32> to vector<8x1xf32>
    %cst_20 = arith.constant 6.400000e+01 : f32
    %44 = vector.broadcast %cst_20 : f32 to vector<8x1xf32>
    %45 = arith.divf %43, %44 : vector<8x1xf32>
    %46 = vector.broadcast %45 : vector<8x1xf32> to vector<8x64xf32>
    %47 = arith.subf %41, %46 : vector<8x64xf32>
    %48 = arith.mulf %47, %47 : vector<8x64xf32>
    %cst_21 = arith.constant dense<0.000000e+00> : vector<8xf32>
    %49 = vector.multi_reduction <add>, %48, %cst_21 [1] : vector<8x64xf32> to vector<8xf32>
    %50 = vector.shape_cast %49 : vector<8xf32> to vector<8x1xf32>
    %cst_22 = arith.constant 6.400000e+01 : f32
    %51 = vector.broadcast %cst_22 : f32 to vector<8x1xf32>
    %52 = arith.divf %50, %51 : vector<8x1xf32>
    %53 = vector.broadcast %45 : vector<8x1xf32> to vector<8x64xf32>
    %54 = arith.subf %41, %53 : vector<8x64xf32>
    %cst_23 = arith.constant 9.99999974E-6 : f32
    %55 = vector.broadcast %cst_23 : f32 to vector<8x1xf32>
    %56 = arith.addf %52, %55 : vector<8x1xf32>
    %57 = math.rsqrt %56 : vector<8x1xf32>
    %58 = vector.broadcast %57 : vector<8x1xf32> to vector<8x64xf32>
    %59 = arith.mulf %54, %58 : vector<8x64xf32>
    %60 = vector.extract_strided_slice %36 {offsets = [1, 0], sizes = [1, 64], strides = [1, 1]} : vector<3x64xf32> to vector<1x64xf32>
    %61 = vector.broadcast %60 : vector<1x64xf32> to vector<8x64xf32>
    %62 = arith.mulf %59, %61 : vector<8x64xf32>
    %63 = vector.extract_strided_slice %36 {offsets = [2, 0], sizes = [1, 64], strides = [1, 1]} : vector<3x64xf32> to vector<1x64xf32>
    %64 = vector.broadcast %63 : vector<1x64xf32> to vector<8x64xf32>
    %65 = arith.addf %62, %64 : vector<8x64xf32>
    %c0_24 = arith.constant 0 : index
    %c0_25 = arith.constant 0 : index
    %66 = vector.load %arg15[%c0_24, %c0_25] : memref<8x128xf32, #tpu.memory_space<vmem>>, vector<8x64xf32>
    tpu.vector_store %arg15[%c0_24, %c0_25], %33 {strides = array<i32>} : memref<8x128xf32, #tpu.memory_space<vmem>>, vector<8x64xf32>,
    %c0_26 = arith.constant 0 : index
    %c64 = arith.constant 64 : index
    %67 = vector.load %arg15[%c0_26, %c64] : memref<8x128xf32, #tpu.memory_space<vmem>>, vector<8x64xf32>
    tpu.vector_store %arg15[%c0_26, %c64], %65 {strides = array<i32>} : memref<8x128xf32, #tpu.memory_space<vmem>>, vector<8x64xf32>,
    %c0_27 = arith.constant 0 : index
    %c0_28 = arith.constant 0 : index
    %68 = vector.load %arg7[%c0_27, %c0_28] : memref<1280x128xbf16, #tpu.memory_space<vmem>>, vector<1280x128xbf16>
    %cst_29 = arith.constant dense<0.000000e+00> : vector<8x128xf32>
    %69 = tpu.matmul %0, %68, %cst_29 {dimension_numbers = #tpu.dot_dimension_numbers<[1], [0], [0], [1], [0, 0, 1, 1], [], []>} : vector<8x1280xbf16>, vector<1280x128xbf16>, vector<8x128xf32> -> vector<8x128xf32>
    %c0_30 = arith.constant 0 : index
    %c0_31 = arith.constant 0 : index
    %70 = vector.load %arg8[%c0_30, %c0_31] : memref<3x128xf32, #tpu.memory_space<vmem>>, vector<3x128xf32>
    %71 = vector.extract_strided_slice %70 {offsets = [0, 0], sizes = [1, 128], strides = [1, 1]} : vector<3x128xf32> to vector<1x128xf32>
    %72 = vector.broadcast %71 : vector<1x128xf32> to vector<8x128xf32>
    %73 = arith.addf %69, %72 : vector<8x128xf32>
    %cst_32 = arith.constant 0.000000e+00 : f32
    %74 = vector.broadcast %cst_32 : f32 to vector<8x128xf32>
    %75 = arith.maximumf %73, %74 : vector<8x128xf32>
    %cst_33 = arith.constant dense<0.000000e+00> : vector<8xf32>
    %76 = vector.multi_reduction <add>, %75, %cst_33 [1] : vector<8x128xf32> to vector<8xf32>
    %77 = vector.shape_cast %76 : vector<8xf32> to vector<8x1xf32>
    %cst_34 = arith.constant 1.280000e+02 : f32
    %78 = vector.broadcast %cst_34 : f32 to vector<8x1xf32>
    %79 = arith.divf %77, %78 : vector<8x1xf32>
    %80 = vector.broadcast %79 : vector<8x1xf32> to vector<8x128xf32>
    %81 = arith.subf %75, %80 : vector<8x128xf32>
    %82 = arith.mulf %81, %81 : vector<8x128xf32>
    %cst_35 = arith.constant dense<0.000000e+00> : vector<8xf32>
    %83 = vector.multi_reduction <add>, %82, %cst_35 [1] : vector<8x128xf32> to vector<8xf32>
    %84 = vector.shape_cast %83 : vector<8xf32> to vector<8x1xf32>
    %cst_36 = arith.constant 1.280000e+02 : f32
    %85 = vector.broadcast %cst_36 : f32 to vector<8x1xf32>
    %86 = arith.divf %84, %85 : vector<8x1xf32>
    %87 = vector.broadcast %79 : vector<8x1xf32> to vector<8x128xf32>
    %88 = arith.subf %75, %87 : vector<8x128xf32>
    %cst_37 = arith.constant 9.99999974E-6 : f32
    %89 = vector.broadcast %cst_37 : f32 to vector<8x1xf32>
    %90 = arith.addf %86, %89 : vector<8x1xf32>
    %91 = math.rsqrt %90 : vector<8x1xf32>
    %92 = vector.broadcast %91 : vector<8x1xf32> to vector<8x128xf32>
    %93 = arith.mulf %88, %92 : vector<8x128xf32>
    %94 = vector.extract_strided_slice %70 {offsets = [1, 0], sizes = [1, 128], strides = [1, 1]} : vector<3x128xf32> to vector<1x128xf32>
    %95 = vector.broadcast %94 : vector<1x128xf32> to vector<8x128xf32>
    %96 = arith.mulf %93, %95 : vector<8x128xf32>
    %97 = vector.extract_strided_slice %70 {offsets = [2, 0], sizes = [1, 128], strides = [1, 1]} : vector<3x128xf32> to vector<1x128xf32>
    %98 = vector.broadcast %97 : vector<1x128xf32> to vector<8x128xf32>
    %99 = arith.addf %96, %98 : vector<8x128xf32>
    %100 = arith.truncf %99 : vector<8x128xf32> to vector<8x128xbf16>
    %c0_38 = arith.constant 0 : index
    %c0_39 = arith.constant 0 : index
    %101 = vector.load %arg9[%c0_38, %c0_39] : memref<128x128xbf16, #tpu.memory_space<vmem>>, vector<128x128xbf16>
    %cst_40 = arith.constant dense<0.000000e+00> : vector<8x128xf32>
    %102 = tpu.matmul %100, %101, %cst_40 {dimension_numbers = #tpu.dot_dimension_numbers<[1], [0], [0], [1], [0, 0, 1, 1], [], []>} : vector<8x128xbf16>, vector<128x128xbf16>, vector<8x128xf32> -> vector<8x128xf32>
    %c0_41 = arith.constant 0 : index
    %c0_42 = arith.constant 0 : index
    %103 = vector.load %arg10[%c0_41, %c0_42] : memref<1235x128xbf16, #tpu.memory_space<vmem>>, vector<1235x128xbf16>
    %cst_43 = arith.constant dense<0.000000e+00> : vector<8x128xf32>
    %104 = tpu.matmul %1, %103, %cst_43 {dimension_numbers = #tpu.dot_dimension_numbers<[1], [0], [0], [1], [0, 0, 1, 1], [], []>} : vector<8x1235xbf16>, vector<1235x128xbf16>, vector<8x128xf32> -> vector<8x128xf32>
    %105 = arith.addf %102, %104 : vector<8x128xf32>
    %c0_44 = arith.constant 0 : index
    %c0_45 = arith.constant 0 : index
    %106 = vector.load %arg11[%c0_44, %c0_45] : memref<3x128xf32, #tpu.memory_space<vmem>>, vector<3x128xf32>
    %107 = vector.extract_strided_slice %106 {offsets = [0, 0], sizes = [1, 128], strides = [1, 1]} : vector<3x128xf32> to vector<1x128xf32>
    %108 = vector.broadcast %107 : vector<1x128xf32> to vector<8x128xf32>
    %109 = arith.addf %105, %108 : vector<8x128xf32>
    %cst_46 = arith.constant 0.000000e+00 : f32
    %110 = vector.broadcast %cst_46 : f32 to vector<8x128xf32>
    %111 = arith.maximumf %109, %110 : vector<8x128xf32>
    %cst_47 = arith.constant dense<0.000000e+00> : vector<8xf32>
    %112 = vector.multi_reduction <add>, %111, %cst_47 [1] : vector<8x128xf32> to vector<8xf32>
    %113 = vector.shape_cast %112 : vector<8xf32> to vector<8x1xf32>
    %cst_48 = arith.constant 1.280000e+02 : f32
    %114 = vector.broadcast %cst_48 : f32 to vector<8x1xf32>
    %115 = arith.divf %113, %114 : vector<8x1xf32>
    %116 = vector.broadcast %115 : vector<8x1xf32> to vector<8x128xf32>
    %117 = arith.subf %111, %116 : vector<8x128xf32>
    %118 = arith.mulf %117, %117 : vector<8x128xf32>
    %cst_49 = arith.constant dense<0.000000e+00> : vector<8xf32>
    %119 = vector.multi_reduction <add>, %118, %cst_49 [1] : vector<8x128xf32> to vector<8xf32>
    %120 = vector.shape_cast %119 : vector<8xf32> to vector<8x1xf32>
    %cst_50 = arith.constant 1.280000e+02 : f32
    %121 = vector.broadcast %cst_50 : f32 to vector<8x1xf32>
    %122 = arith.divf %120, %121 : vector<8x1xf32>
    %123 = vector.broadcast %115 : vector<8x1xf32> to vector<8x128xf32>
    %124 = arith.subf %111, %123 : vector<8x128xf32>
    %cst_51 = arith.constant 9.99999974E-6 : f32
    %125 = vector.broadcast %cst_51 : f32 to vector<8x1xf32>
    %126 = arith.addf %122, %125 : vector<8x1xf32>
    %127 = math.rsqrt %126 : vector<8x1xf32>
    %128 = vector.broadcast %127 : vector<8x1xf32> to vector<8x128xf32>
    %129 = arith.mulf %124, %128 : vector<8x128xf32>
    %130 = vector.extract_strided_slice %106 {offsets = [1, 0], sizes = [1, 128], strides = [1, 1]} : vector<3x128xf32> to vector<1x128xf32>
    %131 = vector.broadcast %130 : vector<1x128xf32> to vector<8x128xf32>
    %132 = arith.mulf %129, %131 : vector<8x128xf32>
    %133 = vector.extract_strided_slice %106 {offsets = [2, 0], sizes = [1, 128], strides = [1, 1]} : vector<3x128xf32> to vector<1x128xf32>
    %134 = vector.broadcast %133 : vector<1x128xf32> to vector<8x128xf32>
    %135 = arith.addf %132, %134 : vector<8x128xf32>
    %136 = arith.truncf %135 : vector<8x128xf32> to vector<8x128xbf16>
    %c0_52 = arith.constant 0 : index
    %c0_53 = arith.constant 0 : index
    %137 = vector.load %arg12[%c0_52, %c0_53] : memref<128x128xbf16, #tpu.memory_space<vmem>>, vector<128x128xbf16>
    %cst_54 = arith.constant dense<0.000000e+00> : vector<8x128xf32>
    %138 = tpu.matmul %136, %137, %cst_54 {dimension_numbers = #tpu.dot_dimension_numbers<[1], [0], [0], [1], [0, 0, 1, 1], [], []>} : vector<8x128xbf16>, vector<128x128xbf16>, vector<8x128xf32> -> vector<8x128xf32>
    %c0_55 = arith.constant 0 : index
    %c0_56 = arith.constant 0 : index
    %139 = vector.load %arg16[%c0_55, %c0_56] : memref<8x128xf32, #tpu.memory_space<vmem>>, vector<8x128xf32>
    tpu.vector_store %arg16[%c0_55, %c0_56], %138 {strides = array<i32>} : memref<8x128xf32, #tpu.memory_space<vmem>>, vector<8x128xf32>,
    %c0_57 = arith.constant 0 : index
    %c0_58 = arith.constant 0 : index
    %140 = vector.load %arg13[%c0_57, %c0_58] : memref<128x128xbf16, #tpu.memory_space<vmem>>, vector<128x128xbf16>
    %cst_59 = arith.constant dense<0.000000e+00> : vector<8x128xf32>
    %141 = tpu.matmul %136, %140, %cst_59 {dimension_numbers = #tpu.dot_dimension_numbers<[1], [0], [0], [1], [0, 0, 1, 1], [], []>} : vector<8x128xbf16>, vector<128x128xbf16>, vector<8x128xf32> -> vector<8x128xf32>
    %c0_60 = arith.constant 0 : index
    %c0_61 = arith.constant 0 : index
    %142 = vector.load %arg14[%c0_60, %c0_61] : memref<1x128xf32, #tpu.memory_space<vmem>>, vector<1x128xf32>
    %143 = vector.broadcast %142 : vector<1x128xf32> to vector<8x128xf32>
    %144 = arith.addf %141, %143 : vector<8x128xf32>
    %c0_62 = arith.constant 0 : index
    %c0_63 = arith.constant 0 : index
    %145 = vector.load %arg17[%c0_62, %c0_63] : memref<8x128xf32, #tpu.memory_space<vmem>>, vector<8x128xf32>
    tpu.vector_store %arg17[%c0_62, %c0_63], %144 {strides = array<i32>} : memref<8x128xf32, #tpu.memory_space<vmem>>, vector<8x128xf32>,
    return
  }
  func.func @transform_0(%arg0: i32) -> (i32, i32) {
    %c0_i32 = arith.constant 0 : i32
    %c0_i32_0 = arith.constant 0 : i32
    return %arg0, %c0_i32 : i32, i32
  }
  func.func @transform_1(%arg0: i32) -> (i32, i32) {
    %c0_i32 = arith.constant 0 : i32
    %c0_i32_0 = arith.constant 0 : i32
    return %arg0, %c0_i32 : i32, i32
  }
  func.func @transform_2(%arg0: i32) -> (i32, i32) {
    %c0_i32 = arith.constant 0 : i32
    %c0_i32_0 = arith.constant 0 : i32
    %c0_i32_1 = arith.constant 0 : i32
    return %c0_i32, %c0_i32_0 : i32, i32
  }
  func.func @transform_3(%arg0: i32) -> (i32, i32) {
    %c0_i32 = arith.constant 0 : i32
    %c0_i32_0 = arith.constant 0 : i32
    %c0_i32_1 = arith.constant 0 : i32
    return %c0_i32, %c0_i32_0 : i32, i32
  }
  func.func @transform_4(%arg0: i32) -> (i32, i32) {
    %c0_i32 = arith.constant 0 : i32
    %c0_i32_0 = arith.constant 0 : i32
    %c0_i32_1 = arith.constant 0 : i32
    return %c0_i32, %c0_i32_0 : i32, i32
  }
  func.func @transform_5(%arg0: i32) -> (i32, i32) {
    %c0_i32 = arith.constant 0 : i32
    %c0_i32_0 = arith.constant 0 : i32
    %c0_i32_1 = arith.constant 0 : i32
    return %c0_i32, %c0_i32_0 : i32, i32
  }
  func.func @transform_6(%arg0: i32) -> (i32, i32) {
    %c0_i32 = arith.constant 0 : i32
    %c0_i32_0 = arith.constant 0 : i32
    %c0_i32_1 = arith.constant 0 : i32
    return %c0_i32, %c0_i32_0 : i32, i32
  }
  func.func @transform_7(%arg0: i32) -> (i32, i32) {
    %c0_i32 = arith.constant 0 : i32
    %c0_i32_0 = arith.constant 0 : i32
    %c0_i32_1 = arith.constant 0 : i32
    return %c0_i32, %c0_i32_0 : i32, i32
  }
  func.func @transform_8(%arg0: i32) -> (i32, i32) {
    %c0_i32 = arith.constant 0 : i32
    %c0_i32_0 = arith.constant 0 : i32
    %c0_i32_1 = arith.constant 0 : i32
    return %c0_i32, %c0_i32_0 : i32, i32
  }
  func.func @transform_9(%arg0: i32) -> (i32, i32) {
    %c0_i32 = arith.constant 0 : i32
    %c0_i32_0 = arith.constant 0 : i32
    %c0_i32_1 = arith.constant 0 : i32
    return %c0_i32, %c0_i32_0 : i32, i32
  }
  func.func @transform_10(%arg0: i32) -> (i32, i32) {
    %c0_i32 = arith.constant 0 : i32
    %c0_i32_0 = arith.constant 0 : i32
    %c0_i32_1 = arith.constant 0 : i32
    return %c0_i32, %c0_i32_0 : i32, i32
  }
  func.func @transform_11(%arg0: i32) -> (i32, i32) {
    %c0_i32 = arith.constant 0 : i32
    %c0_i32_0 = arith.constant 0 : i32
    %c0_i32_1 = arith.constant 0 : i32
    return %c0_i32, %c0_i32_0 : i32, i32
  }
  func.func @transform_12(%arg0: i32) -> (i32, i32) {
    %c0_i32 = arith.constant 0 : i32
    %c0_i32_0 = arith.constant 0 : i32
    %c0_i32_1 = arith.constant 0 : i32
    return %c0_i32, %c0_i32_0 : i32, i32
  }
  func.func @transform_13(%arg0: i32) -> (i32, i32) {
    %c0_i32 = arith.constant 0 : i32
    %c0_i32_0 = arith.constant 0 : i32
    %c0_i32_1 = arith.constant 0 : i32
    return %c0_i32, %c0_i32_0 : i32, i32
  }
  func.func @transform_14(%arg0: i32) -> (i32, i32) {
    %c0_i32 = arith.constant 0 : i32
    %c0_i32_0 = arith.constant 0 : i32
    return %arg0, %c0_i32 : i32, i32
  }
  func.func @transform_15(%arg0: i32) -> (i32, i32) {
    %c0_i32 = arith.constant 0 : i32
    %c0_i32_0 = arith.constant 0 : i32
    return %arg0, %c0_i32 : i32, i32
  }
  func.func @transform_16(%arg0: i32) -> (i32, i32) {
    %c0_i32 = arith.constant 0 : i32
    %c0_i32_0 = arith.constant 0 : i32
    return %arg0, %c0_i32 : i32, i32
  }
}

module attributes {stable_mosaic.version = 11 : i64} {
  func.func @kernel(%arg0: i32, %arg1: memref<128x34xbf16, #tpu.memory_space<vmem>>, %arg2: memref<16x128xf32, #tpu.memory_space<vmem>>, %arg3: memref<16x128xf32, #tpu.memory_space<vmem>>, %arg4: memref<34x256xbf16, #tpu.memory_space<vmem>>, %arg5: memref<3x128xf32, #tpu.memory_space<vmem>>, %arg6: memref<128x128xbf16, #tpu.memory_space<vmem>>, %arg7: memref<128x16xbf16, #tpu.memory_space<vmem>>, %arg8: memref<1x16xf32, #tpu.memory_space<vmem>>, %arg9: memref<128x16xf32, #tpu.memory_space<vmem>>) attributes {dimension_semantics = [#tpu.dimension_semantics<parallel>], iteration_bounds = array<i64: 2>, scalar_prefetch = 0 : i64, scratch_operands = 0 : i64, tpu.core_type = #tpu.core_type<tc>, window_params = [{transform_indices = @transform_0, window_bounds = array<i64: 128, 34>}, {pipeline_mode = #tpu.pipeline_mode<synchronous>, transform_indices = @transform_1, window_bounds = array<i64: 16, 128>}, {pipeline_mode = #tpu.pipeline_mode<synchronous>, transform_indices = @transform_2, window_bounds = array<i64: 16, 128>}, {pipeline_mode = #tpu.pipeline_mode<synchronous>, transform_indices = @transform_3, window_bounds = array<i64: 34, 256>}, {pipeline_mode = #tpu.pipeline_mode<synchronous>, transform_indices = @transform_4, window_bounds = array<i64: 3, 128>}, {pipeline_mode = #tpu.pipeline_mode<synchronous>, transform_indices = @transform_5, window_bounds = array<i64: 128, 128>}, {pipeline_mode = #tpu.pipeline_mode<synchronous>, transform_indices = @transform_6, window_bounds = array<i64: 128, 16>}, {pipeline_mode = #tpu.pipeline_mode<synchronous>, transform_indices = @transform_7, window_bounds = array<i64: 1, 16>}, {transform_indices = @transform_8, window_bounds = array<i64: 128, 16>}]} {
    %c8_i32 = arith.constant 8 : i32
    %0 = arith.muli %arg0, %c8_i32 : i32
    %1 = arith.index_cast %0 : i32 to index
    %c0 = arith.constant 0 : index
    %2 = vector.load %arg2[%1, %c0] : memref<16x128xf32, #tpu.memory_space<vmem>>, vector<8x128xf32>
    %c0_0 = arith.constant 0 : index
    %c0_1 = arith.constant 0 : index
    %3 = vector.load %arg3[%c0_0, %c0_1] : memref<16x128xf32, #tpu.memory_space<vmem>>, vector<16x128xf32>
    %c0_2 = arith.constant 0 : index
    %c0_3 = arith.constant 0 : index
    %4 = vector.load %arg1[%c0_2, %c0_3] : memref<128x34xbf16, #tpu.memory_space<vmem>>, vector<128x34xbf16>
    %c0_4 = arith.constant 0 : index
    %c0_5 = arith.constant 0 : index
    %5 = vector.load %arg4[%c0_4, %c0_5] : memref<34x256xbf16, #tpu.memory_space<vmem>>, vector<34x256xbf16>
    %cst = arith.constant dense<0.000000e+00> : vector<128x256xf32>
    %6 = tpu.matmul %4, %5, %cst {dimension_numbers = #tpu.dot_dimension_numbers<[1], [0], [0], [1], [0, 0, 1, 1], [], []>} : vector<128x34xbf16>, vector<34x256xbf16>, vector<128x256xf32> -> vector<128x256xf32>
    %7 = vector.extract_strided_slice %6 {offsets = [0, 0], sizes = [128, 128], strides = [1, 1]} : vector<128x256xf32> to vector<128x128xf32>
    %c0_6 = arith.constant 0 : index
    %c0_7 = arith.constant 0 : index
    %8 = vector.load %arg5[%c0_6, %c0_7] : memref<3x128xf32, #tpu.memory_space<vmem>>, vector<3x128xf32>
    %9 = vector.extract_strided_slice %8 {offsets = [0, 0], sizes = [1, 128], strides = [1, 1]} : vector<3x128xf32> to vector<1x128xf32>
    %10 = vector.broadcast %9 : vector<1x128xf32> to vector<128x128xf32>
    %11 = arith.addf %7, %10 : vector<128x128xf32>
    %cst_8 = arith.constant 0.000000e+00 : f32
    %12 = vector.broadcast %cst_8 : f32 to vector<128x128xf32>
    %13 = arith.maximumf %11, %12 : vector<128x128xf32>
    %cst_9 = arith.constant dense<0.000000e+00> : vector<128xf32>
    %14 = vector.multi_reduction <add>, %13, %cst_9 [1] : vector<128x128xf32> to vector<128xf32>
    %15 = vector.shape_cast %14 : vector<128xf32> to vector<128x1xf32>
    %cst_10 = arith.constant 1.280000e+02 : f32
    %16 = vector.broadcast %cst_10 : f32 to vector<128x1xf32>
    %17 = arith.divf %15, %16 : vector<128x1xf32>
    %18 = vector.broadcast %17 : vector<128x1xf32> to vector<128x128xf32>
    %19 = arith.subf %13, %18 : vector<128x128xf32>
    %20 = arith.mulf %19, %19 : vector<128x128xf32>
    %cst_11 = arith.constant dense<0.000000e+00> : vector<128xf32>
    %21 = vector.multi_reduction <add>, %20, %cst_11 [1] : vector<128x128xf32> to vector<128xf32>
    %22 = vector.shape_cast %21 : vector<128xf32> to vector<128x1xf32>
    %cst_12 = arith.constant 1.280000e+02 : f32
    %23 = vector.broadcast %cst_12 : f32 to vector<128x1xf32>
    %24 = arith.divf %22, %23 : vector<128x1xf32>
    %25 = vector.broadcast %17 : vector<128x1xf32> to vector<128x128xf32>
    %26 = arith.subf %13, %25 : vector<128x128xf32>
    %cst_13 = arith.constant 9.99999974E-6 : f32
    %27 = vector.broadcast %cst_13 : f32 to vector<128x1xf32>
    %28 = arith.addf %24, %27 : vector<128x1xf32>
    %29 = math.rsqrt %28 : vector<128x1xf32>
    %30 = vector.broadcast %29 : vector<128x1xf32> to vector<128x128xf32>
    %31 = arith.mulf %26, %30 : vector<128x128xf32>
    %32 = vector.extract_strided_slice %8 {offsets = [1, 0], sizes = [1, 128], strides = [1, 1]} : vector<3x128xf32> to vector<1x128xf32>
    %33 = vector.broadcast %32 : vector<1x128xf32> to vector<128x128xf32>
    %34 = arith.mulf %31, %33 : vector<128x128xf32>
    %35 = vector.extract_strided_slice %8 {offsets = [2, 0], sizes = [1, 128], strides = [1, 1]} : vector<3x128xf32> to vector<1x128xf32>
    %36 = vector.broadcast %35 : vector<1x128xf32> to vector<128x128xf32>
    %37 = arith.addf %34, %36 : vector<128x128xf32>
    %38 = vector.extract_strided_slice %6 {offsets = [0, 128], sizes = [128, 128], strides = [1, 1]} : vector<128x256xf32> to vector<128x128xf32>
    %39 = arith.truncf %37 : vector<128x128xf32> to vector<128x128xbf16>
    %c0_14 = arith.constant 0 : index
    %c0_15 = arith.constant 0 : index
    %40 = vector.load %arg6[%c0_14, %c0_15] : memref<128x128xbf16, #tpu.memory_space<vmem>>, vector<128x128xbf16>
    %cst_16 = arith.constant dense<0.000000e+00> : vector<128x128xf32>
    %41 = tpu.matmul %39, %40, %cst_16 {dimension_numbers = #tpu.dot_dimension_numbers<[1], [0], [0], [1], [0, 0, 1, 1], [], []>} : vector<128x128xbf16>, vector<128x128xbf16>, vector<128x128xf32> -> vector<128x128xf32>
    %42 = arith.addf %38, %41 : vector<128x128xf32>
    %43 = vector.shape_cast %42 : vector<128x128xf32> to vector<8x16x128xf32>
    %44 = vector.shape_cast %2 : vector<8x128xf32> to vector<8x1x128xf32>
    %45 = vector.broadcast %44 : vector<8x1x128xf32> to vector<8x16x128xf32>
    %46 = arith.addf %43, %45 : vector<8x16x128xf32>
    %47 = vector.shape_cast %3 : vector<16x128xf32> to vector<1x16x128xf32>
    %48 = vector.broadcast %47 : vector<1x16x128xf32> to vector<8x16x128xf32>
    %49 = arith.addf %46, %48 : vector<8x16x128xf32>
    %50 = vector.shape_cast %49 : vector<8x16x128xf32> to vector<128x128xf32>
    %51 = arith.mulf %50, %50 : vector<128x128xf32>
    %52 = arith.mulf %50, %51 : vector<128x128xf32>
    %cst_17 = arith.constant 4.471500e-02 : f32
    %53 = vector.broadcast %cst_17 : f32 to vector<128x128xf32>
    %54 = arith.mulf %53, %52 : vector<128x128xf32>
    %55 = arith.addf %50, %54 : vector<128x128xf32>
    %cst_18 = arith.constant 0.797884583 : f32
    %56 = vector.broadcast %cst_18 : f32 to vector<128x128xf32>
    %57 = arith.mulf %56, %55 : vector<128x128xf32>
    %58 = math.tanh %57 : vector<128x128xf32>
    %cst_19 = arith.constant 1.000000e+00 : f32
    %59 = vector.broadcast %cst_19 : f32 to vector<128x128xf32>
    %60 = arith.addf %59, %58 : vector<128x128xf32>
    %cst_20 = arith.constant 5.000000e-01 : f32
    %61 = vector.broadcast %cst_20 : f32 to vector<128x128xf32>
    %62 = arith.mulf %61, %60 : vector<128x128xf32>
    %63 = arith.mulf %50, %62 : vector<128x128xf32>
    %64 = arith.mulf %63, %63 : vector<128x128xf32>
    %65 = arith.mulf %63, %64 : vector<128x128xf32>
    %cst_21 = arith.constant 4.471500e-02 : f32
    %66 = vector.broadcast %cst_21 : f32 to vector<128x128xf32>
    %67 = arith.mulf %66, %65 : vector<128x128xf32>
    %68 = arith.addf %63, %67 : vector<128x128xf32>
    %cst_22 = arith.constant 0.797884583 : f32
    %69 = vector.broadcast %cst_22 : f32 to vector<128x128xf32>
    %70 = arith.mulf %69, %68 : vector<128x128xf32>
    %71 = math.tanh %70 : vector<128x128xf32>
    %cst_23 = arith.constant 1.000000e+00 : f32
    %72 = vector.broadcast %cst_23 : f32 to vector<128x128xf32>
    %73 = arith.addf %72, %71 : vector<128x128xf32>
    %cst_24 = arith.constant 5.000000e-01 : f32
    %74 = vector.broadcast %cst_24 : f32 to vector<128x128xf32>
    %75 = arith.mulf %74, %73 : vector<128x128xf32>
    %76 = arith.mulf %63, %75 : vector<128x128xf32>
    %77 = arith.truncf %76 : vector<128x128xf32> to vector<128x128xbf16>
    %c0_25 = arith.constant 0 : index
    %c0_26 = arith.constant 0 : index
    %78 = vector.load %arg7[%c0_25, %c0_26] : memref<128x16xbf16, #tpu.memory_space<vmem>>, vector<128x16xbf16>
    %cst_27 = arith.constant dense<0.000000e+00> : vector<128x16xf32>
    %79 = tpu.matmul %77, %78, %cst_27 {dimension_numbers = #tpu.dot_dimension_numbers<[1], [0], [0], [1], [0, 0, 1, 1], [], []>} : vector<128x128xbf16>, vector<128x16xbf16>, vector<128x16xf32> -> vector<128x16xf32>
    %c0_28 = arith.constant 0 : index
    %c0_29 = arith.constant 0 : index
    %80 = vector.load %arg8[%c0_28, %c0_29] : memref<1x16xf32, #tpu.memory_space<vmem>>, vector<1x16xf32>
    %81 = vector.broadcast %80 : vector<1x16xf32> to vector<128x16xf32>
    %82 = arith.addf %79, %81 : vector<128x16xf32>
    %c0_30 = arith.constant 0 : index
    %c0_31 = arith.constant 0 : index
    %83 = vector.load %arg9[%c0_30, %c0_31] : memref<128x16xf32, #tpu.memory_space<vmem>>, vector<128x16xf32>
    tpu.vector_store %arg9[%c0_30, %c0_31], %82 {strides = array<i32>} : memref<128x16xf32, #tpu.memory_space<vmem>>, vector<128x16xf32>,
    return
  }
  func.func @transform_0(%arg0: i32) -> (i32, i32) {
    %c0_i32 = arith.constant 0 : i32
    %c0_i32_0 = arith.constant 0 : i32
    return %arg0, %c0_i32 : i32, i32
  }
  func.func @transform_1(%arg0: i32) -> (i32, i32) {
    %c0_i32 = arith.constant 0 : i32
    %c0_i32_0 = arith.constant 0 : i32
    %c0_i32_1 = arith.constant 0 : i32
    return %c0_i32, %c0_i32_0 : i32, i32
  }
  func.func @transform_2(%arg0: i32) -> (i32, i32) {
    %c0_i32 = arith.constant 0 : i32
    %c0_i32_0 = arith.constant 0 : i32
    %c0_i32_1 = arith.constant 0 : i32
    return %c0_i32, %c0_i32_0 : i32, i32
  }
  func.func @transform_3(%arg0: i32) -> (i32, i32) {
    %c0_i32 = arith.constant 0 : i32
    %c0_i32_0 = arith.constant 0 : i32
    %c0_i32_1 = arith.constant 0 : i32
    return %c0_i32, %c0_i32_0 : i32, i32
  }
  func.func @transform_4(%arg0: i32) -> (i32, i32) {
    %c0_i32 = arith.constant 0 : i32
    %c0_i32_0 = arith.constant 0 : i32
    %c0_i32_1 = arith.constant 0 : i32
    return %c0_i32, %c0_i32_0 : i32, i32
  }
  func.func @transform_5(%arg0: i32) -> (i32, i32) {
    %c0_i32 = arith.constant 0 : i32
    %c0_i32_0 = arith.constant 0 : i32
    %c0_i32_1 = arith.constant 0 : i32
    return %c0_i32, %c0_i32_0 : i32, i32
  }
  func.func @transform_6(%arg0: i32) -> (i32, i32) {
    %c0_i32 = arith.constant 0 : i32
    %c0_i32_0 = arith.constant 0 : i32
    %c0_i32_1 = arith.constant 0 : i32
    return %c0_i32, %c0_i32_0 : i32, i32
  }
  func.func @transform_7(%arg0: i32) -> (i32, i32) {
    %c0_i32 = arith.constant 0 : i32
    %c0_i32_0 = arith.constant 0 : i32
    %c0_i32_1 = arith.constant 0 : i32
    return %c0_i32, %c0_i32_0 : i32, i32
  }
  func.func @transform_8(%arg0: i32) -> (i32, i32) {
    %c0_i32 = arith.constant 0 : i32
    %c0_i32_0 = arith.constant 0 : i32
    return %arg0, %c0_i32 : i32, i32
  }
}

</mosaic_0001>

<llo_original>
// kernel: qa_forward.3
$region0: #{qa_forward.3}
  #allocation0 [shape = 'u32[]', space=smem, size = 0x4, offset = 0x4, fixed_abs, tag = 'smem constant byte address 0x4 - core index']
  #allocation1 [shape = 'u32[72,128]{1,0:T(1,128)}', space=vmem, size = 0x9000, scoped, tag = 'internal scratch']
  %s0 = inlined_call_operand.vmem [shape: bf16[256,34], index: 0, kind: input, shape index: {}]
  %s1 = inlined_call_operand.vmem [shape: f32[16,128], index: 1, kind: input, shape index: {}]
  %s2 = inlined_call_operand.vmem [shape: f32[16,128], index: 2, kind: input, shape index: {}]
  %s3 = inlined_call_operand.vmem [shape: bf16[34,256], index: 3, kind: input, shape index: {}]
  %s4 = inlined_call_operand.vmem [shape: f32[3,128], index: 4, kind: input, shape index: {}]
  %s5 = inlined_call_operand.vmem [shape: bf16[128,128], index: 5, kind: input, shape index: {}]
  %s6 = inlined_call_operand.vmem [shape: bf16[128,16], index: 6, kind: input, shape index: {}]
  %s7 = inlined_call_operand.vmem [shape: f32[1,16], index: 7, kind: input, shape index: {}]
  %s8 = inlined_call_operand.vmem [shape: f32[256,16], index: 8, kind: output, shape index: {}]
  %s9 = sld [smem:[#allocation0]]
  $region65: #{qa_forward.3} parent=0
    _
  %s11 = ssub.s32 1, %s9
  %s12 = scalar_select 0, %s11, %s9
  loop: start=0, step=1, limit=4
  $region2: #{qa_forward.3} parent=0 // loop_pre_header
    _
  $region3: #{qa_forward.3} parent=0 // loop_header
    %s14 = sphi 0, %s18
    %p15 = scmp.ge.s32.totalorder %s14, 4
    %s24 = sphi 0, %s26
    %s27 = sphi 0, %s24
    %s28 = sphi 0, %s27
    %s44 = sphi 0, %s28
    %s48 = sphi 0, %s48
    %s50 = sphi 0, %s48
    %s51 = sphi 0, %s50
    %s65 = sphi 0, %s51
    %s69 = sphi 0, %s69
    %s71 = sphi 0, %s69
    %s72 = sphi 0, %s71
    %s86 = sphi 0, %s72
    %s90 = sphi 0, %s90
    %s92 = sphi 0, %s90
    %s93 = sphi 0, %s92
    %s107 = sphi 0, %s93
    %s111 = sphi 0, %s111
    %s113 = sphi 0, %s111
    %s114 = sphi 0, %s113
    %s128 = sphi 0, %s114
    %s132 = sphi 0, %s132
    %s134 = sphi 0, %s132
    %s135 = sphi 0, %s134
    %s149 = sphi 0, %s135
    %s153 = sphi 0, %s153
    %s155 = sphi 0, %s153
    %s156 = sphi 0, %s155
    %s170 = sphi 0, %s156
    %s174 = sphi 0, %s174
    %s176 = sphi 0, %s174
    %s177 = sphi 0, %s176
    %s191 = sphi 0, %s177
    %s197 = sphi 0, %s199
    %s200 = sphi 0, %s197
    %s201 = sphi 0, %s200
    %s217 = sphi 0, %s201
  $region4: #{qa_forward.3} parent=0 // loop_header_branch
    %17 = sbr.rel (%p15) target = $region8
  $region5: #{qa_forward.3} parent=0 // loop_body
    %s19 = ssub.s32 %s14, 1
    %s20 = ssub.s32 %s14, 2
    %s21 = sadd.s32 %s14, 1
    %s22 = ssub.s32 %s14, %s21
    %p23 = scmp.eq.s32.totalorder %s22, 0
    %s25 = sadd.s32 %s24, 1
    %s26 = scalar_select %p23, %s24, %s25
    %p29 = pneg %p23
    %p30 = scmp.eq.s32.totalorder %s14, 1
    %p31 = por %p29, %p30
    %p32 = scmp.ne.s32.totalorder %s24, %s27
    %p33 = scmp.eq.s32.totalorder %s14, 0
    %p34 = por %p32, %p33
    %p35 = scmp.ne.s32.totalorder %s24, %s27
    %p36 = scmp.eq.s32.totalorder %s19, 1
    %p37 = por %p35, %p36
    %p38 = scmp.ne.s32.totalorder %s27, %s28
    %p39 = scmp.eq.s32.totalorder %s19, 0
    %p40 = por %p38, %p39
    %p41 = scmp.ne.s32.totalorder %s27, %s28
    %p42 = scmp.eq.s32.totalorder %s20, 1
    %p43 = por %p41, %p42
    %p45 = scmp.ne.s32.totalorder %s28, %s44
    %p46 = scmp.eq.s32.totalorder %s20, 0
    %p47 = por %p45, %p46
    %s49 = sadd.s32 %s48, 1
    %p52 = scmp.eq.s32.totalorder %s14, 1
    %p53 = scmp.ne.s32.totalorder %s48, %s50
    %p54 = scmp.eq.s32.totalorder %s14, 0
    %p55 = por %p53, %p54
    %p56 = scmp.ne.s32.totalorder %s48, %s50
    %p57 = scmp.eq.s32.totalorder %s19, 1
    %p58 = por %p56, %p57
    %p59 = scmp.ne.s32.totalorder %s50, %s51
    %p60 = scmp.eq.s32.totalorder %s19, 0
    %p61 = por %p59, %p60
    %p62 = scmp.ne.s32.totalorder %s50, %s51
    %p63 = scmp.eq.s32.totalorder %s20, 1
    %p64 = por %p62, %p63
    %p66 = scmp.ne.s32.totalorder %s51, %s65
    %p67 = scmp.eq.s32.totalorder %s20, 0
    %p68 = por %p66, %p67
    %s70 = sadd.s32 %s69, 1
    %p73 = scmp.eq.s32.totalorder %s14, 1
    %p74 = scmp.ne.s32.totalorder %s69, %s71
    %p75 = scmp.eq.s32.totalorder %s14, 0
    %p76 = por %p74, %p75
    %p77 = scmp.ne.s32.totalorder %s69, %s71
    %p78 = scmp.eq.s32.totalorder %s19, 1
    %p79 = por %p77, %p78
    %p80 = scmp.ne.s32.totalorder %s71, %s72
    %p81 = scmp.eq.s32.totalorder %s19, 0
    %p82 = por %p80, %p81
    %p83 = scmp.ne.s32.totalorder %s71, %s72
    %p84 = scmp.eq.s32.totalorder %s20, 1
    %p85 = por %p83, %p84
    %p87 = scmp.ne.s32.totalorder %s72, %s86
    %p88 = scmp.eq.s32.totalorder %s20, 0
    %p89 = por %p87, %p88
    %s91 = sadd.s32 %s90, 1
    %p94 = scmp.eq.s32.totalorder %s14, 1
    %p95 = scmp.ne.s32.totalorder %s90, %s92
    %p96 = scmp.eq.s32.totalorder %s14, 0
    %p97 = por %p95, %p96
    %p98 = scmp.ne.s32.totalorder %s90, %s92
    %p99 = scmp.eq.s32.totalorder %s19, 1
    %p100 = por %p98, %p99
    %p101 = scmp.ne.s32.totalorder %s92, %s93
    %p102 = scmp.eq.s32.totalorder %s19, 0
    %p103 = por %p101, %p102
    %p104 = scmp.ne.s32.totalorder %s92, %s93
    %p105 = scmp.eq.s32.totalorder %s20, 1
    %p106 = por %p104, %p105
    %p108 = scmp.ne.s32.totalorder %s93, %s107
    %p109 = scmp.eq.s32.totalorder %s20, 0
    %p110 = por %p108, %p109
    %s112 = sadd.s32 %s111, 1
    %p115 = scmp.eq.s32.totalorder %s14, 1
    %p116 = scmp.ne.s32.totalorder %s111, %s113
    %p117 = scmp.eq.s32.totalorder %s14, 0
    %p118 = por %p116, %p117
    %p119 = scmp.ne.s32.totalorder %s111, %s113
    %p120 = scmp.eq.s32.totalorder %s19, 1
    %p121 = por %p119, %p120
    %p122 = scmp.ne.s32.totalorder %s113, %s114
    %p123 = scmp.eq.s32.totalorder %s19, 0
    %p124 = por %p122, %p123
    %p125 = scmp.ne.s32.totalorder %s113, %s114
    %p126 = scmp.eq.s32.totalorder %s20, 1
    %p127 = por %p125, %p126
    %p129 = scmp.ne.s32.totalorder %s114, %s128
    %p130 = scmp.eq.s32.totalorder %s20, 0
    %p131 = por %p129, %p130
    %s133 = sadd.s32 %s132, 1
    %p136 = scmp.eq.s32.totalorder %s14, 1
    %p137 = scmp.ne.s32.totalorder %s132, %s134
    %p138 = scmp.eq.s32.totalorder %s14, 0
    %p139 = por %p137, %p138
    %p140 = scmp.ne.s32.totalorder %s132, %s134
    %p141 = scmp.eq.s32.totalorder %s19, 1
    %p142 = por %p140, %p141
    %p143 = scmp.ne.s32.totalorder %s134, %s135
    %p144 = scmp.eq.s32.totalorder %s19, 0
    %p145 = por %p143, %p144
    %p146 = scmp.ne.s32.totalorder %s134, %s135
    %p147 = scmp.eq.s32.totalorder %s20, 1
    %p148 = por %p146, %p147
    %p150 = scmp.ne.s32.totalorder %s135, %s149
    %p151 = scmp.eq.s32.totalorder %s20, 0
    %p152 = por %p150, %p151
    %s154 = sadd.s32 %s153, 1
    %p157 = scmp.eq.s32.totalorder %s14, 1
    %p158 = scmp.ne.s32.totalorder %s153, %s155
    %p159 = scmp.eq.s32.totalorder %s14, 0
    %p160 = por %p158, %p159
    %p161 = scmp.ne.s32.totalorder %s153, %s155
    %p162 = scmp.eq.s32.totalorder %s19, 1
    %p163 = por %p161, %p162
    %p164 = scmp.ne.s32.totalorder %s155, %s156
    %p165 = scmp.eq.s32.totalorder %s19, 0
    %p166 = por %p164, %p165
    %p167 = scmp.ne.s32.totalorder %s155, %s156
    %p168 = scmp.eq.s32.totalorder %s20, 1
    %p169 = por %p167, %p168
    %p171 = scmp.ne.s32.totalorder %s156, %s170
    %p172 = scmp.eq.s32.totalorder %s20, 0
    %p173 = por %p171, %p172
    %s175 = sadd.s32 %s174, 1
    %p178 = scmp.eq.s32.totalorder %s14, 1
    %p179 = scmp.ne.s32.totalorder %s174, %s176
    %p180 = scmp.eq.s32.totalorder %s14, 0
    %p181 = por %p179, %p180
    %p182 = scmp.ne.s32.totalorder %s174, %s176
    %p183 = scmp.eq.s32.totalorder %s19, 1
    %p184 = por %p182, %p183
    %p185 = scmp.ne.s32.totalorder %s176, %s177
    %p186 = scmp.eq.s32.totalorder %s19, 0
    %p187 = por %p185, %p186
    %p188 = scmp.ne.s32.totalorder %s176, %s177
    %p189 = scmp.eq.s32.totalorder %s20, 1
    %p190 = por %p188, %p189
    %p192 = scmp.ne.s32.totalorder %s177, %s191
    %p193 = scmp.eq.s32.totalorder %s20, 0
    %p194 = por %p192, %p193
    %s195 = ssub.s32 %s14, %s21
    %p196 = scmp.eq.s32.totalorder %s195, 0
    %s198 = sadd.s32 %s197, 1
    %s199 = scalar_select %p196, %s197, %s198
    %p202 = pneg %p196
    %p203 = scmp.eq.s32.totalorder %s14, 1
    %p204 = por %p202, %p203
    %p205 = scmp.ne.s32.totalorder %s197, %s200
    %p206 = scmp.eq.s32.totalorder %s14, 0
    %p207 = por %p205, %p206
    %p208 = scmp.ne.s32.totalorder %s197, %s200
    %p209 = scmp.eq.s32.totalorder %s19, 1
    %p210 = por %p208, %p209
    %p211 = scmp.ne.s32.totalorder %s200, %s201
    %p212 = scmp.eq.s32.totalorder %s19, 0
    %p213 = por %p211, %p212
    %p214 = scmp.ne.s32.totalorder %s200, %s201
    %p215 = scmp.eq.s32.totalorder %s20, 1
    %p216 = por %p214, %p215
    %p218 = scmp.ne.s32.totalorder %s201, %s217
    %p219 = scmp.eq.s32.totalorder %s20, 0
    %p220 = por %p218, %p219
    %p221 = scmp.le.s32.totalorder 1, %s14
    %p222 = scmp.lt.s32.totalorder %s14, 3
    %p223 = pnand %p221, %p222
    %p224 = pneg %p223
    // Predicated region
    $region9: #{qa_forward.3} parent=5 // pred_check
      _
    $region10: #{qa_forward.3} parent=5 // pred_check_branch
      %226 = sbr.rel (%p223) target = $region12
    $region11: #{qa_forward.3} parent=5 // pred_region
      %s227 = ssub.s32 %s14, 1
      // Predicated region
      $region13: #{qa_forward.3} parent=11 // pred_check
        %p228 = pneg %p61
      $region14: #{qa_forward.3} parent=11 // pred_check_branch
        %230 = sbr.rel (%p228) target = $region16
      $region15: #{qa_forward.3} parent=11 // pred_region
        _
      $region16: #{qa_forward.3} parent=11 // pred_fallthru
        _
      // Predicated region
      $region17: #{qa_forward.3} parent=11 // pred_check
        %p231 = pneg %p82
      $region18: #{qa_forward.3} parent=11 // pred_check_branch
        %233 = sbr.rel (%p231) target = $region20
      $region19: #{qa_forward.3} parent=11 // pred_region
        _
      $region20: #{qa_forward.3} parent=11 // pred_fallthru
        _
      // Predicated region
      $region21: #{qa_forward.3} parent=11 // pred_check
        %p234 = pneg %p103
      $region22: #{qa_forward.3} parent=11 // pred_check_branch
        %236 = sbr.rel (%p234) target = $region24
      $region23: #{qa_forward.3} parent=11 // pred_region
        _
      $region24: #{qa_forward.3} parent=11 // pred_fallthru
        _
      // Predicated region
      $region25: #{qa_forward.3} parent=11 // pred_check
        %p237 = pneg %p124
      $region26: #{qa_forward.3} parent=11 // pred_check_branch
        %239 = sbr.rel (%p237) target = $region28
      $region27: #{qa_forward.3} parent=11 // pred_region
        _
      $region28: #{qa_forward.3} parent=11 // pred_fallthru
        _
      // Predicated region
      $region29: #{qa_forward.3} parent=11 // pred_check
        %p240 = pneg %p145
      $region30: #{qa_forward.3} parent=11 // pred_check_branch
        %242 = sbr.rel (%p240) target = $region32
      $region31: #{qa_forward.3} parent=11 // pred_region
        _
      $region32: #{qa_forward.3} parent=11 // pred_fallthru
        _
      // Predicated region
      $region33: #{qa_forward.3} parent=11 // pred_check
        %p243 = pneg %p166
      $region34: #{qa_forward.3} parent=11 // pred_check_branch
        %245 = sbr.rel (%p243) target = $region36
      $region35: #{qa_forward.3} parent=11 // pred_region
        _
      $region36: #{qa_forward.3} parent=11 // pred_fallthru
        _
      // Predicated region
      $region37: #{qa_forward.3} parent=11 // pred_check
        %p246 = pneg %p187
      $region38: #{qa_forward.3} parent=11 // pred_check_branch
        %248 = sbr.rel (%p246) target = $region40
      $region39: #{qa_forward.3} parent=11 // pred_region
        _
      $region40: #{qa_forward.3} parent=11 // pred_fallthru
        _
    $region12: #{qa_forward.3} parent=5 // pred_fallthru
      _
    %p249 = scmp.lt.s32.totalorder %s14, 2
    // Predicated region
    $region41: #{qa_forward.3} parent=5 // pred_check
      %p250 = pneg %p249
    $region42: #{qa_forward.3} parent=5 // pred_check_branch
      %252 = sbr.rel (%p250) target = $region44
    $region43: #{qa_forward.3} parent=5 // pred_region
      // Predicated region
      $region45: #{qa_forward.3} parent=43 // pred_check
        %p253 = pneg %p34
      $region46: #{qa_forward.3} parent=43 // pred_check_branch
        %255 = sbr.rel (%p253) target = $region48
      $region47: #{qa_forward.3} parent=43 // pred_region
        %s256 = smul.u32 16, %s14
        %p257 = scmp.lt.s32.totalorder %s256, 31
        %s258 = scalar_select %p257, %s256, 31
        %s259 = smul.addr %s258, 4
        %s260 = scalar_lea.vmem %s0, %s259
        %s261 = smul.u32 16, %s14
      $region48: #{qa_forward.3} parent=43 // pred_fallthru
        _
    $region44: #{qa_forward.3} parent=5 // pred_fallthru
      _
    %p262 = scmp.le.s32.totalorder 1, %s14
    %p263 = scmp.lt.s32.totalorder %s14, 3
    %p264 = pnand %p262, %p263
    %p265 = pneg %p264
    // Predicated region
    $region49: #{qa_forward.3} parent=5 // pred_check
      _
    $region50: #{qa_forward.3} parent=5 // pred_check_branch
      %267 = sbr.rel (%p264) target = $region52
    $region51: #{qa_forward.3} parent=5 // pred_region
      %s268 = ssub.s32 %s14, 1
      %s269 = smul.u32 16, %s19
      %p270 = scmp.lt.s32.totalorder %s269, 31
      %s271 = scalar_select %p270, %s269, 31
      %s272 = smul.addr %s271, 4
      %s273 = scalar_lea.vmem %s0, %s272
      %p274 = pneg %p40
      %p275 = pneg %p37
      %p276 = pneg %p61
      %p277 = pneg %p58
      %p278 = pneg %p82
      %p279 = pneg %p79
      %p280 = pneg %p103
      %p281 = pneg %p100
      %p282 = pneg %p124
      %p283 = pneg %p121
      %p284 = pneg %p145
      %p285 = pneg %p142
      %p286 = pneg %p166
      %p287 = pneg %p163
      %p288 = pneg %p187
      %p289 = pneg %p184
      %p290 = pneg %p213
      %p291 = pneg %p210
      %s292 = smul.u32 16, %s19
      %p293 = scmp.lt.s32.totalorder %s292, 31
      %s294 = scalar_select %p293, %s292, 31
      %s295 = smul.addr %s294, 8
      %s296 = scalar_lea.vmem %s8, %s295
      %s297 = smul.u32 16, %s19
      %p298 = scmp.lt.s32.totalorder %s297, 31
      %s299 = scalar_select %p298, %s297, 31
      %s300 = smul.addr %s299, 4
      %s301 = scalar_lea.vmem %s0, %s300
      %s302 = smul.u32 16, %s19
      %s303 = smul.u32 16, %s19
      %p304 = scmp.lt.s32.totalorder %s303, 31
      %s305 = scalar_select %p304, %s303, 31
      %s306 = smul.addr %s305, 8
      %s307 = scalar_lea.vmem %s8, %s306
      %s308 = smul.u32 16, %s19
      %s310 = smul.u32 %s19, 8
      %s311 = scalar_lea.vmem %s1, %s310
      %v312 = vld [vmem:[%s311] sm:$0xff]
      %v313 = vld [vmem:[%s2] sm:$0xff]
      %v314 = vld [vmem:[%s2 + $0x8] sm:$0xff]
      %v315 = vld [vmem:[%s301] sm:$0xf]
      %v316 = vld [vmem:[%s301 + $0x4] sm:$0xf]
      %v317 = vld [vmem:[%s301 + $0x8] sm:$0xf]
      %v318 = vld [vmem:[%s301 + $0xc] sm:$0xf]
      %v319 = vld [vmem:[%s301 + $0x10] sm:$0xf]
      %v320 = vld [vmem:[%s301 + $0x14] sm:$0xf]
      %v321 = vld [vmem:[%s301 + $0x18] sm:$0xf]
      %v322 = vld [vmem:[%s301 + $0x1c] sm:$0xf]
      %v323 = vld [vmem:[%s301 + $0x20] sm:$0xf]
      %v324 = vld [vmem:[%s301 + $0x24] sm:$0xf]
      %v325 = vld [vmem:[%s301 + $0x28] sm:$0xf]
      %v326 = vld [vmem:[%s301 + $0x2c] sm:$0xf]
      %v327 = vld [vmem:[%s301 + $0x30] sm:$0xf]
      %v328 = vld [vmem:[%s301 + $0x34] sm:$0xf]
      %v329 = vld [vmem:[%s301 + $0x38] sm:$0xf]
      %v330 = vld [vmem:[%s301 + $0x3c] sm:$0xf]
      %v331 = vld [vmem:[%s3] sm:$0xff]
      %v332 = vld [vmem:[%s3 + $0x8] sm:$0xff]
      %v333 = vld [vmem:[%s3 + $0x10] sm:$0xff]
      %v334 = vld [vmem:[%s3 + $0x18] sm:$0xff]
      %v335 = vld [vmem:[%s3 + $0x20] sm:$0x11]
      %v352 = vunpack.c.l.b16 %v315
      %v353 = vunpack.c.l.b16 %v316
      %v354 = vunpack.c.l.b16 %v317
      %v355 = vunpack.c.l.b16 %v318
      %v356 = vunpack.c.l.b16 %v319
      %v357 = vunpack.c.l.b16 %v320
      %v358 = vunpack.c.l.b16 %v321
      %v359 = vunpack.c.l.b16 %v322
      %v360 = vunpack.c.l.b16 %v323
      %v361 = vunpack.c.l.b16 %v324
      %v362 = vunpack.c.l.b16 %v325
      %v363 = vunpack.c.l.b16 %v326
      %v364 = vunpack.c.l.b16 %v327
      %v365 = vunpack.c.l.b16 %v328
      %v366 = vunpack.c.l.b16 %v329
      %v367 = vunpack.c.l.b16 %v330
      %v368 = vpack.c.b16 %v353, %v352
      %v369 = vpack.c.b16 %v355, %v354
      %v370 = vpack.c.b16 %v357, %v356
      %v371 = vpack.c.b16 %v359, %v358
      %v372 = vpack.c.b16 %v361, %v360
      %v373 = vpack.c.b16 %v363, %v362
      %v374 = vpack.c.b16 %v365, %v364
      %v375 = vpack.c.b16 %v367, %v366
      %v381 = vunpack.c.l.b16 %v331
      %v382 = vunpack.c.h.b16 %v331
      %v383 = vunpack.c.l.b16 %v332
      %v384 = vunpack.c.h.b16 %v332
      %v385 = vunpack.c.l.b16 %v333
      %v386 = vunpack.c.h.b16 %v333
      %v387 = vunpack.c.l.b16 %v334
      %v388 = vunpack.c.h.b16 %v334
      %v389 = vunpack.c.l.b16 %v335
      %v390 = vunpack.c.h.b16 %v335
      %v391 = vpack.c.b16 %v383, %v381
      %v392 = vpack.c.b16 %v384, %v382
      %v393 = vpack.c.b16 %v387, %v385
      %v394 = vpack.c.b16 %v388, %v386
      %v395 = vpack.c.b16 %v389, %v389
      %v396 = vpack.c.b16 %v390, %v390
      %vm401 = vcmask 277504
      %v403 = vsel %vm401, %v368, 0
      %v406 = vsel %vm401, %v369, 0
      %v409 = vsel %vm401, %v370, 0
      %v412 = vsel %vm401, %v371, 0
      %v415 = vsel %vm401, %v372, 0
      %v418 = vsel %vm401, %v373, 0
      %v421 = vsel %vm401, %v374, 0
      %v424 = vsel %vm401, %v375, 0
      %vm426 = vcmask 1040384
      %v428 = vsel %vm426, %v395, 0
      %v431 = vsel %vm426, %v396, 0
      %433 = vmatpush.bf16.msra.mxu0 0
      %434 = vmatpush.bf16.msra.mxu0 0
      %435 = vmatpush.bf16.msra.mxu0 0
      %436 = vmatpush.bf16.msra.mxu0 0
      %437 = vmatpush.bf16.msra.mxu0 0
      %438 = vmatpush.bf16.msra.mxu0 %v428
      %439 = vmatpush.bf16.msra.mxu0 %v393
      %440 = vmatpush.bf16.msra.mxu0 %v391
      %441 = vmatmul.bf16.gmra.mxu0 %v403
      %v442 = vpop.f32.mrf.mxu0
      %v443 = vadd.f32 0.0, %v442
      %v444 = vpop.f32.mrf.mxu0
      %v445 = vadd.f32 0.0, %v444
      %446 = vmatmul.bf16.gmra.mxu0 %v406
      %v447 = vpop.f32.mrf.mxu0
      %v448 = vadd.f32 0.0, %v447
      %v449 = vpop.f32.mrf.mxu0
      %v450 = vadd.f32 0.0, %v449
      %451 = vmatmul.bf16.gmra.mxu0 %v409
      %v452 = vpop.f32.mrf.mxu0
      %v453 = vadd.f32 0.0, %v452
      %v454 = vpop.f32.mrf.mxu0
      %v455 = vadd.f32 0.0, %v454
      %456 = vmatmul.bf16.gmra.mxu0 %v412
      %v457 = vpop.f32.mrf.mxu0
      %v458 = vadd.f32 0.0, %v457
      %v459 = vpop.f32.mrf.mxu0
      %v460 = vadd.f32 0.0, %v459
      %461 = vmatmul.bf16.gmra.mxu0 %v415
      %v462 = vpop.f32.mrf.mxu0
      %v463 = vadd.f32 0.0, %v462
      %v464 = vpop.f32.mrf.mxu0
      %v465 = vadd.f32 0.0, %v464
      %466 = vmatmul.bf16.gmra.mxu0 %v418
      %v467 = vpop.f32.mrf.mxu0
      %v468 = vadd.f32 0.0, %v467
      %v469 = vpop.f32.mrf.mxu0
      %v470 = vadd.f32 0.0, %v469
      %471 = vmatmul.bf16.gmra.mxu0 %v421
      %v472 = vpop.f32.mrf.mxu0
      %v473 = vadd.f32 0.0, %v472
      %v474 = vpop.f32.mrf.mxu0
      %v475 = vadd.f32 0.0, %v474
      %476 = vmatmul.bf16.gmra.mxu0 %v424
      %v477 = vpop.f32.mrf.mxu0
      %v478 = vadd.f32 0.0, %v477
      %v479 = vpop.f32.mrf.mxu0
      %v480 = vadd.f32 0.0, %v479
      %481 = vdwg.mxu0
      %482 = vmatpush.bf16.msra.mxu0 0
      %483 = vmatpush.bf16.msra.mxu0 0
      %484 = vmatpush.bf16.msra.mxu0 0
      %485 = vmatpush.bf16.msra.mxu0 0
      %486 = vmatpush.bf16.msra.mxu0 0
      %487 = vmatpush.bf16.msra.mxu0 %v431
      %488 = vmatpush.bf16.msra.mxu0 %v394
      %489 = vmatpush.bf16.msra.mxu0 %v392
      %490 = vmatmul.bf16.gmra.mxu0 %v403
      %v491 = vpop.f32.mrf.mxu0
      %v492 = vadd.f32 0.0, %v491
      %v493 = vpop.f32.mrf.mxu0
      %v494 = vadd.f32 0.0, %v493
      %495 = vmatmul.bf16.gmra.mxu0 %v406
      %v496 = vpop.f32.mrf.mxu0
      %v497 = vadd.f32 0.0, %v496
      %v498 = vpop.f32.mrf.mxu0
      %v499 = vadd.f32 0.0, %v498
      %500 = vmatmul.bf16.gmra.mxu0 %v409
      %v501 = vpop.f32.mrf.mxu0
      %v502 = vadd.f32 0.0, %v501
      %v503 = vpop.f32.mrf.mxu0
      %v504 = vadd.f32 0.0, %v503
      %505 = vmatmul.bf16.gmra.mxu0 %v412
      %v506 = vpop.f32.mrf.mxu0
      %v507 = vadd.f32 0.0, %v506
      %v508 = vpop.f32.mrf.mxu0
      %v509 = vadd.f32 0.0, %v508
      %510 = vmatmul.bf16.gmra.mxu0 %v415
      %v511 = vpop.f32.mrf.mxu0
      %v512 = vadd.f32 0.0, %v511
      %v513 = vpop.f32.mrf.mxu0
      %v514 = vadd.f32 0.0, %v513
      %515 = vmatmul.bf16.gmra.mxu0 %v418
      %v516 = vpop.f32.mrf.mxu0
      %v517 = vadd.f32 0.0, %v516
      %v518 = vpop.f32.mrf.mxu0
      %v519 = vadd.f32 0.0, %v518
      %520 = vmatmul.bf16.gmra.mxu0 %v421
      %v521 = vpop.f32.mrf.mxu0
      %v522 = vadd.f32 0.0, %v521
      %v523 = vpop.f32.mrf.mxu0
      %v524 = vadd.f32 0.0, %v523
      %525 = vmatmul.bf16.gmra.mxu0 %v424
      %v526 = vpop.f32.mrf.mxu0
      %v527 = vadd.f32 0.0, %v526
      %v528 = vpop.f32.mrf.mxu0
      %v529 = vadd.f32 0.0, %v528
      %530 = vdwg.mxu0
      %v531 = vld [vmem:[%s4] sm:$0x7]
      %v532 = vperm.slane %v531, 0
      %v533 = vadd.f32 %v443, %v532
      %v534 = vadd.f32 %v445, %v532
      %v535 = vadd.f32 %v448, %v532
      %v536 = vadd.f32 %v450, %v532
      %v537 = vadd.f32 %v453, %v532
      %v538 = vadd.f32 %v455, %v532
      %v539 = vadd.f32 %v458, %v532
      %v540 = vadd.f32 %v460, %v532
      %v541 = vadd.f32 %v463, %v532
      %v542 = vadd.f32 %v465, %v532
      %v543 = vadd.f32 %v468, %v532
      %v544 = vadd.f32 %v470, %v532
      %v545 = vadd.f32 %v473, %v532
      %v546 = vadd.f32 %v475, %v532
      %v547 = vadd.f32 %v478, %v532
      %v548 = vadd.f32 %v480, %v532
      %v549 = vmax.f32 %v533, 0.0
      %v550 = vmax.f32 %v534, 0.0
      %v551 = vmax.f32 %v535, 0.0
      %v552 = vmax.f32 %v536, 0.0
      %v553 = vmax.f32 %v537, 0.0
      %v554 = vmax.f32 %v538, 0.0
      %v555 = vmax.f32 %v539, 0.0
      %v556 = vmax.f32 %v540, 0.0
      %v557 = vmax.f32 %v541, 0.0
      %v558 = vmax.f32 %v542, 0.0
      %v559 = vmax.f32 %v543, 0.0
      %v560 = vmax.f32 %v544, 0.0
      %v561 = vmax.f32 %v545, 0.0
      %v562 = vmax.f32 %v546, 0.0
      %v563 = vmax.f32 %v547, 0.0
      %v564 = vmax.f32 %v548, 0.0
      %565 = vadd.xlane.f32.xlu0 %v549
      %v566 = vpop.xlane.xlu0 %565
      %567 = vadd.xlane.f32.xlu0 %v550
      %v568 = vpop.xlane.xlu0 %567
      %569 = vadd.xlane.f32.xlu0 %v551
      %v570 = vpop.xlane.xlu0 %569
      %571 = vadd.xlane.f32.xlu0 %v552
      %v572 = vpop.xlane.xlu0 %571
      %573 = vadd.xlane.f32.xlu0 %v553
      %v574 = vpop.xlane.xlu0 %573
      %575 = vadd.xlane.f32.xlu0 %v554
      %v576 = vpop.xlane.xlu0 %575
      %577 = vadd.xlane.f32.xlu0 %v555
      %v578 = vpop.xlane.xlu0 %577
      %579 = vadd.xlane.f32.xlu0 %v556
      %v580 = vpop.xlane.xlu0 %579
      %581 = vadd.xlane.f32.xlu0 %v557
      %v582 = vpop.xlane.xlu0 %581
      %583 = vadd.xlane.f32.xlu0 %v558
      %v584 = vpop.xlane.xlu0 %583
      %585 = vadd.xlane.f32.xlu0 %v559
      %v586 = vpop.xlane.xlu0 %585
      %587 = vadd.xlane.f32.xlu0 %v560
      %v588 = vpop.xlane.xlu0 %587
      %589 = vadd.xlane.f32.xlu0 %v561
      %v590 = vpop.xlane.xlu0 %589
      %591 = vadd.xlane.f32.xlu0 %v562
      %v592 = vpop.xlane.xlu0 %591
      %593 = vadd.xlane.f32.xlu0 %v563
      %v594 = vpop.xlane.xlu0 %593
      %595 = vadd.xlane.f32.xlu0 %v564
      %v596 = vpop.xlane.xlu0 %595
      %v597 = vrcp.pop 128.0
      %v598 = vmul.f32 128.0, %v597
      %v599 = vsub.f32 1.0, %v598
      %v600 = vmul.f32 %v597, %v599
      %v601 = vadd.f32 %v597, %v600
      %vm602 = vweird.f32 %v597
      %v603 = vsel %vm602, %v597, %v601
      %v604 = vmul.f32 %v566, %v603
      %v605 = vmul.f32 %v568, %v603
      %v606 = vmul.f32 %v570, %v603
      %v607 = vmul.f32 %v572, %v603
      %v608 = vmul.f32 %v574, %v603
      %v609 = vmul.f32 %v576, %v603
      %v610 = vmul.f32 %v578, %v603
      %v611 = vmul.f32 %v580, %v603
      %v612 = vmul.f32 %v582, %v603
      %v613 = vmul.f32 %v584, %v603
      %v614 = vmul.f32 %v586, %v603
      %v615 = vmul.f32 %v588, %v603
      %v616 = vmul.f32 %v590, %v603
      %v617 = vmul.f32 %v592, %v603
      %v618 = vmul.f32 %v594, %v603
      %v619 = vmul.f32 %v596, %v603
      %v620 = vsub.f32 %v549, %v604
      %v621 = vsub.f32 %v550, %v605
      %v622 = vsub.f32 %v551, %v606
      %v623 = vsub.f32 %v552, %v607
      %v624 = vsub.f32 %v553, %v608
      %v625 = vsub.f32 %v554, %v609
      %v626 = vsub.f32 %v555, %v610
      %v627 = vsub.f32 %v556, %v611
      %v628 = vsub.f32 %v557, %v612
      %v629 = vsub.f32 %v558, %v613
      %v630 = vsub.f32 %v559, %v614
      %v631 = vsub.f32 %v560, %v615
      %v632 = vsub.f32 %v561, %v616
      %v633 = vsub.f32 %v562, %v617
      %v634 = vsub.f32 %v563, %v618
      %v635 = vsub.f32 %v564, %v619
      %v636 = vmul.f32 %v620, %v620
      %v637 = vmul.f32 %v621, %v621
      %v638 = vmul.f32 %v622, %v622
      %v639 = vmul.f32 %v623, %v623
      %v640 = vmul.f32 %v624, %v624
      %v641 = vmul.f32 %v625, %v625
      %v642 = vmul.f32 %v626, %v626
      %v643 = vmul.f32 %v627, %v627
      %v644 = vmul.f32 %v628, %v628
      %v645 = vmul.f32 %v629, %v629
      %v646 = vmul.f32 %v630, %v630
      %v647 = vmul.f32 %v631, %v631
      %v648 = vmul.f32 %v632, %v632
      %v649 = vmul.f32 %v633, %v633
      %v650 = vmul.f32 %v634, %v634
      %v651 = vmul.f32 %v635, %v635
      %652 = vadd.xlane.f32.xlu0 %v636
      %v653 = vpop.xlane.xlu0 %652
      %654 = vadd.xlane.f32.xlu0 %v637
      %v655 = vpop.xlane.xlu0 %654
      %656 = vadd.xlane.f32.xlu0 %v638
      %v657 = vpop.xlane.xlu0 %656
      %658 = vadd.xlane.f32.xlu0 %v639
      %v659 = vpop.xlane.xlu0 %658
      %660 = vadd.xlane.f32.xlu0 %v640
      %v661 = vpop.xlane.xlu0 %660
      %662 = vadd.xlane.f32.xlu0 %v641
      %v663 = vpop.xlane.xlu0 %662
      %664 = vadd.xlane.f32.xlu0 %v642
      %v665 = vpop.xlane.xlu0 %664
      %666 = vadd.xlane.f32.xlu0 %v643
      %v667 = vpop.xlane.xlu0 %666
      %668 = vadd.xlane.f32.xlu0 %v644
      %v669 = vpop.xlane.xlu0 %668
      %670 = vadd.xlane.f32.xlu0 %v645
      %v671 = vpop.xlane.xlu0 %670
      %672 = vadd.xlane.f32.xlu0 %v646
      %v673 = vpop.xlane.xlu0 %672
      %674 = vadd.xlane.f32.xlu0 %v647
      %v675 = vpop.xlane.xlu0 %674
      %676 = vadd.xlane.f32.xlu0 %v648
      %v677 = vpop.xlane.xlu0 %676
      %678 = vadd.xlane.f32.xlu0 %v649
      %v679 = vpop.xlane.xlu0 %678
      %680 = vadd.xlane.f32.xlu0 %v650
      %v681 = vpop.xlane.xlu0 %680
      %682 = vadd.xlane.f32.xlu0 %v651
      %v683 = vpop.xlane.xlu0 %682
      %v684 = vmul.f32 %v653, %v603
      %v685 = vmul.f32 %v655, %v603
      %v686 = vmul.f32 %v657, %v603
      %v687 = vmul.f32 %v659, %v603
      %v688 = vmul.f32 %v661, %v603
      %v689 = vmul.f32 %v663, %v603
      %v690 = vmul.f32 %v665, %v603
      %v691 = vmul.f32 %v667, %v603
      %v692 = vmul.f32 %v669, %v603
      %v693 = vmul.f32 %v671, %v603
      %v694 = vmul.f32 %v673, %v603
      %v695 = vmul.f32 %v675, %v603
      %v696 = vmul.f32 %v677, %v603
      %v697 = vmul.f32 %v679, %v603
      %v698 = vmul.f32 %v681, %v603
      %v699 = vmul.f32 %v683, %v603
      %v700 = vadd.f32 %v684, 1e-05
      %v701 = vadd.f32 %v685, 1e-05
      %v702 = vadd.f32 %v686, 1e-05
      %v703 = vadd.f32 %v687, 1e-05
      %v704 = vadd.f32 %v688, 1e-05
      %v705 = vadd.f32 %v689, 1e-05
      %v706 = vadd.f32 %v690, 1e-05
      %v707 = vadd.f32 %v691, 1e-05
      %v708 = vadd.f32 %v692, 1e-05
      %v709 = vadd.f32 %v693, 1e-05
      %v710 = vadd.f32 %v694, 1e-05
      %v711 = vadd.f32 %v695, 1e-05
      %v712 = vadd.f32 %v696, 1e-05
      %v713 = vadd.f32 %v697, 1e-05
      %v714 = vadd.f32 %v698, 1e-05
      %v715 = vadd.f32 %v699, 1e-05
      %v716 = vrsqrt.pop %v700
      %v717 = vmul.f32 %v716, %v700
      %v718 = vmul.f32 %v717, %v716
      %v719 = vmul.f32 0.5, %v718
      %v720 = vsub.f32 1.5, %v719
      %v721 = vmul.f32 %v716, %v720
      %vm722 = vweird.f32 %v700
      %vm723 = vweird.f32 %v716
      %vm724 = vmor %vm722, %vm723
      %v725 = vsel %vm724, %v716, %v721
      %v726 = vrsqrt.pop %v701
      %v727 = vmul.f32 %v726, %v701
      %v728 = vmul.f32 %v727, %v726
      %v729 = vmul.f32 0.5, %v728
      %v730 = vsub.f32 1.5, %v729
      %v731 = vmul.f32 %v726, %v730
      %vm732 = vweird.f32 %v701
      %vm733 = vweird.f32 %v726
      %vm734 = vmor %vm732, %vm733
      %v735 = vsel %vm734, %v726, %v731
      %v736 = vrsqrt.pop %v702
      %v737 = vmul.f32 %v736, %v702
      %v738 = vmul.f32 %v737, %v736
      %v739 = vmul.f32 0.5, %v738
      %v740 = vsub.f32 1.5, %v739
      %v741 = vmul.f32 %v736, %v740
      %vm742 = vweird.f32 %v702
      %vm743 = vweird.f32 %v736
      %vm744 = vmor %vm742, %vm743
      %v745 = vsel %vm744, %v736, %v741
      %v746 = vrsqrt.pop %v703
      %v747 = vmul.f32 %v746, %v703
      %v748 = vmul.f32 %v747, %v746
      %v749 = vmul.f32 0.5, %v748
      %v750 = vsub.f32 1.5, %v749
      %v751 = vmul.f32 %v746, %v750
      %vm752 = vweird.f32 %v703
      %vm753 = vweird.f32 %v746
      %vm754 = vmor %vm752, %vm753
      %v755 = vsel %vm754, %v746, %v751
      %v756 = vrsqrt.pop %v704
      %v757 = vmul.f32 %v756, %v704
      %v758 = vmul.f32 %v757, %v756
      %v759 = vmul.f32 0.5, %v758
      %v760 = vsub.f32 1.5, %v759
      %v761 = vmul.f32 %v756, %v760
      %vm762 = vweird.f32 %v704
      %vm763 = vweird.f32 %v756
      %vm764 = vmor %vm762, %vm763
      %v765 = vsel %vm764, %v756, %v761
      %v766 = vrsqrt.pop %v705
      %v767 = vmul.f32 %v766, %v705
      %v768 = vmul.f32 %v767, %v766
      %v769 = vmul.f32 0.5, %v768
      %v770 = vsub.f32 1.5, %v769
      %v771 = vmul.f32 %v766, %v770
      %vm772 = vweird.f32 %v705
      %vm773 = vweird.f32 %v766
      %vm774 = vmor %vm772, %vm773
      %v775 = vsel %vm774, %v766, %v771
      %v776 = vrsqrt.pop %v706
      %v777 = vmul.f32 %v776, %v706
      %v778 = vmul.f32 %v777, %v776
      %v779 = vmul.f32 0.5, %v778
      %v780 = vsub.f32 1.5, %v779
      %v781 = vmul.f32 %v776, %v780
      %vm782 = vweird.f32 %v706
      %vm783 = vweird.f32 %v776
      %vm784 = vmor %vm782, %vm783
      %v785 = vsel %vm784, %v776, %v781
      %v786 = vrsqrt.pop %v707
      %v787 = vmul.f32 %v786, %v707
      %v788 = vmul.f32 %v787, %v786
      %v789 = vmul.f32 0.5, %v788
      %v790 = vsub.f32 1.5, %v789
      %v791 = vmul.f32 %v786, %v790
      %vm792 = vweird.f32 %v707
      %vm793 = vweird.f32 %v786
      %vm794 = vmor %vm792, %vm793
      %v795 = vsel %vm794, %v786, %v791
      %v796 = vrsqrt.pop %v708
      %v797 = vmul.f32 %v796, %v708
      %v798 = vmul.f32 %v797, %v796
      %v799 = vmul.f32 0.5, %v798
      %v800 = vsub.f32 1.5, %v799
      %v801 = vmul.f32 %v796, %v800
      %vm802 = vweird.f32 %v708
      %vm803 = vweird.f32 %v796
      %vm804 = vmor %vm802, %vm803
      %v805 = vsel %vm804, %v796, %v801
      %v806 = vrsqrt.pop %v709
      %v807 = vmul.f32 %v806, %v709
      %v808 = vmul.f32 %v807, %v806
      %v809 = vmul.f32 0.5, %v808
      %v810 = vsub.f32 1.5, %v809
      %v811 = vmul.f32 %v806, %v810
      %vm812 = vweird.f32 %v709
      %vm813 = vweird.f32 %v806
      %vm814 = vmor %vm812, %vm813
      %v815 = vsel %vm814, %v806, %v811
      %v816 = vrsqrt.pop %v710
      %v817 = vmul.f32 %v816, %v710
      %v818 = vmul.f32 %v817, %v816
      %v819 = vmul.f32 0.5, %v818
      %v820 = vsub.f32 1.5, %v819
      %v821 = vmul.f32 %v816, %v820
      %vm822 = vweird.f32 %v710
      %vm823 = vweird.f32 %v816
      %vm824 = vmor %vm822, %vm823
      %v825 = vsel %vm824, %v816, %v821
      %v826 = vrsqrt.pop %v711
      %v827 = vmul.f32 %v826, %v711
      %v828 = vmul.f32 %v827, %v826
      %v829 = vmul.f32 0.5, %v828
      %v830 = vsub.f32 1.5, %v829
      %v831 = vmul.f32 %v826, %v830
      %vm832 = vweird.f32 %v711
      %vm833 = vweird.f32 %v826
      %vm834 = vmor %vm832, %vm833
      %v835 = vsel %vm834, %v826, %v831
      %v836 = vrsqrt.pop %v712
      %v837 = vmul.f32 %v836, %v712
      %v838 = vmul.f32 %v837, %v836
      %v839 = vmul.f32 0.5, %v838
      %v840 = vsub.f32 1.5, %v839
      %v841 = vmul.f32 %v836, %v840
      %vm842 = vweird.f32 %v712
      %vm843 = vweird.f32 %v836
      %vm844 = vmor %vm842, %vm843
      %v845 = vsel %vm844, %v836, %v841
      %v846 = vrsqrt.pop %v713
      %v847 = vmul.f32 %v846, %v713
      %v848 = vmul.f32 %v847, %v846
      %v849 = vmul.f32 0.5, %v848
      %v850 = vsub.f32 1.5, %v849
      %v851 = vmul.f32 %v846, %v850
      %vm852 = vweird.f32 %v713
      %vm853 = vweird.f32 %v846
      %vm854 = vmor %vm852, %vm853
      %v855 = vsel %vm854, %v846, %v851
      %v856 = vrsqrt.pop %v714
      %v857 = vmul.f32 %v856, %v714
      %v858 = vmul.f32 %v857, %v856
      %v859 = vmul.f32 0.5, %v858
      %v860 = vsub.f32 1.5, %v859
      %v861 = vmul.f32 %v856, %v860
      %vm862 = vweird.f32 %v714
      %vm863 = vweird.f32 %v856
      %vm864 = vmor %vm862, %vm863
      %v865 = vsel %vm864, %v856, %v861
      %v866 = vrsqrt.pop %v715
      %v867 = vmul.f32 %v866, %v715
      %v868 = vmul.f32 %v867, %v866
      %v869 = vmul.f32 0.5, %v868
      %v870 = vsub.f32 1.5, %v869
      %v871 = vmul.f32 %v866, %v870
      %vm872 = vweird.f32 %v715
      %vm873 = vweird.f32 %v866
      %vm874 = vmor %vm872, %vm873
      %v875 = vsel %vm874, %v866, %v871
      %v876 = vmul.f32 %v620, %v725
      %v877 = vmul.f32 %v621, %v735
      %v878 = vmul.f32 %v622, %v745
      %v879 = vmul.f32 %v623, %v755
      %v880 = vmul.f32 %v624, %v765
      %v881 = vmul.f32 %v625, %v775
      %v882 = vmul.f32 %v626, %v785
      %v883 = vmul.f32 %v627, %v795
      %v884 = vmul.f32 %v628, %v805
      %v885 = vmul.f32 %v629, %v815
      %v886 = vmul.f32 %v630, %v825
      %v887 = vmul.f32 %v631, %v835
      %v888 = vmul.f32 %v632, %v845
      %v889 = vmul.f32 %v633, %v855
      %v890 = vmul.f32 %v634, %v865
      %v891 = vmul.f32 %v635, %v875
      %v892 = vperm.slane %v531, 1
      %v893 = vmul.f32 %v876, %v892
      %v894 = vmul.f32 %v877, %v892
      %v895 = vmul.f32 %v878, %v892
      %v896 = vmul.f32 %v879, %v892
      %v897 = vmul.f32 %v880, %v892
      %v898 = vmul.f32 %v881, %v892
      %v899 = vmul.f32 %v882, %v892
      %v900 = vmul.f32 %v883, %v892
      %v901 = vmul.f32 %v884, %v892
      %v902 = vmul.f32 %v885, %v892
      %v903 = vmul.f32 %v886, %v892
      %v904 = vmul.f32 %v887, %v892
      %v905 = vmul.f32 %v888, %v892
      %v906 = vmul.f32 %v889, %v892
      %v907 = vmul.f32 %v890, %v892
      %v908 = vmul.f32 %v891, %v892
      %v909 = vperm.slane %v531, 2
      %v910 = vadd.f32 %v893, %v909
      %v911 = vadd.f32 %v894, %v909
      %v912 = vadd.f32 %v895, %v909
      %v913 = vadd.f32 %v896, %v909
      %v914 = vadd.f32 %v897, %v909
      %v915 = vadd.f32 %v898, %v909
      %v916 = vadd.f32 %v899, %v909
      %v917 = vadd.f32 %v900, %v909
      %v918 = vadd.f32 %v901, %v909
      %v919 = vadd.f32 %v902, %v909
      %v920 = vadd.f32 %v903, %v909
      %v921 = vadd.f32 %v904, %v909
      %v922 = vadd.f32 %v905, %v909
      %v923 = vadd.f32 %v906, %v909
      %v924 = vadd.f32 %v907, %v909
      %v925 = vadd.f32 %v908, %v909
      %v926 = vpack.c.bf16 %v911, %v910
      %v927 = vpack.c.bf16 %v913, %v912
      %v928 = vpack.c.bf16 %v915, %v914
      %v929 = vpack.c.bf16 %v917, %v916
      %v930 = vpack.c.bf16 %v919, %v918
      %v931 = vpack.c.bf16 %v921, %v920
      %v932 = vpack.c.bf16 %v923, %v922
      %v933 = vpack.c.bf16 %v925, %v924
      %v934 = vld [vmem:[%s5] sm:$0xf]
      %v935 = vld [vmem:[%s5 + $0x4] sm:$0xf]
      %v936 = vld [vmem:[%s5 + $0x8] sm:$0xf]
      %v937 = vld [vmem:[%s5 + $0xc] sm:$0xf]
      %v938 = vld [vmem:[%s5 + $0x10] sm:$0xf]
      %v939 = vld [vmem:[%s5 + $0x14] sm:$0xf]
      %v940 = vld [vmem:[%s5 + $0x18] sm:$0xf]
      %v941 = vld [vmem:[%s5 + $0x1c] sm:$0xf]
      %v942 = vld [vmem:[%s5 + $0x20] sm:$0xf]
      %v943 = vld [vmem:[%s5 + $0x24] sm:$0xf]
      %v944 = vld [vmem:[%s5 + $0x28] sm:$0xf]
      %v945 = vld [vmem:[%s5 + $0x2c] sm:$0xf]
      %v946 = vld [vmem:[%s5 + $0x30] sm:$0xf]
      %v947 = vld [vmem:[%s5 + $0x34] sm:$0xf]
      %v948 = vld [vmem:[%s5 + $0x38] sm:$0xf]
      %v949 = vld [vmem:[%s5 + $0x3c] sm:$0xf]
      %v966 = vunpack.c.l.b16 %v934
      %v967 = vunpack.c.l.b16 %v935
      %v968 = vunpack.c.l.b16 %v936
      %v969 = vunpack.c.l.b16 %v937
      %v970 = vunpack.c.l.b16 %v938
      %v971 = vunpack.c.l.b16 %v939
      %v972 = vunpack.c.l.b16 %v940
      %v973 = vunpack.c.l.b16 %v941
      %v974 = vunpack.c.l.b16 %v942
      %v975 = vunpack.c.l.b16 %v943
      %v976 = vunpack.c.l.b16 %v944
      %v977 = vunpack.c.l.b16 %v945
      %v978 = vunpack.c.l.b16 %v946
      %v979 = vunpack.c.l.b16 %v947
      %v980 = vunpack.c.l.b16 %v948
      %v981 = vunpack.c.l.b16 %v949
      %v982 = vpack.c.b16 %v967, %v966
      %v983 = vpack.c.b16 %v969, %v968
      %v984 = vpack.c.b16 %v971, %v970
      %v985 = vpack.c.b16 %v973, %v972
      %v986 = vpack.c.b16 %v975, %v974
      %v987 = vpack.c.b16 %v977, %v976
      %v988 = vpack.c.b16 %v979, %v978
      %v989 = vpack.c.b16 %v981, %v980
      %998 = vmatpush.bf16.msra.mxu0 %v989
      %999 = vmatpush.bf16.msra.mxu0 %v988
      %1000 = vmatpush.bf16.msra.mxu0 %v987
      %1001 = vmatpush.bf16.msra.mxu0 %v986
      %1002 = vmatpush.bf16.msra.mxu0 %v985
      %1003 = vmatpush.bf16.msra.mxu0 %v984
      %1004 = vmatpush.bf16.msra.mxu0 %v983
      %1005 = vmatpush.bf16.msra.mxu0 %v982
      %1006 = vmatmul.bf16.gmra.mxu0 %v926
      %v1007 = vpop.f32.mrf.mxu0
      %v1008 = vadd.f32 0.0, %v1007
      %v1009 = vpop.f32.mrf.mxu0
      %v1010 = vadd.f32 0.0, %v1009
      %1011 = vmatmul.bf16.gmra.mxu0 %v927
      %v1012 = vpop.f32.mrf.mxu0
      %v1013 = vadd.f32 0.0, %v1012
      %v1014 = vpop.f32.mrf.mxu0
      %v1015 = vadd.f32 0.0, %v1014
      %1016 = vmatmul.bf16.gmra.mxu0 %v928
      %v1017 = vpop.f32.mrf.mxu0
      %v1018 = vadd.f32 0.0, %v1017
      %v1019 = vpop.f32.mrf.mxu0
      %v1020 = vadd.f32 0.0, %v1019
      %1021 = vmatmul.bf16.gmra.mxu0 %v929
      %v1022 = vpop.f32.mrf.mxu0
      %v1023 = vadd.f32 0.0, %v1022
      %v1024 = vpop.f32.mrf.mxu0
      %v1025 = vadd.f32 0.0, %v1024
      %1026 = vmatmul.bf16.gmra.mxu0 %v930
      %v1027 = vpop.f32.mrf.mxu0
      %v1028 = vadd.f32 0.0, %v1027
      %v1029 = vpop.f32.mrf.mxu0
      %v1030 = vadd.f32 0.0, %v1029
      %1031 = vmatmul.bf16.gmra.mxu0 %v931
      %v1032 = vpop.f32.mrf.mxu0
      %v1033 = vadd.f32 0.0, %v1032
      %v1034 = vpop.f32.mrf.mxu0
      %v1035 = vadd.f32 0.0, %v1034
      %1036 = vmatmul.bf16.gmra.mxu0 %v932
      %v1037 = vpop.f32.mrf.mxu0
      %v1038 = vadd.f32 0.0, %v1037
      %v1039 = vpop.f32.mrf.mxu0
      %v1040 = vadd.f32 0.0, %v1039
      %1041 = vmatmul.bf16.gmra.mxu0 %v933
      %v1042 = vpop.f32.mrf.mxu0
      %v1043 = vadd.f32 0.0, %v1042
      %v1044 = vpop.f32.mrf.mxu0
      %v1045 = vadd.f32 0.0, %v1044
      %1046 = vdwg.mxu0
      %v1047 = vadd.f32 %v492, %v1008
      %v1048 = vadd.f32 %v494, %v1010
      %v1049 = vadd.f32 %v497, %v1013
      %v1050 = vadd.f32 %v499, %v1015
      %v1051 = vadd.f32 %v502, %v1018
      %v1052 = vadd.f32 %v504, %v1020
      %v1053 = vadd.f32 %v507, %v1023
      %v1054 = vadd.f32 %v509, %v1025
      %v1055 = vadd.f32 %v512, %v1028
      %v1056 = vadd.f32 %v514, %v1030
      %v1057 = vadd.f32 %v517, %v1033
      %v1058 = vadd.f32 %v519, %v1035
      %v1059 = vadd.f32 %v522, %v1038
      %v1060 = vadd.f32 %v524, %v1040
      %v1061 = vadd.f32 %v527, %v1043
      %v1062 = vadd.f32 %v529, %v1045
      %v1064 = vrot.slane %v312, 1
      %v1065 = vrot.slane %v312, 2
      %v1066 = vrot.slane %v312, 3
      %v1067 = vrot.slane %v312, 4
      %v1068 = vrot.slane %v312, 5
      %v1069 = vrot.slane %v312, 6
      %v1070 = vrot.slane %v312, 7
      %v1071 = vperm.slane %v312, 0
      %v1072 = vperm.slane %v1064, 0
      %v1073 = vperm.slane %v1065, 0
      %v1074 = vperm.slane %v1066, 0
      %v1075 = vperm.slane %v1067, 0
      %v1076 = vperm.slane %v1068, 0
      %v1077 = vperm.slane %v1069, 0
      %v1078 = vperm.slane %v1070, 0
      %v1087 = vadd.f32 %v1047, %v1071
      %v1088 = vadd.f32 %v1048, %v1071
      %v1089 = vadd.f32 %v1049, %v1072
      %v1090 = vadd.f32 %v1050, %v1072
      %v1091 = vadd.f32 %v1051, %v1073
      %v1092 = vadd.f32 %v1052, %v1073
      %v1093 = vadd.f32 %v1053, %v1074
      %v1094 = vadd.f32 %v1054, %v1074
      %v1095 = vadd.f32 %v1055, %v1075
      %v1096 = vadd.f32 %v1056, %v1075
      %v1097 = vadd.f32 %v1057, %v1076
      %v1098 = vadd.f32 %v1058, %v1076
      %v1099 = vadd.f32 %v1059, %v1077
      %v1100 = vadd.f32 %v1060, %v1077
      %v1101 = vadd.f32 %v1061, %v1078
      %v1102 = vadd.f32 %v1062, %v1078
      %v1103 = vadd.f32 %v1087, %v313
      %v1104 = vadd.f32 %v1088, %v314
      %v1105 = vadd.f32 %v1089, %v313
      %v1106 = vadd.f32 %v1090, %v314
      %v1107 = vadd.f32 %v1091, %v313
      %v1108 = vadd.f32 %v1092, %v314
      %v1109 = vadd.f32 %v1093, %v313
      %v1110 = vadd.f32 %v1094, %v314
      %v1111 = vadd.f32 %v1095, %v313
      %v1112 = vadd.f32 %v1096, %v314
      %v1113 = vadd.f32 %v1097, %v313
      %v1114 = vadd.f32 %v1098, %v314
      %v1115 = vadd.f32 %v1099, %v313
      %v1116 = vadd.f32 %v1100, %v314
      %v1117 = vadd.f32 %v1101, %v313
      %v1118 = vadd.f32 %v1102, %v314
      %v1119 = vmul.f32 %v1103, %v1103
      %v1120 = vmul.f32 %v1104, %v1104
      %v1121 = vmul.f32 %v1105, %v1105
      %v1122 = vmul.f32 %v1106, %v1106
      %v1123 = vmul.f32 %v1107, %v1107
      %v1124 = vmul.f32 %v1108, %v1108
      %v1125 = vmul.f32 %v1109, %v1109
      %v1126 = vmul.f32 %v1110, %v1110
      %v1127 = vmul.f32 %v1111, %v1111
      %v1128 = vmul.f32 %v1112, %v1112
      %v1129 = vmul.f32 %v1113, %v1113
      %v1130 = vmul.f32 %v1114, %v1114
      %v1131 = vmul.f32 %v1115, %v1115
      %v1132 = vmul.f32 %v1116, %v1116
      %v1133 = vmul.f32 %v1117, %v1117
      %v1134 = vmul.f32 %v1118, %v1118
      %v1135 = vmul.f32 %v1103, %v1119
      %v1136 = vmul.f32 %v1104, %v1120
      %v1137 = vmul.f32 %v1105, %v1121
      %v1138 = vmul.f32 %v1106, %v1122
      %v1139 = vmul.f32 %v1107, %v1123
      %v1140 = vmul.f32 %v1108, %v1124
      %v1141 = vmul.f32 %v1109, %v1125
      %v1142 = vmul.f32 %v1110, %v1126
      %v1143 = vmul.f32 %v1111, %v1127
      %v1144 = vmul.f32 %v1112, %v1128
      %v1145 = vmul.f32 %v1113, %v1129
      %v1146 = vmul.f32 %v1114, %v1130
      %v1147 = vmul.f32 %v1115, %v1131
      %v1148 = vmul.f32 %v1116, %v1132
      %v1149 = vmul.f32 %v1117, %v1133
      %v1150 = vmul.f32 %v1118, %v1134
      %v1151 = vmul.f32 %v1135, 0.044715
      %v1152 = vmul.f32 %v1136, 0.044715
      %v1153 = vmul.f32 %v1137, 0.044715
      %v1154 = vmul.f32 %v1138, 0.044715
      %v1155 = vmul.f32 %v1139, 0.044715
      %v1156 = vmul.f32 %v1140, 0.044715
      %v1157 = vmul.f32 %v1141, 0.044715
      %v1158 = vmul.f32 %v1142, 0.044715
      %v1159 = vmul.f32 %v1143, 0.044715
      %v1160 = vmul.f32 %v1144, 0.044715
      %v1161 = vmul.f32 %v1145, 0.044715
      %v1162 = vmul.f32 %v1146, 0.044715
      %v1163 = vmul.f32 %v1147, 0.044715
      %v1164 = vmul.f32 %v1148, 0.044715
      %v1165 = vmul.f32 %v1149, 0.044715
      %v1166 = vmul.f32 %v1150, 0.044715
      %v1167 = vadd.f32 %v1103, %v1151
      %v1168 = vadd.f32 %v1104, %v1152
      %v1169 = vadd.f32 %v1105, %v1153
      %v1170 = vadd.f32 %v1106, %v1154
      %v1171 = vadd.f32 %v1107, %v1155
      %v1172 = vadd.f32 %v1108, %v1156
      %v1173 = vadd.f32 %v1109, %v1157
      %v1174 = vadd.f32 %v1110, %v1158
      %v1175 = vadd.f32 %v1111, %v1159
      %v1176 = vadd.f32 %v1112, %v1160
      %v1177 = vadd.f32 %v1113, %v1161
      %v1178 = vadd.f32 %v1114, %v1162
      %v1179 = vadd.f32 %v1115, %v1163
      %v1180 = vadd.f32 %v1116, %v1164
      %v1181 = vadd.f32 %v1117, %v1165
      %v1182 = vadd.f32 %v1118, %v1166
      %v1183 = vmul.f32 %v1167, 0.7978846
      %v1184 = vmul.f32 %v1168, 0.7978846
      %v1185 = vmul.f32 %v1169, 0.7978846
      %v1186 = vmul.f32 %v1170, 0.7978846
      %v1187 = vmul.f32 %v1171, 0.7978846
      %v1188 = vmul.f32 %v1172, 0.7978846
      %v1189 = vmul.f32 %v1173, 0.7978846
      %v1190 = vmul.f32 %v1174, 0.7978846
      %v1191 = vmul.f32 %v1175, 0.7978846
      %v1192 = vmul.f32 %v1176, 0.7978846
      %v1193 = vmul.f32 %v1177, 0.7978846
      %v1194 = vmul.f32 %v1178, 0.7978846
      %v1195 = vmul.f32 %v1179, 0.7978846
      %v1196 = vmul.f32 %v1180, 0.7978846
      %v1197 = vmul.f32 %v1181, 0.7978846
      %v1198 = vmul.f32 %v1182, 0.7978846
      %v1199 = vtanh.pop %v1183
      %v1200 = vtanh.pop %v1184
      %v1201 = vtanh.pop %v1185
      %v1202 = vtanh.pop %v1186
      %v1203 = vtanh.pop %v1187
      %v1204 = vtanh.pop %v1188
      %v1205 = vtanh.pop %v1189
      %v1206 = vtanh.pop %v1190
      %v1207 = vtanh.pop %v1191
      %v1208 = vtanh.pop %v1192
      %v1209 = vtanh.pop %v1193
      %v1210 = vtanh.pop %v1194
      %v1211 = vtanh.pop %v1195
      %v1212 = vtanh.pop %v1196
      %v1213 = vtanh.pop %v1197
      %v1214 = vtanh.pop %v1198
      %v1215 = vadd.f32 %v1199, 1.0
      %v1216 = vadd.f32 %v1200, 1.0
      %v1217 = vadd.f32 %v1201, 1.0
      %v1218 = vadd.f32 %v1202, 1.0
      %v1219 = vadd.f32 %v1203, 1.0
      %v1220 = vadd.f32 %v1204, 1.0
      %v1221 = vadd.f32 %v1205, 1.0
      %v1222 = vadd.f32 %v1206, 1.0
      %v1223 = vadd.f32 %v1207, 1.0
      %v1224 = vadd.f32 %v1208, 1.0
      %v1225 = vadd.f32 %v1209, 1.0
      %v1226 = vadd.f32 %v1210, 1.0
      %v1227 = vadd.f32 %v1211, 1.0
      %v1228 = vadd.f32 %v1212, 1.0
      %v1229 = vadd.f32 %v1213, 1.0
      %v1230 = vadd.f32 %v1214, 1.0
      %v1231 = vmul.f32 %v1215, 0.5
      %v1232 = vmul.f32 %v1216, 0.5
      %v1233 = vmul.f32 %v1217, 0.5
      %v1234 = vmul.f32 %v1218, 0.5
      %v1235 = vmul.f32 %v1219, 0.5
      %v1236 = vmul.f32 %v1220, 0.5
      %v1237 = vmul.f32 %v1221, 0.5
      %v1238 = vmul.f32 %v1222, 0.5
      %v1239 = vmul.f32 %v1223, 0.5
      %v1240 = vmul.f32 %v1224, 0.5
      %v1241 = vmul.f32 %v1225, 0.5
      %v1242 = vmul.f32 %v1226, 0.5
      %v1243 = vmul.f32 %v1227, 0.5
      %v1244 = vmul.f32 %v1228, 0.5
      %v1245 = vmul.f32 %v1229, 0.5
      %v1246 = vmul.f32 %v1230, 0.5
      %v1247 = vmul.f32 %v1103, %v1231
      %v1248 = vmul.f32 %v1104, %v1232
      %v1249 = vmul.f32 %v1105, %v1233
      %v1250 = vmul.f32 %v1106, %v1234
      %v1251 = vmul.f32 %v1107, %v1235
      %v1252 = vmul.f32 %v1108, %v1236
      %v1253 = vmul.f32 %v1109, %v1237
      %v1254 = vmul.f32 %v1110, %v1238
      %v1255 = vmul.f32 %v1111, %v1239
      %v1256 = vmul.f32 %v1112, %v1240
      %v1257 = vmul.f32 %v1113, %v1241
      %v1258 = vmul.f32 %v1114, %v1242
      %v1259 = vmul.f32 %v1115, %v1243
      %v1260 = vmul.f32 %v1116, %v1244
      %v1261 = vmul.f32 %v1117, %v1245
      %v1262 = vmul.f32 %v1118, %v1246
      %v1263 = vmul.f32 %v1247, %v1247
      %v1264 = vmul.f32 %v1248, %v1248
      %v1265 = vmul.f32 %v1249, %v1249
      %v1266 = vmul.f32 %v1250, %v1250
      %v1267 = vmul.f32 %v1251, %v1251
      %v1268 = vmul.f32 %v1252, %v1252
      %v1269 = vmul.f32 %v1253, %v1253
      %v1270 = vmul.f32 %v1254, %v1254
      %v1271 = vmul.f32 %v1255, %v1255
      %v1272 = vmul.f32 %v1256, %v1256
      %v1273 = vmul.f32 %v1257, %v1257
      %v1274 = vmul.f32 %v1258, %v1258
      %v1275 = vmul.f32 %v1259, %v1259
      %v1276 = vmul.f32 %v1260, %v1260
      %v1277 = vmul.f32 %v1261, %v1261
      %v1278 = vmul.f32 %v1262, %v1262
      %v1279 = vmul.f32 %v1247, %v1263
      %v1280 = vmul.f32 %v1248, %v1264
      %v1281 = vmul.f32 %v1249, %v1265
      %v1282 = vmul.f32 %v1250, %v1266
      %v1283 = vmul.f32 %v1251, %v1267
      %v1284 = vmul.f32 %v1252, %v1268
      %v1285 = vmul.f32 %v1253, %v1269
      %v1286 = vmul.f32 %v1254, %v1270
      %v1287 = vmul.f32 %v1255, %v1271
      %v1288 = vmul.f32 %v1256, %v1272
      %v1289 = vmul.f32 %v1257, %v1273
      %v1290 = vmul.f32 %v1258, %v1274
      %v1291 = vmul.f32 %v1259, %v1275
      %v1292 = vmul.f32 %v1260, %v1276
      %v1293 = vmul.f32 %v1261, %v1277
      %v1294 = vmul.f32 %v1262, %v1278
      %v1295 = vmul.f32 %v1279, 0.044715
      %v1296 = vmul.f32 %v1280, 0.044715
      %v1297 = vmul.f32 %v1281, 0.044715
      %v1298 = vmul.f32 %v1282, 0.044715
      %v1299 = vmul.f32 %v1283, 0.044715
      %v1300 = vmul.f32 %v1284, 0.044715
      %v1301 = vmul.f32 %v1285, 0.044715
      %v1302 = vmul.f32 %v1286, 0.044715
      %v1303 = vmul.f32 %v1287, 0.044715
      %v1304 = vmul.f32 %v1288, 0.044715
      %v1305 = vmul.f32 %v1289, 0.044715
      %v1306 = vmul.f32 %v1290, 0.044715
      %v1307 = vmul.f32 %v1291, 0.044715
      %v1308 = vmul.f32 %v1292, 0.044715
      %v1309 = vmul.f32 %v1293, 0.044715
      %v1310 = vmul.f32 %v1294, 0.044715
      %v1311 = vadd.f32 %v1247, %v1295
      %v1312 = vadd.f32 %v1248, %v1296
      %v1313 = vadd.f32 %v1249, %v1297
      %v1314 = vadd.f32 %v1250, %v1298
      %v1315 = vadd.f32 %v1251, %v1299
      %v1316 = vadd.f32 %v1252, %v1300
      %v1317 = vadd.f32 %v1253, %v1301
      %v1318 = vadd.f32 %v1254, %v1302
      %v1319 = vadd.f32 %v1255, %v1303
      %v1320 = vadd.f32 %v1256, %v1304
      %v1321 = vadd.f32 %v1257, %v1305
      %v1322 = vadd.f32 %v1258, %v1306
      %v1323 = vadd.f32 %v1259, %v1307
      %v1324 = vadd.f32 %v1260, %v1308
      %v1325 = vadd.f32 %v1261, %v1309
      %v1326 = vadd.f32 %v1262, %v1310
      %v1327 = vmul.f32 %v1311, 0.7978846
      %v1328 = vmul.f32 %v1312, 0.7978846
      %v1329 = vmul.f32 %v1313, 0.7978846
      %v1330 = vmul.f32 %v1314, 0.7978846
      %v1331 = vmul.f32 %v1315, 0.7978846
      %v1332 = vmul.f32 %v1316, 0.7978846
      %v1333 = vmul.f32 %v1317, 0.7978846
      %v1334 = vmul.f32 %v1318, 0.7978846
      %v1335 = vmul.f32 %v1319, 0.7978846
      %v1336 = vmul.f32 %v1320, 0.7978846
      %v1337 = vmul.f32 %v1321, 0.7978846
      %v1338 = vmul.f32 %v1322, 0.7978846
      %v1339 = vmul.f32 %v1323, 0.7978846
      %v1340 = vmul.f32 %v1324, 0.7978846
      %v1341 = vmul.f32 %v1325, 0.7978846
      %v1342 = vmul.f32 %v1326, 0.7978846
      %v1343 = vtanh.pop %v1327
      %v1344 = vtanh.pop %v1328
      %v1345 = vtanh.pop %v1329
      %v1346 = vtanh.pop %v1330
      %v1347 = vtanh.pop %v1331
      %v1348 = vtanh.pop %v1332
      %v1349 = vtanh.pop %v1333
      %v1350 = vtanh.pop %v1334
      %v1351 = vtanh.pop %v1335
      %v1352 = vtanh.pop %v1336
      %v1353 = vtanh.pop %v1337
      %v1354 = vtanh.pop %v1338
      %v1355 = vtanh.pop %v1339
      %v1356 = vtanh.pop %v1340
      %v1357 = vtanh.pop %v1341
      %v1358 = vtanh.pop %v1342
      %v1359 = vadd.f32 %v1343, 1.0
      %v1360 = vadd.f32 %v1344, 1.0
      %v1361 = vadd.f32 %v1345, 1.0
      %v1362 = vadd.f32 %v1346, 1.0
      %v1363 = vadd.f32 %v1347, 1.0
      %v1364 = vadd.f32 %v1348, 1.0
      %v1365 = vadd.f32 %v1349, 1.0
      %v1366 = vadd.f32 %v1350, 1.0
      %v1367 = vadd.f32 %v1351, 1.0
      %v1368 = vadd.f32 %v1352, 1.0
      %v1369 = vadd.f32 %v1353, 1.0
      %v1370 = vadd.f32 %v1354, 1.0
      %v1371 = vadd.f32 %v1355, 1.0
      %v1372 = vadd.f32 %v1356, 1.0
      %v1373 = vadd.f32 %v1357, 1.0
      %v1374 = vadd.f32 %v1358, 1.0
      %v1375 = vmul.f32 %v1359, 0.5
      %v1376 = vmul.f32 %v1360, 0.5
      %v1377 = vmul.f32 %v1361, 0.5
      %v1378 = vmul.f32 %v1362, 0.5
      %v1379 = vmul.f32 %v1363, 0.5
      %v1380 = vmul.f32 %v1364, 0.5
      %v1381 = vmul.f32 %v1365, 0.5
      %v1382 = vmul.f32 %v1366, 0.5
      %v1383 = vmul.f32 %v1367, 0.5
      %v1384 = vmul.f32 %v1368, 0.5
      %v1385 = vmul.f32 %v1369, 0.5
      %v1386 = vmul.f32 %v1370, 0.5
      %v1387 = vmul.f32 %v1371, 0.5
      %v1388 = vmul.f32 %v1372, 0.5
      %v1389 = vmul.f32 %v1373, 0.5
      %v1390 = vmul.f32 %v1374, 0.5
      %v1391 = vmul.f32 %v1247, %v1375
      %v1392 = vmul.f32 %v1248, %v1376
      %v1393 = vmul.f32 %v1249, %v1377
      %v1394 = vmul.f32 %v1250, %v1378
      %v1395 = vmul.f32 %v1251, %v1379
      %v1396 = vmul.f32 %v1252, %v1380
      %v1397 = vmul.f32 %v1253, %v1381
      %v1398 = vmul.f32 %v1254, %v1382
      %v1399 = vmul.f32 %v1255, %v1383
      %v1400 = vmul.f32 %v1256, %v1384
      %v1401 = vmul.f32 %v1257, %v1385
      %v1402 = vmul.f32 %v1258, %v1386
      %v1403 = vmul.f32 %v1259, %v1387
      %v1404 = vmul.f32 %v1260, %v1388
      %v1405 = vmul.f32 %v1261, %v1389
      %v1406 = vmul.f32 %v1262, %v1390
      %v1407 = vpack.c.bf16 %v1392, %v1391
      %v1408 = vpack.c.bf16 %v1394, %v1393
      %v1409 = vpack.c.bf16 %v1396, %v1395
      %v1410 = vpack.c.bf16 %v1398, %v1397
      %v1411 = vpack.c.bf16 %v1400, %v1399
      %v1412 = vpack.c.bf16 %v1402, %v1401
      %v1413 = vpack.c.bf16 %v1404, %v1403
      %v1414 = vpack.c.bf16 %v1406, %v1405
      %v1415 = vld [vmem:[%s6] sm:$0xf]
      %v1416 = vld [vmem:[%s6 + $0x4] sm:$0xf]
      %v1417 = vld [vmem:[%s6 + $0x8] sm:$0xf]
      %v1418 = vld [vmem:[%s6 + $0xc] sm:$0xf]
      %v1419 = vld [vmem:[%s6 + $0x10] sm:$0xf]
      %v1420 = vld [vmem:[%s6 + $0x14] sm:$0xf]
      %v1421 = vld [vmem:[%s6 + $0x18] sm:$0xf]
      %v1422 = vld [vmem:[%s6 + $0x1c] sm:$0xf]
      %v1423 = vld [vmem:[%s6 + $0x20] sm:$0xf]
      %v1424 = vld [vmem:[%s6 + $0x24] sm:$0xf]
      %v1425 = vld [vmem:[%s6 + $0x28] sm:$0xf]
      %v1426 = vld [vmem:[%s6 + $0x2c] sm:$0xf]
      %v1427 = vld [vmem:[%s6 + $0x30] sm:$0xf]
      %v1428 = vld [vmem:[%s6 + $0x34] sm:$0xf]
      %v1429 = vld [vmem:[%s6 + $0x38] sm:$0xf]
      %v1430 = vld [vmem:[%s6 + $0x3c] sm:$0xf]
      %v1431 = vld [vmem:[%s7] sm:$0x1]
      %v1433 = vperm.slane %v1431, 0
      %v1451 = vunpack.c.l.b16 %v1415
      %v1452 = vunpack.c.l.b16 %v1416
      %v1453 = vunpack.c.l.b16 %v1417
      %v1454 = vunpack.c.l.b16 %v1418
      %v1455 = vunpack.c.l.b16 %v1419
      %v1456 = vunpack.c.l.b16 %v1420
      %v1457 = vunpack.c.l.b16 %v1421
      %v1458 = vunpack.c.l.b16 %v1422
      %v1459 = vunpack.c.l.b16 %v1423
      %v1460 = vunpack.c.l.b16 %v1424
      %v1461 = vunpack.c.l.b16 %v1425
      %v1462 = vunpack.c.l.b16 %v1426
      %v1463 = vunpack.c.l.b16 %v1427
      %v1464 = vunpack.c.l.b16 %v1428
      %v1465 = vunpack.c.l.b16 %v1429
      %v1466 = vunpack.c.l.b16 %v1430
      %v1467 = vpack.c.b16 %v1452, %v1451
      %v1468 = vpack.c.b16 %v1454, %v1453
      %v1469 = vpack.c.b16 %v1456, %v1455
      %v1470 = vpack.c.b16 %v1458, %v1457
      %v1471 = vpack.c.b16 %v1460, %v1459
      %v1472 = vpack.c.b16 %v1462, %v1461
      %v1473 = vpack.c.b16 %v1464, %v1463
      %v1474 = vpack.c.b16 %v1466, %v1465
      %1483 = vmatpush.bf16.msra.mxu0 %v1474
      %1484 = vmatpush.bf16.msra.mxu0 %v1473
      %1485 = vmatpush.bf16.msra.mxu0 %v1472
      %1486 = vmatpush.bf16.msra.mxu0 %v1471
      %1487 = vmatpush.bf16.msra.mxu0 %v1470
      %1488 = vmatpush.bf16.msra.mxu0 %v1469
      %1489 = vmatpush.bf16.msra.mxu0 %v1468
      %1490 = vmatpush.bf16.msra.mxu0 %v1467
      %1491 = vmatmul.bf16.gmra.mxu0 %v1407
      %v1492 = vpop.f32.mrf.mxu0
      %v1493 = vadd.f32 %v1433, %v1492
      %v1494 = vpop.f32.mrf.mxu0
      %v1495 = vadd.f32 %v1433, %v1494
      %1496 = vmatmul.bf16.gmra.mxu0 %v1408
      %v1497 = vpop.f32.mrf.mxu0
      %v1498 = vadd.f32 %v1433, %v1497
      %v1499 = vpop.f32.mrf.mxu0
      %v1500 = vadd.f32 %v1433, %v1499
      %1501 = vmatmul.bf16.gmra.mxu0 %v1409
      %v1502 = vpop.f32.mrf.mxu0
      %v1503 = vadd.f32 %v1433, %v1502
      %v1504 = vpop.f32.mrf.mxu0
      %v1505 = vadd.f32 %v1433, %v1504
      %1506 = vmatmul.bf16.gmra.mxu0 %v1410
      %v1507 = vpop.f32.mrf.mxu0
      %v1508 = vadd.f32 %v1433, %v1507
      %v1509 = vpop.f32.mrf.mxu0
      %v1510 = vadd.f32 %v1433, %v1509
      %1511 = vmatmul.bf16.gmra.mxu0 %v1411
      %v1512 = vpop.f32.mrf.mxu0
      %v1513 = vadd.f32 %v1433, %v1512
      %v1514 = vpop.f32.mrf.mxu0
      %v1515 = vadd.f32 %v1433, %v1514
      %1516 = vmatmul.bf16.gmra.mxu0 %v1412
      %v1517 = vpop.f32.mrf.mxu0
      %v1518 = vadd.f32 %v1433, %v1517
      %v1519 = vpop.f32.mrf.mxu0
      %v1520 = vadd.f32 %v1433, %v1519
      %1521 = vmatmul.bf16.gmra.mxu0 %v1413
      %v1522 = vpop.f32.mrf.mxu0
      %v1523 = vadd.f32 %v1433, %v1522
      %v1524 = vpop.f32.mrf.mxu0
      %v1525 = vadd.f32 %v1433, %v1524
      %1526 = vmatmul.bf16.gmra.mxu0 %v1414
      %v1527 = vpop.f32.mrf.mxu0
      %v1528 = vadd.f32 %v1433, %v1527
      %v1529 = vpop.f32.mrf.mxu0
      %v1530 = vadd.f32 %v1433, %v1529
      %1531 = vdwg.mxu0
      %vm1532 = vcmask 130048
      %1533 = vst.msk [vmem:[%s307] sm:$0xff] %vm1532, %v1493
      %1534 = vst.msk [vmem:[%s307 + $0x8] sm:$0xff] %vm1532, %v1495
      %1535 = vst.msk [vmem:[%s307 + $0x10] sm:$0xff] %vm1532, %v1498
      %1536 = vst.msk [vmem:[%s307 + $0x18] sm:$0xff] %vm1532, %v1500
      %1537 = vst.msk [vmem:[%s307 + $0x20] sm:$0xff] %vm1532, %v1503
      %1538 = vst.msk [vmem:[%s307 + $0x28] sm:$0xff] %vm1532, %v1505
      %1539 = vst.msk [vmem:[%s307 + $0x30] sm:$0xff] %vm1532, %v1508
      %1540 = vst.msk [vmem:[%s307 + $0x38] sm:$0xff] %vm1532, %v1510
      %1541 = vst.msk [vmem:[%s307 + $0x40] sm:$0xff] %vm1532, %v1513
      %1542 = vst.msk [vmem:[%s307 + $0x48] sm:$0xff] %vm1532, %v1515
      %1543 = vst.msk [vmem:[%s307 + $0x50] sm:$0xff] %vm1532, %v1518
      %1544 = vst.msk [vmem:[%s307 + $0x58] sm:$0xff] %vm1532, %v1520
      %1545 = vst.msk [vmem:[%s307 + $0x60] sm:$0xff] %vm1532, %v1523
      %1546 = vst.msk [vmem:[%s307 + $0x68] sm:$0xff] %vm1532, %v1525
      %1547 = vst.msk [vmem:[%s307 + $0x70] sm:$0xff] %vm1532, %v1528
      %1548 = vst.msk [vmem:[%s307 + $0x78] sm:$0xff] %vm1532, %v1530
      %s1549 = smul.u32 16, %s19
      %p1550 = scmp.lt.s32.totalorder %s1549, 31
      %s1551 = scalar_select %p1550, %s1549, 31
      %s1552 = smul.addr %s1551, 8
      %s1553 = scalar_lea.vmem %s8, %s1552
      // Predicated region
      $region53: #{qa_forward.3} parent=51 // pred_check
        %p1554 = pneg %p210
      $region54: #{qa_forward.3} parent=51 // pred_check_branch
        %1556 = sbr.rel (%p1554) target = $region56
      $region55: #{qa_forward.3} parent=51 // pred_region
        %s1557 = smul.u32 16, %s19
      $region56: #{qa_forward.3} parent=51 // pred_fallthru
        _
    $region52: #{qa_forward.3} parent=5 // pred_fallthru
      _
    %p1558 = scmp.le.s32.totalorder 2, %s14
    // Predicated region
    $region57: #{qa_forward.3} parent=5 // pred_check
      %p1559 = pneg %p1558
    $region58: #{qa_forward.3} parent=5 // pred_check_branch
      %1561 = sbr.rel (%p1559) target = $region60
    $region59: #{qa_forward.3} parent=5 // pred_region
      %s1562 = ssub.s32 %s14, 2
      // Predicated region
      $region61: #{qa_forward.3} parent=59 // pred_check
        %p1563 = pneg %p216
      $region62: #{qa_forward.3} parent=59 // pred_check_branch
        %1565 = sbr.rel (%p1563) target = $region64
      $region63: #{qa_forward.3} parent=59 // pred_region
        %s1566 = smul.u32 16, %s20
        %p1567 = scmp.lt.s32.totalorder %s1566, 31
        %s1568 = scalar_select %p1567, %s1566, 31
        %s1569 = smul.addr %s1568, 8
        %s1570 = scalar_lea.vmem %s8, %s1569
      $region64: #{qa_forward.3} parent=59 // pred_fallthru
        _
    $region60: #{qa_forward.3} parent=5 // pred_fallthru
      _
  $region6: #{qa_forward.3} parent=0 // loop_footer
    %s18 = sadd.s32 1, %s14
  $region7: #{qa_forward.3} parent=0 // loop_footer_branch
    %13 = sbr.rel target = $region3
  $region8: #{qa_forward.3} parent=0 // loop_exit
    _

// kernel: qa_forward.2
$region0: #{qa_forward.2}
  #allocation0 [shape = 'u32[]', space=smem, size = 0x4, offset = 0x4, fixed_abs, tag = 'smem constant byte address 0x4 - core index']
  #allocation1 [shape = 'u32[72,128]{1,0:T(1,128)}', space=vmem, size = 0x9000, scoped, tag = 'internal scratch']
  %s0 = inlined_call_operand.vmem [shape: bf16[16,1280], index: 0, kind: input, shape index: {}]
  %s1 = inlined_call_operand.vmem [shape: bf16[16,1235], index: 1, kind: input, shape index: {}]
  %s2 = inlined_call_operand.vmem [shape: bf16[1280,64], index: 2, kind: input, shape index: {}]
  %s3 = inlined_call_operand.vmem [shape: f32[3,64], index: 3, kind: input, shape index: {}]
  %s4 = inlined_call_operand.vmem [shape: bf16[1235,64], index: 4, kind: input, shape index: {}]
  %s5 = inlined_call_operand.vmem [shape: f32[3,64], index: 5, kind: input, shape index: {}]
  %s6 = inlined_call_operand.vmem [shape: bf16[1280,128], index: 6, kind: input, shape index: {}]
  %s7 = inlined_call_operand.vmem [shape: f32[3,128], index: 7, kind: input, shape index: {}]
  %s8 = inlined_call_operand.vmem [shape: bf16[128,128], index: 8, kind: input, shape index: {}]
  %s9 = inlined_call_operand.vmem [shape: bf16[1235,128], index: 9, kind: input, shape index: {}]
  %s10 = inlined_call_operand.vmem [shape: f32[3,128], index: 10, kind: input, shape index: {}]
  %s11 = inlined_call_operand.vmem [shape: bf16[128,128], index: 11, kind: input, shape index: {}]
  %s12 = inlined_call_operand.vmem [shape: bf16[128,128], index: 12, kind: input, shape index: {}]
  %s13 = inlined_call_operand.vmem [shape: f32[1,128], index: 13, kind: input, shape index: {}]
  %s14 = inlined_call_operand.hbm [shape: f32[16,128], index: 14, kind: output, shape index: {0}]
  %s15 = inlined_call_operand.vmem [shape: f32[16,128], index: 15, kind: output, shape index: {1}]
  %s16 = inlined_call_operand.vmem [shape: f32[16,128], index: 16, kind: output, shape index: {2}]
  %17 = xla_tuple %s14, %s15, %s16
  %s18 = sld [smem:[#allocation0]]
  $region105: #{qa_forward.2} parent=0
    _
  %s20 = ssub.s32 1, %s18
  %s21 = scalar_select 0, %s20, %s18
  $region1: #{qa_forward.2} parent=0
    #allocation2 [shape = 'u8[8192]{0}', space=vmem, size = 0x2000, scoped, tag = 'output window, operand 0']
    #allocation3 [shape = 's32[2]{0}', space=sflag, size = 0x8, scoped, tag = 'scoped memory for qa_forward.2']
    %22 = vsyncpa [#allocation3], 0
    %s23 = scalar_lea.sflag [#allocation3], 1
    %24 = vsyncpa %s23, 0
    loop: start=0, step=1, limit=4
    $region2: #{qa_forward.2} parent=1 // loop_pre_header
      _
    $region3: #{qa_forward.2} parent=1 // loop_header
      %s26 = sphi 0, %s30
      %p27 = scmp.ge.s32.totalorder %s26, 4
      %s36 = sphi 0, %s38
      %s39 = sphi 0, %s36
      %s40 = sphi 0, %s39
      %s56 = sphi 0, %s40
      %s62 = sphi 0, %s64
      %s65 = sphi 0, %s62
      %s66 = sphi 0, %s65
      %s82 = sphi 0, %s66
      %s86 = sphi 0, %s86
      %s88 = sphi 0, %s86
      %s89 = sphi 0, %s88
      %s103 = sphi 0, %s89
      %s107 = sphi 0, %s107
      %s109 = sphi 0, %s107
      %s110 = sphi 0, %s109
      %s124 = sphi 0, %s110
      %s128 = sphi 0, %s128
      %s130 = sphi 0, %s128
      %s131 = sphi 0, %s130
      %s145 = sphi 0, %s131
      %s149 = sphi 0, %s149
      %s151 = sphi 0, %s149
      %s152 = sphi 0, %s151
      %s166 = sphi 0, %s152
      %s170 = sphi 0, %s170
      %s172 = sphi 0, %s170
      %s173 = sphi 0, %s172
      %s187 = sphi 0, %s173
      %s191 = sphi 0, %s191
      %s193 = sphi 0, %s191
      %s194 = sphi 0, %s193
      %s208 = sphi 0, %s194
      %s212 = sphi 0, %s212
      %s214 = sphi 0, %s212
      %s215 = sphi 0, %s214
      %s229 = sphi 0, %s215
      %s233 = sphi 0, %s233
      %s235 = sphi 0, %s233
      %s236 = sphi 0, %s235
      %s250 = sphi 0, %s236
      %s254 = sphi 0, %s254
      %s256 = sphi 0, %s254
      %s257 = sphi 0, %s256
      %s271 = sphi 0, %s257
      %s275 = sphi 0, %s275
      %s277 = sphi 0, %s275
      %s278 = sphi 0, %s277
      %s292 = sphi 0, %s278
      %s296 = sphi 0, %s296
      %s298 = sphi 0, %s296
      %s299 = sphi 0, %s298
      %s313 = sphi 0, %s299
      %s317 = sphi 0, %s317
      %s319 = sphi 0, %s317
      %s320 = sphi 0, %s319
      %s334 = sphi 0, %s320
      %s340 = sphi 0, %s342
      %s343 = sphi 0, %s340
      %s344 = sphi 0, %s343
      %s360 = sphi 0, %s344
      %s366 = sphi 0, %s368
      %s369 = sphi 0, %s366
      %s370 = sphi 0, %s369
      %s386 = sphi 0, %s370
      %s392 = sphi 0, %s394
      %s395 = sphi 0, %s392
      %s396 = sphi 0, %s395
      %s412 = sphi 0, %s396
    $region4: #{qa_forward.2} parent=1 // loop_header_branch
      %29 = sbr.rel (%p27) target = $region8
    $region5: #{qa_forward.2} parent=1 // loop_body
      %s31 = ssub.s32 %s26, 1
      %s32 = ssub.s32 %s26, 2
      %s33 = sadd.s32 %s26, 1
      %s34 = ssub.s32 %s26, %s33
      %p35 = scmp.eq.s32.totalorder %s34, 0
      %s37 = sadd.s32 %s36, 1
      %s38 = scalar_select %p35, %s36, %s37
      %p41 = pneg %p35
      %p42 = scmp.eq.s32.totalorder %s26, 1
      %p43 = por %p41, %p42
      %p44 = scmp.ne.s32.totalorder %s36, %s39
      %p45 = scmp.eq.s32.totalorder %s26, 0
      %p46 = por %p44, %p45
      %p47 = scmp.ne.s32.totalorder %s36, %s39
      %p48 = scmp.eq.s32.totalorder %s31, 1
      %p49 = por %p47, %p48
      %p50 = scmp.ne.s32.totalorder %s39, %s40
      %p51 = scmp.eq.s32.totalorder %s31, 0
      %p52 = por %p50, %p51
      %p53 = scmp.ne.s32.totalorder %s39, %s40
      %p54 = scmp.eq.s32.totalorder %s32, 1
      %p55 = por %p53, %p54
      %p57 = scmp.ne.s32.totalorder %s40, %s56
      %p58 = scmp.eq.s32.totalorder %s32, 0
      %p59 = por %p57, %p58
      %s60 = ssub.s32 %s26, %s33
      %p61 = scmp.eq.s32.totalorder %s60, 0
      %s63 = sadd.s32 %s62, 1
      %s64 = scalar_select %p61, %s62, %s63
      %p67 = pneg %p61
      %p68 = scmp.eq.s32.totalorder %s26, 1
      %p69 = por %p67, %p68
      %p70 = scmp.ne.s32.totalorder %s62, %s65
      %p71 = scmp.eq.s32.totalorder %s26, 0
      %p72 = por %p70, %p71
      %p73 = scmp.ne.s32.totalorder %s62, %s65
      %p74 = scmp.eq.s32.totalorder %s31, 1
      %p75 = por %p73, %p74
      %p76 = scmp.ne.s32.totalorder %s65, %s66
      %p77 = scmp.eq.s32.totalorder %s31, 0
      %p78 = por %p76, %p77
      %p79 = scmp.ne.s32.totalorder %s65, %s66
      %p80 = scmp.eq.s32.totalorder %s32, 1
      %p81 = por %p79, %p80
      %p83 = scmp.ne.s32.totalorder %s66, %s82
      %p84 = scmp.eq.s32.totalorder %s32, 0
      %p85 = por %p83, %p84
      %s87 = sadd.s32 %s86, 1
      %p90 = scmp.eq.s32.totalorder %s26, 1
      %p91 = scmp.ne.s32.totalorder %s86, %s88
      %p92 = scmp.eq.s32.totalorder %s26, 0
      %p93 = por %p91, %p92
      %p94 = scmp.ne.s32.totalorder %s86, %s88
      %p95 = scmp.eq.s32.totalorder %s31, 1
      %p96 = por %p94, %p95
      %p97 = scmp.ne.s32.totalorder %s88, %s89
      %p98 = scmp.eq.s32.totalorder %s31, 0
      %p99 = por %p97, %p98
      %p100 = scmp.ne.s32.totalorder %s88, %s89
      %p101 = scmp.eq.s32.totalorder %s32, 1
      %p102 = por %p100, %p101
      %p104 = scmp.ne.s32.totalorder %s89, %s103
      %p105 = scmp.eq.s32.totalorder %s32, 0
      %p106 = por %p104, %p105
      %s108 = sadd.s32 %s107, 1
      %p111 = scmp.eq.s32.totalorder %s26, 1
      %p112 = scmp.ne.s32.totalorder %s107, %s109
      %p113 = scmp.eq.s32.totalorder %s26, 0
      %p114 = por %p112, %p113
      %p115 = scmp.ne.s32.totalorder %s107, %s109
      %p116 = scmp.eq.s32.totalorder %s31, 1
      %p117 = por %p115, %p116
      %p118 = scmp.ne.s32.totalorder %s109, %s110
      %p119 = scmp.eq.s32.totalorder %s31, 0
      %p120 = por %p118, %p119
      %p121 = scmp.ne.s32.totalorder %s109, %s110
      %p122 = scmp.eq.s32.totalorder %s32, 1
      %p123 = por %p121, %p122
      %p125 = scmp.ne.s32.totalorder %s110, %s124
      %p126 = scmp.eq.s32.totalorder %s32, 0
      %p127 = por %p125, %p126
      %s129 = sadd.s32 %s128, 1
      %p132 = scmp.eq.s32.totalorder %s26, 1
      %p133 = scmp.ne.s32.totalorder %s128, %s130
      %p134 = scmp.eq.s32.totalorder %s26, 0
      %p135 = por %p133, %p134
      %p136 = scmp.ne.s32.totalorder %s128, %s130
      %p137 = scmp.eq.s32.totalorder %s31, 1
      %p138 = por %p136, %p137
      %p139 = scmp.ne.s32.totalorder %s130, %s131
      %p140 = scmp.eq.s32.totalorder %s31, 0
      %p141 = por %p139, %p140
      %p142 = scmp.ne.s32.totalorder %s130, %s131
      %p143 = scmp.eq.s32.totalorder %s32, 1
      %p144 = por %p142, %p143
      %p146 = scmp.ne.s32.totalorder %s131, %s145
      %p147 = scmp.eq.s32.totalorder %s32, 0
      %p148 = por %p146, %p147
      %s150 = sadd.s32 %s149, 1
      %p153 = scmp.eq.s32.totalorder %s26, 1
      %p154 = scmp.ne.s32.totalorder %s149, %s151
      %p155 = scmp.eq.s32.totalorder %s26, 0
      %p156 = por %p154, %p155
      %p157 = scmp.ne.s32.totalorder %s149, %s151
      %p158 = scmp.eq.s32.totalorder %s31, 1
      %p159 = por %p157, %p158
      %p160 = scmp.ne.s32.totalorder %s151, %s152
      %p161 = scmp.eq.s32.totalorder %s31, 0
      %p162 = por %p160, %p161
      %p163 = scmp.ne.s32.totalorder %s151, %s152
      %p164 = scmp.eq.s32.totalorder %s32, 1
      %p165 = por %p163, %p164
      %p167 = scmp.ne.s32.totalorder %s152, %s166
      %p168 = scmp.eq.s32.totalorder %s32, 0
      %p169 = por %p167, %p168
      %s171 = sadd.s32 %s170, 1
      %p174 = scmp.eq.s32.totalorder %s26, 1
      %p175 = scmp.ne.s32.totalorder %s170, %s172
      %p176 = scmp.eq.s32.totalorder %s26, 0
      %p177 = por %p175, %p176
      %p178 = scmp.ne.s32.totalorder %s170, %s172
      %p179 = scmp.eq.s32.totalorder %s31, 1
      %p180 = por %p178, %p179
      %p181 = scmp.ne.s32.totalorder %s172, %s173
      %p182 = scmp.eq.s32.totalorder %s31, 0
      %p183 = por %p181, %p182
      %p184 = scmp.ne.s32.totalorder %s172, %s173
      %p185 = scmp.eq.s32.totalorder %s32, 1
      %p186 = por %p184, %p185
      %p188 = scmp.ne.s32.totalorder %s173, %s187
      %p189 = scmp.eq.s32.totalorder %s32, 0
      %p190 = por %p188, %p189
      %s192 = sadd.s32 %s191, 1
      %p195 = scmp.eq.s32.totalorder %s26, 1
      %p196 = scmp.ne.s32.totalorder %s191, %s193
      %p197 = scmp.eq.s32.totalorder %s26, 0
      %p198 = por %p196, %p197
      %p199 = scmp.ne.s32.totalorder %s191, %s193
      %p200 = scmp.eq.s32.totalorder %s31, 1
      %p201 = por %p199, %p200
      %p202 = scmp.ne.s32.totalorder %s193, %s194
      %p203 = scmp.eq.s32.totalorder %s31, 0
      %p204 = por %p202, %p203
      %p205 = scmp.ne.s32.totalorder %s193, %s194
      %p206 = scmp.eq.s32.totalorder %s32, 1
      %p207 = por %p205, %p206
      %p209 = scmp.ne.s32.totalorder %s194, %s208
      %p210 = scmp.eq.s32.totalorder %s32, 0
      %p211 = por %p209, %p210
      %s213 = sadd.s32 %s212, 1
      %p216 = scmp.eq.s32.totalorder %s26, 1
      %p217 = scmp.ne.s32.totalorder %s212, %s214
      %p218 = scmp.eq.s32.totalorder %s26, 0
      %p219 = por %p217, %p218
      %p220 = scmp.ne.s32.totalorder %s212, %s214
      %p221 = scmp.eq.s32.totalorder %s31, 1
      %p222 = por %p220, %p221
      %p223 = scmp.ne.s32.totalorder %s214, %s215
      %p224 = scmp.eq.s32.totalorder %s31, 0
      %p225 = por %p223, %p224
      %p226 = scmp.ne.s32.totalorder %s214, %s215
      %p227 = scmp.eq.s32.totalorder %s32, 1
      %p228 = por %p226, %p227
      %p230 = scmp.ne.s32.totalorder %s215, %s229
      %p231 = scmp.eq.s32.totalorder %s32, 0
      %p232 = por %p230, %p231
      %s234 = sadd.s32 %s233, 1
      %p237 = scmp.eq.s32.totalorder %s26, 1
      %p238 = scmp.ne.s32.totalorder %s233, %s235
      %p239 = scmp.eq.s32.totalorder %s26, 0
      %p240 = por %p238, %p239
      %p241 = scmp.ne.s32.totalorder %s233, %s235
      %p242 = scmp.eq.s32.totalorder %s31, 1
      %p243 = por %p241, %p242
      %p244 = scmp.ne.s32.totalorder %s235, %s236
      %p245 = scmp.eq.s32.totalorder %s31, 0
      %p246 = por %p244, %p245
      %p247 = scmp.ne.s32.totalorder %s235, %s236
      %p248 = scmp.eq.s32.totalorder %s32, 1
      %p249 = por %p247, %p248
      %p251 = scmp.ne.s32.totalorder %s236, %s250
      %p252 = scmp.eq.s32.totalorder %s32, 0
      %p253 = por %p251, %p252
      %s255 = sadd.s32 %s254, 1
      %p258 = scmp.eq.s32.totalorder %s26, 1
      %p259 = scmp.ne.s32.totalorder %s254, %s256
      %p260 = scmp.eq.s32.totalorder %s26, 0
      %p261 = por %p259, %p260
      %p262 = scmp.ne.s32.totalorder %s254, %s256
      %p263 = scmp.eq.s32.totalorder %s31, 1
      %p264 = por %p262, %p263
      %p265 = scmp.ne.s32.totalorder %s256, %s257
      %p266 = scmp.eq.s32.totalorder %s31, 0
      %p267 = por %p265, %p266
      %p268 = scmp.ne.s32.totalorder %s256, %s257
      %p269 = scmp.eq.s32.totalorder %s32, 1
      %p270 = por %p268, %p269
      %p272 = scmp.ne.s32.totalorder %s257, %s271
      %p273 = scmp.eq.s32.totalorder %s32, 0
      %p274 = por %p272, %p273
      %s276 = sadd.s32 %s275, 1
      %p279 = scmp.eq.s32.totalorder %s26, 1
      %p280 = scmp.ne.s32.totalorder %s275, %s277
      %p281 = scmp.eq.s32.totalorder %s26, 0
      %p282 = por %p280, %p281
      %p283 = scmp.ne.s32.totalorder %s275, %s277
      %p284 = scmp.eq.s32.totalorder %s31, 1
      %p285 = por %p283, %p284
      %p286 = scmp.ne.s32.totalorder %s277, %s278
      %p287 = scmp.eq.s32.totalorder %s31, 0
      %p288 = por %p286, %p287
      %p289 = scmp.ne.s32.totalorder %s277, %s278
      %p290 = scmp.eq.s32.totalorder %s32, 1
      %p291 = por %p289, %p290
      %p293 = scmp.ne.s32.totalorder %s278, %s292
      %p294 = scmp.eq.s32.totalorder %s32, 0
      %p295 = por %p293, %p294
      %s297 = sadd.s32 %s296, 1
      %p300 = scmp.eq.s32.totalorder %s26, 1
      %p301 = scmp.ne.s32.totalorder %s296, %s298
      %p302 = scmp.eq.s32.totalorder %s26, 0
      %p303 = por %p301, %p302
      %p304 = scmp.ne.s32.totalorder %s296, %s298
      %p305 = scmp.eq.s32.totalorder %s31, 1
      %p306 = por %p304, %p305
      %p307 = scmp.ne.s32.totalorder %s298, %s299
      %p308 = scmp.eq.s32.totalorder %s31, 0
      %p309 = por %p307, %p308
      %p310 = scmp.ne.s32.totalorder %s298, %s299
      %p311 = scmp.eq.s32.totalorder %s32, 1
      %p312 = por %p310, %p311
      %p314 = scmp.ne.s32.totalorder %s299, %s313
      %p315 = scmp.eq.s32.totalorder %s32, 0
      %p316 = por %p314, %p315
      %s318 = sadd.s32 %s317, 1
      %p321 = scmp.eq.s32.totalorder %s26, 1
      %p322 = scmp.ne.s32.totalorder %s317, %s319
      %p323 = scmp.eq.s32.totalorder %s26, 0
      %p324 = por %p322, %p323
      %p325 = scmp.ne.s32.totalorder %s317, %s319
      %p326 = scmp.eq.s32.totalorder %s31, 1
      %p327 = por %p325, %p326
      %p328 = scmp.ne.s32.totalorder %s319, %s320
      %p329 = scmp.eq.s32.totalorder %s31, 0
      %p330 = por %p328, %p329
      %p331 = scmp.ne.s32.totalorder %s319, %s320
      %p332 = scmp.eq.s32.totalorder %s32, 1
      %p333 = por %p331, %p332
      %p335 = scmp.ne.s32.totalorder %s320, %s334
      %p336 = scmp.eq.s32.totalorder %s32, 0
      %p337 = por %p335, %p336
      %s338 = ssub.s32 %s26, %s33
      %p339 = scmp.eq.s32.totalorder %s338, 0
      %s341 = sadd.s32 %s340, 1
      %s342 = scalar_select %p339, %s340, %s341
      %p345 = pneg %p339
      %p346 = scmp.eq.s32.totalorder %s26, 1
      %p347 = por %p345, %p346
      %p348 = scmp.ne.s32.totalorder %s340, %s343
      %p349 = scmp.eq.s32.totalorder %s26, 0
      %p350 = por %p348, %p349
      %p351 = scmp.ne.s32.totalorder %s340, %s343
      %p352 = scmp.eq.s32.totalorder %s31, 1
      %p353 = por %p351, %p352
      %p354 = scmp.ne.s32.totalorder %s343, %s344
      %p355 = scmp.eq.s32.totalorder %s31, 0
      %p356 = por %p354, %p355
      %p357 = scmp.ne.s32.totalorder %s343, %s344
      %p358 = scmp.eq.s32.totalorder %s32, 1
      %p359 = por %p357, %p358
      %p361 = scmp.ne.s32.totalorder %s344, %s360
      %p362 = scmp.eq.s32.totalorder %s32, 0
      %p363 = por %p361, %p362
      %s364 = ssub.s32 %s26, %s33
      %p365 = scmp.eq.s32.totalorder %s364, 0
      %s367 = sadd.s32 %s366, 1
      %s368 = scalar_select %p365, %s366, %s367
      %p371 = pneg %p365
      %p372 = scmp.eq.s32.totalorder %s26, 1
      %p373 = por %p371, %p372
      %p374 = scmp.ne.s32.totalorder %s366, %s369
      %p375 = scmp.eq.s32.totalorder %s26, 0
      %p376 = por %p374, %p375
      %p377 = scmp.ne.s32.totalorder %s366, %s369
      %p378 = scmp.eq.s32.totalorder %s31, 1
      %p379 = por %p377, %p378
      %p380 = scmp.ne.s32.totalorder %s369, %s370
      %p381 = scmp.eq.s32.totalorder %s31, 0
      %p382 = por %p380, %p381
      %p383 = scmp.ne.s32.totalorder %s369, %s370
      %p384 = scmp.eq.s32.totalorder %s32, 1
      %p385 = por %p383, %p384
      %p387 = scmp.ne.s32.totalorder %s370, %s386
      %p388 = scmp.eq.s32.totalorder %s32, 0
      %p389 = por %p387, %p388
      %s390 = ssub.s32 %s26, %s33
      %p391 = scmp.eq.s32.totalorder %s390, 0
      %s393 = sadd.s32 %s392, 1
      %s394 = scalar_select %p391, %s392, %s393
      %p397 = pneg %p391
      %p398 = scmp.eq.s32.totalorder %s26, 1
      %p399 = por %p397, %p398
      %p400 = scmp.ne.s32.totalorder %s392, %s395
      %p401 = scmp.eq.s32.totalorder %s26, 0
      %p402 = por %p400, %p401
      %p403 = scmp.ne.s32.totalorder %s392, %s395
      %p404 = scmp.eq.s32.totalorder %s31, 1
      %p405 = por %p403, %p404
      %p406 = scmp.ne.s32.totalorder %s395, %s396
      %p407 = scmp.eq.s32.totalorder %s31, 0
      %p408 = por %p406, %p407
      %p409 = scmp.ne.s32.totalorder %s395, %s396
      %p410 = scmp.eq.s32.totalorder %s32, 1
      %p411 = por %p409, %p410
      %p413 = scmp.ne.s32.totalorder %s396, %s412
      %p414 = scmp.eq.s32.totalorder %s32, 0
      %p415 = por %p413, %p414
      %p416 = scmp.le.s32.totalorder 1, %s26
      %p417 = scmp.lt.s32.totalorder %s26, 3
      %p418 = pnand %p416, %p417
      %p419 = pneg %p418
      // Predicated region
      $region9: #{qa_forward.2} parent=5 // pred_check
        _
      $region10: #{qa_forward.2} parent=5 // pred_check_branch
        %421 = sbr.rel (%p418) target = $region12
      $region11: #{qa_forward.2} parent=5 // pred_region
        %s422 = ssub.s32 %s26, 1
        // Predicated region
        $region13: #{qa_forward.2} parent=11 // pred_check
          %p423 = pneg %p99
        $region14: #{qa_forward.2} parent=11 // pred_check_branch
          %425 = sbr.rel (%p423) target = $region16
        $region15: #{qa_forward.2} parent=11 // pred_region
          _
        $region16: #{qa_forward.2} parent=11 // pred_fallthru
          _
        // Predicated region
        $region17: #{qa_forward.2} parent=11 // pred_check
          %p426 = pneg %p120
        $region18: #{qa_forward.2} parent=11 // pred_check_branch
          %428 = sbr.rel (%p426) target = $region20
        $region19: #{qa_forward.2} parent=11 // pred_region
          _
        $region20: #{qa_forward.2} parent=11 // pred_fallthru
          _
        // Predicated region
        $region21: #{qa_forward.2} parent=11 // pred_check
          %p429 = pneg %p141
        $region22: #{qa_forward.2} parent=11 // pred_check_branch
          %431 = sbr.rel (%p429) target = $region24
        $region23: #{qa_forward.2} parent=11 // pred_region
          _
        $region24: #{qa_forward.2} parent=11 // pred_fallthru
          _
        // Predicated region
        $region25: #{qa_forward.2} parent=11 // pred_check
          %p432 = pneg %p162
        $region26: #{qa_forward.2} parent=11 // pred_check_branch
          %434 = sbr.rel (%p432) target = $region28
        $region27: #{qa_forward.2} parent=11 // pred_region
          _
        $region28: #{qa_forward.2} parent=11 // pred_fallthru
          _
        // Predicated region
        $region29: #{qa_forward.2} parent=11 // pred_check
          %p435 = pneg %p183
        $region30: #{qa_forward.2} parent=11 // pred_check_branch
          %437 = sbr.rel (%p435) target = $region32
        $region31: #{qa_forward.2} parent=11 // pred_region
          _
        $region32: #{qa_forward.2} parent=11 // pred_fallthru
          _
        // Predicated region
        $region33: #{qa_forward.2} parent=11 // pred_check
          %p438 = pneg %p204
        $region34: #{qa_forward.2} parent=11 // pred_check_branch
          %440 = sbr.rel (%p438) target = $region36
        $region35: #{qa_forward.2} parent=11 // pred_region
          _
        $region36: #{qa_forward.2} parent=11 // pred_fallthru
          _
        // Predicated region
        $region37: #{qa_forward.2} parent=11 // pred_check
          %p441 = pneg %p225
        $region38: #{qa_forward.2} parent=11 // pred_check_branch
          %443 = sbr.rel (%p441) target = $region40
        $region39: #{qa_forward.2} parent=11 // pred_region
          _
        $region40: #{qa_forward.2} parent=11 // pred_fallthru
          _
        // Predicated region
        $region41: #{qa_forward.2} parent=11 // pred_check
          %p444 = pneg %p246
        $region42: #{qa_forward.2} parent=11 // pred_check_branch
          %446 = sbr.rel (%p444) target = $region44
        $region43: #{qa_forward.2} parent=11 // pred_region
          _
        $region44: #{qa_forward.2} parent=11 // pred_fallthru
          _
        // Predicated region
        $region45: #{qa_forward.2} parent=11 // pred_check
          %p447 = pneg %p267
        $region46: #{qa_forward.2} parent=11 // pred_check_branch
          %449 = sbr.rel (%p447) target = $region48
        $region47: #{qa_forward.2} parent=11 // pred_region
          _
        $region48: #{qa_forward.2} parent=11 // pred_fallthru
          _
        // Predicated region
        $region49: #{qa_forward.2} parent=11 // pred_check
          %p450 = pneg %p288
        $region50: #{qa_forward.2} parent=11 // pred_check_branch
          %452 = sbr.rel (%p450) target = $region52
        $region51: #{qa_forward.2} parent=11 // pred_region
          _
        $region52: #{qa_forward.2} parent=11 // pred_fallthru
          _
        // Predicated region
        $region53: #{qa_forward.2} parent=11 // pred_check
          %p453 = pneg %p309
        $region54: #{qa_forward.2} parent=11 // pred_check_branch
          %455 = sbr.rel (%p453) target = $region56
        $region55: #{qa_forward.2} parent=11 // pred_region
          _
        $region56: #{qa_forward.2} parent=11 // pred_fallthru
          _
        // Predicated region
        $region57: #{qa_forward.2} parent=11 // pred_check
          %p456 = pneg %p330
        $region58: #{qa_forward.2} parent=11 // pred_check_branch
          %458 = sbr.rel (%p456) target = $region60
        $region59: #{qa_forward.2} parent=11 // pred_region
          _
        $region60: #{qa_forward.2} parent=11 // pred_fallthru
          _
      $region12: #{qa_forward.2} parent=5 // pred_fallthru
        _
      %p459 = scmp.lt.s32.totalorder %s26, 2
      // Predicated region
      $region61: #{qa_forward.2} parent=5 // pred_check
        %p460 = pneg %p459
      $region62: #{qa_forward.2} parent=5 // pred_check_branch
        %462 = sbr.rel (%p460) target = $region64
      $region63: #{qa_forward.2} parent=5 // pred_region
        // Predicated region
        $region65: #{qa_forward.2} parent=63 // pred_check
          %p463 = pneg %p46
        $region66: #{qa_forward.2} parent=63 // pred_check_branch
          %465 = sbr.rel (%p463) target = $region68
        $region67: #{qa_forward.2} parent=63 // pred_region
          %p466 = scmp.lt.s32.totalorder %s26, 1
          %s467 = scalar_select %p466, %s26, 1
          %s468 = smul.addr %s467, 10
          %s469 = smul.addr %s468, 4
          %s470 = scalar_lea.vmem %s0, %s469
        $region68: #{qa_forward.2} parent=63 // pred_fallthru
          _
        // Predicated region
        $region69: #{qa_forward.2} parent=63 // pred_check
          %p471 = pneg %p72
        $region70: #{qa_forward.2} parent=63 // pred_check_branch
          %473 = sbr.rel (%p471) target = $region72
        $region71: #{qa_forward.2} parent=63 // pred_region
          %p474 = scmp.lt.s32.totalorder %s26, 1
          %s475 = scalar_select %p474, %s26, 1
          %s476 = smul.addr %s475, 10
          %s477 = smul.addr %s476, 4
          %s478 = scalar_lea.vmem %s1, %s477
        $region72: #{qa_forward.2} parent=63 // pred_fallthru
          _
      $region64: #{qa_forward.2} parent=5 // pred_fallthru
        _
      %p479 = scmp.le.s32.totalorder 1, %s26
      %p480 = scmp.lt.s32.totalorder %s26, 3
      %p481 = pnand %p479, %p480
      %p482 = pneg %p481
      // Predicated region
      $region73: #{qa_forward.2} parent=5 // pred_check
        _
      $region74: #{qa_forward.2} parent=5 // pred_check_branch
        %484 = sbr.rel (%p481) target = $region76
      $region75: #{qa_forward.2} parent=5 // pred_region
        %s485 = ssub.s32 %s26, 1
        %p486 = scmp.lt.s32.totalorder %s31, 1
        %s487 = scalar_select %p486, %s31, 1
        %s488 = smul.addr %s487, 10
        %s489 = smul.addr %s488, 4
        %s490 = scalar_lea.vmem %s0, %s489
        %p491 = pneg %p52
        %p492 = pneg %p49
        %p493 = scmp.lt.s32.totalorder %s31, 1
        %s494 = scalar_select %p493, %s31, 1
        %s495 = smul.addr %s494, 10
        %s496 = smul.addr %s495, 4
        %s497 = scalar_lea.vmem %s1, %s496
        %p498 = pneg %p78
        %p499 = pneg %p75
        %p500 = pneg %p99
        %p501 = pneg %p96
        %p502 = pneg %p120
        %p503 = pneg %p117
        %p504 = pneg %p141
        %p505 = pneg %p138
        %p506 = pneg %p162
        %p507 = pneg %p159
        %p508 = pneg %p183
        %p509 = pneg %p180
        %p510 = pneg %p204
        %p511 = pneg %p201
        %p512 = pneg %p225
        %p513 = pneg %p222
        %p514 = pneg %p246
        %p515 = pneg %p243
        %p516 = pneg %p267
        %p517 = pneg %p264
        %p518 = pneg %p288
        %p519 = pneg %p285
        %p520 = pneg %p309
        %p521 = pneg %p306
        %p522 = pneg %p330
        %p523 = pneg %p327
        %p524 = pneg %p356
        %p525 = pneg %p353
        %s526 = sand.u32 %s343, 1
        %s527 = scalar_lea.sflag [#allocation3], %s526
        %s528 = sand.u32 %s343, 1
        %s529 = smul.addr %s528, 8
        %s530 = scalar_lea.vmem [#allocation2], %s529
        %p531 = pneg %p382
        %p532 = pneg %p379
        %p533 = scmp.lt.s32.totalorder %s31, 1
        %s534 = scalar_select %p533, %s31, 1
        %s535 = smul.addr %s534, 8
        %s536 = scalar_lea.vmem %s15, %s535
        %p537 = pneg %p408
        %p538 = pneg %p405
        %p539 = scmp.lt.s32.totalorder %s31, 1
        %s540 = scalar_select %p539, %s31, 1
        %s541 = smul.addr %s540, 8
        %s542 = scalar_lea.vmem %s16, %s541
        %p543 = scmp.lt.s32.totalorder %s31, 1
        %s544 = scalar_select %p543, %s31, 1
        %s545 = smul.addr %s544, 10
        %s546 = smul.addr %s545, 4
        %s547 = scalar_lea.vmem %s0, %s546
        %p548 = scmp.lt.s32.totalorder %s31, 1
        %s549 = scalar_select %p548, %s31, 1
        %s550 = smul.addr %s549, 10
        %s551 = smul.addr %s550, 4
        %s552 = scalar_lea.vmem %s1, %s551
        %p553 = scmp.lt.s32.totalorder %s31, 1
        %s554 = scalar_select %p553, %s31, 1
        %s555 = smul.addr %s554, 8
        %s556 = scalar_lea.vmem %s15, %s555
        %p557 = scmp.lt.s32.totalorder %s31, 1
        %s558 = scalar_select %p557, %s31, 1
        %s559 = smul.addr %s558, 8
        %s560 = scalar_lea.vmem %s16, %s559
        %v562 = vld [vmem:[%s547] sm:$0xff]
        %v563 = vld [vmem:[%s547 + $0x8] sm:$0xff]
        %v564 = vld [vmem:[%s547 + $0x10] sm:$0xff]
        %v565 = vld [vmem:[%s547 + $0x18] sm:$0xff]
        %v566 = vld [vmem:[%s547 + $0x20] sm:$0xff]
        %v567 = vld [vmem:[%s552] sm:$0xff]
        %v568 = vld [vmem:[%s552 + $0x8] sm:$0xff]
        %v569 = vld [vmem:[%s552 + $0x10] sm:$0xff]
        %v570 = vld [vmem:[%s552 + $0x18] sm:$0xff]
        %v571 = vld [vmem:[%s552 + $0x20] sm:$0xff]
        %v572 = vld [vmem:[%s2] sm:$0xf]
        %v573 = vld [vmem:[%s2 + $0x4] sm:$0xf]
        %v574 = vld [vmem:[%s2 + $0x8] sm:$0xf]
        %v575 = vld [vmem:[%s2 + $0xc] sm:$0xf]
        %v576 = vld [vmem:[%s2 + $0x10] sm:$0xf]
        %v577 = vld [vmem:[%s2 + $0x14] sm:$0xf]
        %v578 = vld [vmem:[%s2 + $0x18] sm:$0xf]
        %v579 = vld [vmem:[%s2 + $0x1c] sm:$0xf]
        %v580 = vld [vmem:[%s2 + $0x20] sm:$0xf]
        %v581 = vld [vmem:[%s2 + $0x24] sm:$0xf]
        %v582 = vld [vmem:[%s2 + $0x28] sm:$0xf]
        %v583 = vld [vmem:[%s2 + $0x2c] sm:$0xf]
        %v584 = vld [vmem:[%s2 + $0x30] sm:$0xf]
        %v585 = vld [vmem:[%s2 + $0x34] sm:$0xf]
        %v586 = vld [vmem:[%s2 + $0x38] sm:$0xf]
        %v587 = vld [vmem:[%s2 + $0x3c] sm:$0xf]
        %v588 = vld [vmem:[%s2 + $0x40] sm:$0xf]
        %v589 = vld [vmem:[%s2 + $0x44] sm:$0xf]
        %v590 = vld [vmem:[%s2 + $0x48] sm:$0xf]
        %v591 = vld [vmem:[%s2 + $0x4c] sm:$0xf]
        %v592 = vld [vmem:[%s2 + $0x50] sm:$0xf]
        %v593 = vld [vmem:[%s2 + $0x54] sm:$0xf]
        %v594 = vld [vmem:[%s2 + $0x58] sm:$0xf]
        %v595 = vld [vmem:[%s2 + $0x5c] sm:$0xf]
        %v596 = vld [vmem:[%s2 + $0x60] sm:$0xf]
        %v597 = vld [vmem:[%s2 + $0x64] sm:$0xf]
        %v598 = vld [vmem:[%s2 + $0x68] sm:$0xf]
        %v599 = vld [vmem:[%s2 + $0x6c] sm:$0xf]
        %v600 = vld [vmem:[%s2 + $0x70] sm:$0xf]
        %v601 = vld [vmem:[%s2 + $0x74] sm:$0xf]
        %v602 = vld [vmem:[%s2 + $0x78] sm:$0xf]
        %v603 = vld [vmem:[%s2 + $0x7c] sm:$0xf]
        %v604 = vld [vmem:[%s2 + $0x80] sm:$0xf]
        %v605 = vld [vmem:[%s2 + $0x84] sm:$0xf]
        %v606 = vld [vmem:[%s2 + $0x88] sm:$0xf]
        %v607 = vld [vmem:[%s2 + $0x8c] sm:$0xf]
        %v608 = vld [vmem:[%s2 + $0x90] sm:$0xf]
        %v609 = vld [vmem:[%s2 + $0x94] sm:$0xf]
        %v610 = vld [vmem:[%s2 + $0x98] sm:$0xf]
        %v611 = vld [vmem:[%s2 + $0x9c] sm:$0xf]
        %v612 = vld [vmem:[%s2 + $0xa0] sm:$0xf]
        %v613 = vld [vmem:[%s2 + $0xa4] sm:$0xf]
        %v614 = vld [vmem:[%s2 + $0xa8] sm:$0xf]
        %v615 = vld [vmem:[%s2 + $0xac] sm:$0xf]
        %v616 = vld [vmem:[%s2 + $0xb0] sm:$0xf]
        %v617 = vld [vmem:[%s2 + $0xb4] sm:$0xf]
        %v618 = vld [vmem:[%s2 + $0xb8] sm:$0xf]
        %v619 = vld [vmem:[%s2 + $0xbc] sm:$0xf]
        %v620 = vld [vmem:[%s2 + $0xc0] sm:$0xf]
        %v621 = vld [vmem:[%s2 + $0xc4] sm:$0xf]
        %v622 = vld [vmem:[%s2 + $0xc8] sm:$0xf]
        %v623 = vld [vmem:[%s2 + $0xcc] sm:$0xf]
        %v624 = vld [vmem:[%s2 + $0xd0] sm:$0xf]
        %v625 = vld [vmem:[%s2 + $0xd4] sm:$0xf]
        %v626 = vld [vmem:[%s2 + $0xd8] sm:$0xf]
        %v627 = vld [vmem:[%s2 + $0xdc] sm:$0xf]
        %v628 = vld [vmem:[%s2 + $0xe0] sm:$0xf]
        %v629 = vld [vmem:[%s2 + $0xe4] sm:$0xf]
        %v630 = vld [vmem:[%s2 + $0xe8] sm:$0xf]
        %v631 = vld [vmem:[%s2 + $0xec] sm:$0xf]
        %v632 = vld [vmem:[%s2 + $0xf0] sm:$0xf]
        %v633 = vld [vmem:[%s2 + $0xf4] sm:$0xf]
        %v634 = vld [vmem:[%s2 + $0xf8] sm:$0xf]
        %v635 = vld [vmem:[%s2 + $0xfc] sm:$0xf]
        %v636 = vld [vmem:[%s2 + $0x100] sm:$0xf]
        %v637 = vld [vmem:[%s2 + $0x104] sm:$0xf]
        %v638 = vld [vmem:[%s2 + $0x108] sm:$0xf]
        %v639 = vld [vmem:[%s2 + $0x10c] sm:$0xf]
        %v640 = vld [vmem:[%s2 + $0x110] sm:$0xf]
        %v641 = vld [vmem:[%s2 + $0x114] sm:$0xf]
        %v642 = vld [vmem:[%s2 + $0x118] sm:$0xf]
        %v643 = vld [vmem:[%s2 + $0x11c] sm:$0xf]
        %v644 = vld [vmem:[%s2 + $0x120] sm:$0xf]
        %v645 = vld [vmem:[%s2 + $0x124] sm:$0xf]
        %v646 = vld [vmem:[%s2 + $0x128] sm:$0xf]
        %v647 = vld [vmem:[%s2 + $0x12c] sm:$0xf]
        %v648 = vld [vmem:[%s2 + $0x130] sm:$0xf]
        %v649 = vld [vmem:[%s2 + $0x134] sm:$0xf]
        %v650 = vld [vmem:[%s2 + $0x138] sm:$0xf]
        %v651 = vld [vmem:[%s2 + $0x13c] sm:$0xf]
        %v652 = vld [vmem:[%s2 + $0x140] sm:$0xf]
        %v653 = vld [vmem:[%s2 + $0x144] sm:$0xf]
        %v654 = vld [vmem:[%s2 + $0x148] sm:$0xf]
        %v655 = vld [vmem:[%s2 + $0x14c] sm:$0xf]
        %v656 = vld [vmem:[%s2 + $0x150] sm:$0xf]
        %v657 = vld [vmem:[%s2 + $0x154] sm:$0xf]
        %v658 = vld [vmem:[%s2 + $0x158] sm:$0xf]
        %v659 = vld [vmem:[%s2 + $0x15c] sm:$0xf]
        %v660 = vld [vmem:[%s2 + $0x160] sm:$0xf]
        %v661 = vld [vmem:[%s2 + $0x164] sm:$0xf]
        %v662 = vld [vmem:[%s2 + $0x168] sm:$0xf]
        %v663 = vld [vmem:[%s2 + $0x16c] sm:$0xf]
        %v664 = vld [vmem:[%s2 + $0x170] sm:$0xf]
        %v665 = vld [vmem:[%s2 + $0x174] sm:$0xf]
        %v666 = vld [vmem:[%s2 + $0x178] sm:$0xf]
        %v667 = vld [vmem:[%s2 + $0x17c] sm:$0xf]
        %v668 = vld [vmem:[%s2 + $0x180] sm:$0xf]
        %v669 = vld [vmem:[%s2 + $0x184] sm:$0xf]
        %v670 = vld [vmem:[%s2 + $0x188] sm:$0xf]
        %v671 = vld [vmem:[%s2 + $0x18c] sm:$0xf]
        %v672 = vld [vmem:[%s2 + $0x190] sm:$0xf]
        %v673 = vld [vmem:[%s2 + $0x194] sm:$0xf]
        %v674 = vld [vmem:[%s2 + $0x198] sm:$0xf]
        %v675 = vld [vmem:[%s2 + $0x19c] sm:$0xf]
        %v676 = vld [vmem:[%s2 + $0x1a0] sm:$0xf]
        %v677 = vld [vmem:[%s2 + $0x1a4] sm:$0xf]
        %v678 = vld [vmem:[%s2 + $0x1a8] sm:$0xf]
        %v679 = vld [vmem:[%s2 + $0x1ac] sm:$0xf]
        %v680 = vld [vmem:[%s2 + $0x1b0] sm:$0xf]
        %v681 = vld [vmem:[%s2 + $0x1b4] sm:$0xf]
        %v682 = vld [vmem:[%s2 + $0x1b8] sm:$0xf]
        %v683 = vld [vmem:[%s2 + $0x1bc] sm:$0xf]
        %v684 = vld [vmem:[%s2 + $0x1c0] sm:$0xf]
        %v685 = vld [vmem:[%s2 + $0x1c4] sm:$0xf]
        %v686 = vld [vmem:[%s2 + $0x1c8] sm:$0xf]
        %v687 = vld [vmem:[%s2 + $0x1cc] sm:$0xf]
        %v688 = vld [vmem:[%s2 + $0x1d0] sm:$0xf]
        %v689 = vld [vmem:[%s2 + $0x1d4] sm:$0xf]
        %v690 = vld [vmem:[%s2 + $0x1d8] sm:$0xf]
        %v691 = vld [vmem:[%s2 + $0x1dc] sm:$0xf]
        %v692 = vld [vmem:[%s2 + $0x1e0] sm:$0xf]
        %v693 = vld [vmem:[%s2 + $0x1e4] sm:$0xf]
        %v694 = vld [vmem:[%s2 + $0x1e8] sm:$0xf]
        %v695 = vld [vmem:[%s2 + $0x1ec] sm:$0xf]
        %v696 = vld [vmem:[%s2 + $0x1f0] sm:$0xf]
        %v697 = vld [vmem:[%s2 + $0x1f4] sm:$0xf]
        %v698 = vld [vmem:[%s2 + $0x1f8] sm:$0xf]
        %v699 = vld [vmem:[%s2 + $0x1fc] sm:$0xf]
        %v700 = vld [vmem:[%s2 + $0x200] sm:$0xf]
        %v701 = vld [vmem:[%s2 + $0x204] sm:$0xf]
        %v702 = vld [vmem:[%s2 + $0x208] sm:$0xf]
        %v703 = vld [vmem:[%s2 + $0x20c] sm:$0xf]
        %v704 = vld [vmem:[%s2 + $0x210] sm:$0xf]
        %v705 = vld [vmem:[%s2 + $0x214] sm:$0xf]
        %v706 = vld [vmem:[%s2 + $0x218] sm:$0xf]
        %v707 = vld [vmem:[%s2 + $0x21c] sm:$0xf]
        %v708 = vld [vmem:[%s2 + $0x220] sm:$0xf]
        %v709 = vld [vmem:[%s2 + $0x224] sm:$0xf]
        %v710 = vld [vmem:[%s2 + $0x228] sm:$0xf]
        %v711 = vld [vmem:[%s2 + $0x22c] sm:$0xf]
        %v712 = vld [vmem:[%s2 + $0x230] sm:$0xf]
        %v713 = vld [vmem:[%s2 + $0x234] sm:$0xf]
        %v714 = vld [vmem:[%s2 + $0x238] sm:$0xf]
        %v715 = vld [vmem:[%s2 + $0x23c] sm:$0xf]
        %v716 = vld [vmem:[%s2 + $0x240] sm:$0xf]
        %v717 = vld [vmem:[%s2 + $0x244] sm:$0xf]
        %v718 = vld [vmem:[%s2 + $0x248] sm:$0xf]
        %v719 = vld [vmem:[%s2 + $0x24c] sm:$0xf]
        %v720 = vld [vmem:[%s2 + $0x250] sm:$0xf]
        %v721 = vld [vmem:[%s2 + $0x254] sm:$0xf]
        %v722 = vld [vmem:[%s2 + $0x258] sm:$0xf]
        %v723 = vld [vmem:[%s2 + $0x25c] sm:$0xf]
        %v724 = vld [vmem:[%s2 + $0x260] sm:$0xf]
        %v725 = vld [vmem:[%s2 + $0x264] sm:$0xf]
        %v726 = vld [vmem:[%s2 + $0x268] sm:$0xf]
        %v727 = vld [vmem:[%s2 + $0x26c] sm:$0xf]
        %v728 = vld [vmem:[%s2 + $0x270] sm:$0xf]
        %v729 = vld [vmem:[%s2 + $0x274] sm:$0xf]
        %v730 = vld [vmem:[%s2 + $0x278] sm:$0xf]
        %v731 = vld [vmem:[%s2 + $0x27c] sm:$0xf]
        %v732 = vld [vmem:[%s3] sm:$0x7]
        %v733 = vperm.slane %v732, 0
        %v739 = vunpack.c.l.b16 %v562
        %v740 = vunpack.c.h.b16 %v562
        %v741 = vunpack.c.l.b16 %v563
        %v742 = vunpack.c.h.b16 %v563
        %v743 = vunpack.c.l.b16 %v564
        %v744 = vunpack.c.h.b16 %v564
        %v745 = vunpack.c.l.b16 %v565
        %v746 = vunpack.c.h.b16 %v565
        %v747 = vunpack.c.l.b16 %v566
        %v748 = vunpack.c.h.b16 %v566
        %v749 = vpack.c.b16 %v739, %v739
        %v750 = vpack.c.b16 %v740, %v740
        %v751 = vpack.c.b16 %v741, %v741
        %v752 = vpack.c.b16 %v742, %v742
        %v753 = vpack.c.b16 %v743, %v743
        %v754 = vpack.c.b16 %v744, %v744
        %v755 = vpack.c.b16 %v745, %v745
        %v756 = vpack.c.b16 %v746, %v746
        %v757 = vpack.c.b16 %v747, %v747
        %v758 = vpack.c.b16 %v748, %v748
        %v929 = vunpack.c.l.b16 %v572
        %v930 = vunpack.c.l.b16 %v573
        %v931 = vunpack.c.l.b16 %v574
        %v932 = vunpack.c.l.b16 %v575
        %v933 = vunpack.c.l.b16 %v576
        %v934 = vunpack.c.l.b16 %v577
        %v935 = vunpack.c.l.b16 %v578
        %v936 = vunpack.c.l.b16 %v579
        %v937 = vunpack.c.l.b16 %v580
        %v938 = vunpack.c.l.b16 %v581
        %v939 = vunpack.c.l.b16 %v582
        %v940 = vunpack.c.l.b16 %v583
        %v941 = vunpack.c.l.b16 %v584
        %v942 = vunpack.c.l.b16 %v585
        %v943 = vunpack.c.l.b16 %v586
        %v944 = vunpack.c.l.b16 %v587
        %v945 = vunpack.c.l.b16 %v588
        %v946 = vunpack.c.l.b16 %v589
        %v947 = vunpack.c.l.b16 %v590
        %v948 = vunpack.c.l.b16 %v591
        %v949 = vunpack.c.l.b16 %v592
        %v950 = vunpack.c.l.b16 %v593
        %v951 = vunpack.c.l.b16 %v594
        %v952 = vunpack.c.l.b16 %v595
        %v953 = vunpack.c.l.b16 %v596
        %v954 = vunpack.c.l.b16 %v597
        %v955 = vunpack.c.l.b16 %v598
        %v956 = vunpack.c.l.b16 %v599
        %v957 = vunpack.c.l.b16 %v600
        %v958 = vunpack.c.l.b16 %v601
        %v959 = vunpack.c.l.b16 %v602
        %v960 = vunpack.c.l.b16 %v603
        %v961 = vunpack.c.l.b16 %v604
        %v962 = vunpack.c.l.b16 %v605
        %v963 = vunpack.c.l.b16 %v606
        %v964 = vunpack.c.l.b16 %v607
        %v965 = vunpack.c.l.b16 %v608
        %v966 = vunpack.c.l.b16 %v609
        %v967 = vunpack.c.l.b16 %v610
        %v968 = vunpack.c.l.b16 %v611
        %v969 = vunpack.c.l.b16 %v612
        %v970 = vunpack.c.l.b16 %v613
        %v971 = vunpack.c.l.b16 %v614
        %v972 = vunpack.c.l.b16 %v615
        %v973 = vunpack.c.l.b16 %v616
        %v974 = vunpack.c.l.b16 %v617
        %v975 = vunpack.c.l.b16 %v618
        %v976 = vunpack.c.l.b16 %v619
        %v977 = vunpack.c.l.b16 %v620
        %v978 = vunpack.c.l.b16 %v621
        %v979 = vunpack.c.l.b16 %v622
        %v980 = vunpack.c.l.b16 %v623
        %v981 = vunpack.c.l.b16 %v624
        %v982 = vunpack.c.l.b16 %v625
        %v983 = vunpack.c.l.b16 %v626
        %v984 = vunpack.c.l.b16 %v627
        %v985 = vunpack.c.l.b16 %v628
        %v986 = vunpack.c.l.b16 %v629
        %v987 = vunpack.c.l.b16 %v630
        %v988 = vunpack.c.l.b16 %v631
        %v989 = vunpack.c.l.b16 %v632
        %v990 = vunpack.c.l.b16 %v633
        %v991 = vunpack.c.l.b16 %v634
        %v992 = vunpack.c.l.b16 %v635
        %v993 = vunpack.c.l.b16 %v636
        %v994 = vunpack.c.l.b16 %v637
        %v995 = vunpack.c.l.b16 %v638
        %v996 = vunpack.c.l.b16 %v639
        %v997 = vunpack.c.l.b16 %v640
        %v998 = vunpack.c.l.b16 %v641
        %v999 = vunpack.c.l.b16 %v642
        %v1000 = vunpack.c.l.b16 %v643
        %v1001 = vunpack.c.l.b16 %v644
        %v1002 = vunpack.c.l.b16 %v645
        %v1003 = vunpack.c.l.b16 %v646
        %v1004 = vunpack.c.l.b16 %v647
        %v1005 = vunpack.c.l.b16 %v648
        %v1006 = vunpack.c.l.b16 %v649
        %v1007 = vunpack.c.l.b16 %v650
        %v1008 = vunpack.c.l.b16 %v651
        %v1009 = vunpack.c.l.b16 %v652
        %v1010 = vunpack.c.l.b16 %v653
        %v1011 = vunpack.c.l.b16 %v654
        %v1012 = vunpack.c.l.b16 %v655
        %v1013 = vunpack.c.l.b16 %v656
        %v1014 = vunpack.c.l.b16 %v657
        %v1015 = vunpack.c.l.b16 %v658
        %v1016 = vunpack.c.l.b16 %v659
        %v1017 = vunpack.c.l.b16 %v660
        %v1018 = vunpack.c.l.b16 %v661
        %v1019 = vunpack.c.l.b16 %v662
        %v1020 = vunpack.c.l.b16 %v663
        %v1021 = vunpack.c.l.b16 %v664
        %v1022 = vunpack.c.l.b16 %v665
        %v1023 = vunpack.c.l.b16 %v666
        %v1024 = vunpack.c.l.b16 %v667
        %v1025 = vunpack.c.l.b16 %v668
        %v1026 = vunpack.c.l.b16 %v669
        %v1027 = vunpack.c.l.b16 %v670
        %v1028 = vunpack.c.l.b16 %v671
        %v1029 = vunpack.c.l.b16 %v672
        %v1030 = vunpack.c.l.b16 %v673
        %v1031 = vunpack.c.l.b16 %v674
        %v1032 = vunpack.c.l.b16 %v675
        %v1033 = vunpack.c.l.b16 %v676
        %v1034 = vunpack.c.l.b16 %v677
        %v1035 = vunpack.c.l.b16 %v678
        %v1036 = vunpack.c.l.b16 %v679
        %v1037 = vunpack.c.l.b16 %v680
        %v1038 = vunpack.c.l.b16 %v681
        %v1039 = vunpack.c.l.b16 %v682
        %v1040 = vunpack.c.l.b16 %v683
        %v1041 = vunpack.c.l.b16 %v684
        %v1042 = vunpack.c.l.b16 %v685
        %v1043 = vunpack.c.l.b16 %v686
        %v1044 = vunpack.c.l.b16 %v687
        %v1045 = vunpack.c.l.b16 %v688
        %v1046 = vunpack.c.l.b16 %v689
        %v1047 = vunpack.c.l.b16 %v690
        %v1048 = vunpack.c.l.b16 %v691
        %v1049 = vunpack.c.l.b16 %v692
        %v1050 = vunpack.c.l.b16 %v693
        %v1051 = vunpack.c.l.b16 %v694
        %v1052 = vunpack.c.l.b16 %v695
        %v1053 = vunpack.c.l.b16 %v696
        %v1054 = vunpack.c.l.b16 %v697
        %v1055 = vunpack.c.l.b16 %v698
        %v1056 = vunpack.c.l.b16 %v699
        %v1057 = vunpack.c.l.b16 %v700
        %v1058 = vunpack.c.l.b16 %v701
        %v1059 = vunpack.c.l.b16 %v702
        %v1060 = vunpack.c.l.b16 %v703
        %v1061 = vunpack.c.l.b16 %v704
        %v1062 = vunpack.c.l.b16 %v705
        %v1063 = vunpack.c.l.b16 %v706
        %v1064 = vunpack.c.l.b16 %v707
        %v1065 = vunpack.c.l.b16 %v708
        %v1066 = vunpack.c.l.b16 %v709
        %v1067 = vunpack.c.l.b16 %v710
        %v1068 = vunpack.c.l.b16 %v711
        %v1069 = vunpack.c.l.b16 %v712
        %v1070 = vunpack.c.l.b16 %v713
        %v1071 = vunpack.c.l.b16 %v714
        %v1072 = vunpack.c.l.b16 %v715
        %v1073 = vunpack.c.l.b16 %v716
        %v1074 = vunpack.c.l.b16 %v717
        %v1075 = vunpack.c.l.b16 %v718
        %v1076 = vunpack.c.l.b16 %v719
        %v1077 = vunpack.c.l.b16 %v720
        %v1078 = vunpack.c.l.b16 %v721
        %v1079 = vunpack.c.l.b16 %v722
        %v1080 = vunpack.c.l.b16 %v723
        %v1081 = vunpack.c.l.b16 %v724
        %v1082 = vunpack.c.l.b16 %v725
        %v1083 = vunpack.c.l.b16 %v726
        %v1084 = vunpack.c.l.b16 %v727
        %v1085 = vunpack.c.l.b16 %v728
        %v1086 = vunpack.c.l.b16 %v729
        %v1087 = vunpack.c.l.b16 %v730
        %v1088 = vunpack.c.l.b16 %v731
        %v1089 = vpack.c.b16 %v930, %v929
        %v1090 = vpack.c.b16 %v932, %v931
        %v1091 = vpack.c.b16 %v934, %v933
        %v1092 = vpack.c.b16 %v936, %v935
        %v1093 = vpack.c.b16 %v938, %v937
        %v1094 = vpack.c.b16 %v940, %v939
        %v1095 = vpack.c.b16 %v942, %v941
        %v1096 = vpack.c.b16 %v944, %v943
        %v1097 = vpack.c.b16 %v946, %v945
        %v1098 = vpack.c.b16 %v948, %v947
        %v1099 = vpack.c.b16 %v950, %v949
        %v1100 = vpack.c.b16 %v952, %v951
        %v1101 = vpack.c.b16 %v954, %v953
        %v1102 = vpack.c.b16 %v956, %v955
        %v1103 = vpack.c.b16 %v958, %v957
        %v1104 = vpack.c.b16 %v960, %v959
        %v1105 = vpack.c.b16 %v962, %v961
        %v1106 = vpack.c.b16 %v964, %v963
        %v1107 = vpack.c.b16 %v966, %v965
        %v1108 = vpack.c.b16 %v968, %v967
        %v1109 = vpack.c.b16 %v970, %v969
        %v1110 = vpack.c.b16 %v972, %v971
        %v1111 = vpack.c.b16 %v974, %v973
        %v1112 = vpack.c.b16 %v976, %v975
        %v1113 = vpack.c.b16 %v978, %v977
        %v1114 = vpack.c.b16 %v980, %v979
        %v1115 = vpack.c.b16 %v982, %v981
        %v1116 = vpack.c.b16 %v984, %v983
        %v1117 = vpack.c.b16 %v986, %v985
        %v1118 = vpack.c.b16 %v988, %v987
        %v1119 = vpack.c.b16 %v990, %v989
        %v1120 = vpack.c.b16 %v992, %v991
        %v1121 = vpack.c.b16 %v994, %v993
        %v1122 = vpack.c.b16 %v996, %v995
        %v1123 = vpack.c.b16 %v998, %v997
        %v1124 = vpack.c.b16 %v1000, %v999
        %v1125 = vpack.c.b16 %v1002, %v1001
        %v1126 = vpack.c.b16 %v1004, %v1003
        %v1127 = vpack.c.b16 %v1006, %v1005
        %v1128 = vpack.c.b16 %v1008, %v1007
        %v1129 = vpack.c.b16 %v1010, %v1009
        %v1130 = vpack.c.b16 %v1012, %v1011
        %v1131 = vpack.c.b16 %v1014, %v1013
        %v1132 = vpack.c.b16 %v1016, %v1015
        %v1133 = vpack.c.b16 %v1018, %v1017
        %v1134 = vpack.c.b16 %v1020, %v1019
        %v1135 = vpack.c.b16 %v1022, %v1021
        %v1136 = vpack.c.b16 %v1024, %v1023
        %v1137 = vpack.c.b16 %v1026, %v1025
        %v1138 = vpack.c.b16 %v1028, %v1027
        %v1139 = vpack.c.b16 %v1030, %v1029
        %v1140 = vpack.c.b16 %v1032, %v1031
        %v1141 = vpack.c.b16 %v1034, %v1033
        %v1142 = vpack.c.b16 %v1036, %v1035
        %v1143 = vpack.c.b16 %v1038, %v1037
        %v1144 = vpack.c.b16 %v1040, %v1039
        %v1145 = vpack.c.b16 %v1042, %v1041
        %v1146 = vpack.c.b16 %v1044, %v1043
        %v1147 = vpack.c.b16 %v1046, %v1045
        %v1148 = vpack.c.b16 %v1048, %v1047
        %v1149 = vpack.c.b16 %v1050, %v1049
        %v1150 = vpack.c.b16 %v1052, %v1051
        %v1151 = vpack.c.b16 %v1054, %v1053
        %v1152 = vpack.c.b16 %v1056, %v1055
        %v1153 = vpack.c.b16 %v1058, %v1057
        %v1154 = vpack.c.b16 %v1060, %v1059
        %v1155 = vpack.c.b16 %v1062, %v1061
        %v1156 = vpack.c.b16 %v1064, %v1063
        %v1157 = vpack.c.b16 %v1066, %v1065
        %v1158 = vpack.c.b16 %v1068, %v1067
        %v1159 = vpack.c.b16 %v1070, %v1069
        %v1160 = vpack.c.b16 %v1072, %v1071
        %v1161 = vpack.c.b16 %v1074, %v1073
        %v1162 = vpack.c.b16 %v1076, %v1075
        %v1163 = vpack.c.b16 %v1078, %v1077
        %v1164 = vpack.c.b16 %v1080, %v1079
        %v1165 = vpack.c.b16 %v1082, %v1081
        %v1166 = vpack.c.b16 %v1084, %v1083
        %v1167 = vpack.c.b16 %v1086, %v1085
        %v1168 = vpack.c.b16 %v1088, %v1087
        %1249 = vmatpush.bf16.msra.mxu0 %v1096
        %1250 = vmatpush.bf16.msra.mxu0 %v1095
        %1251 = vmatpush.bf16.msra.mxu0 %v1094
        %1252 = vmatpush.bf16.msra.mxu0 %v1093
        %1253 = vmatpush.bf16.msra.mxu0 %v1092
        %1254 = vmatpush.bf16.msra.mxu0 %v1091
        %1255 = vmatpush.bf16.msra.mxu0 %v1090
        %1256 = vmatpush.bf16.msra.mxu0 %v1089
        %1257 = vmatmul.bf16.gmra.mxu0 %v749
        %v1258 = vpop.f32.mrf.mxu0
        %v1259 = vadd.f32 %v733, %v1258
        %v1260 = vpop.f32.mrf.mxu0
        %1261 = vdwg.mxu0
        %1262 = vmatpush.bf16.msra.mxu0 %v1104
        %1263 = vmatpush.bf16.msra.mxu0 %v1103
        %1264 = vmatpush.bf16.msra.mxu0 %v1102
        %1265 = vmatpush.bf16.msra.mxu0 %v1101
        %1266 = vmatpush.bf16.msra.mxu0 %v1100
        %1267 = vmatpush.bf16.msra.mxu0 %v1099
        %1268 = vmatpush.bf16.msra.mxu0 %v1098
        %1269 = vmatpush.bf16.msra.mxu0 %v1097
        %1270 = vmatmul.bf16.gmra.mxu0 %v750
        %v1271 = vpop.f32.mrf.mxu0
        %v1272 = vadd.f32 %v1259, %v1271
        %v1273 = vpop.f32.mrf.mxu0
        %1274 = vdwg.mxu0
        %1275 = vmatpush.bf16.msra.mxu0 %v1112
        %1276 = vmatpush.bf16.msra.mxu0 %v1111
        %1277 = vmatpush.bf16.msra.mxu0 %v1110
        %1278 = vmatpush.bf16.msra.mxu0 %v1109
        %1279 = vmatpush.bf16.msra.mxu0 %v1108
        %1280 = vmatpush.bf16.msra.mxu0 %v1107
        %1281 = vmatpush.bf16.msra.mxu0 %v1106
        %1282 = vmatpush.bf16.msra.mxu0 %v1105
        %1283 = vmatmul.bf16.gmra.mxu0 %v751
        %v1284 = vpop.f32.mrf.mxu0
        %v1285 = vadd.f32 %v1272, %v1284
        %v1286 = vpop.f32.mrf.mxu0
        %1287 = vdwg.mxu0
        %1288 = vmatpush.bf16.msra.mxu0 %v1120
        %1289 = vmatpush.bf16.msra.mxu0 %v1119
        %1290 = vmatpush.bf16.msra.mxu0 %v1118
        %1291 = vmatpush.bf16.msra.mxu0 %v1117
        %1292 = vmatpush.bf16.msra.mxu0 %v1116
        %1293 = vmatpush.bf16.msra.mxu0 %v1115
        %1294 = vmatpush.bf16.msra.mxu0 %v1114
        %1295 = vmatpush.bf16.msra.mxu0 %v1113
        %1296 = vmatmul.bf16.gmra.mxu0 %v752
        %v1297 = vpop.f32.mrf.mxu0
        %v1298 = vadd.f32 %v1285, %v1297
        %v1299 = vpop.f32.mrf.mxu0
        %1300 = vdwg.mxu0
        %1301 = vmatpush.bf16.msra.mxu0 %v1128
        %1302 = vmatpush.bf16.msra.mxu0 %v1127
        %1303 = vmatpush.bf16.msra.mxu0 %v1126
        %1304 = vmatpush.bf16.msra.mxu0 %v1125
        %1305 = vmatpush.bf16.msra.mxu0 %v1124
        %1306 = vmatpush.bf16.msra.mxu0 %v1123
        %1307 = vmatpush.bf16.msra.mxu0 %v1122
        %1308 = vmatpush.bf16.msra.mxu0 %v1121
        %1309 = vmatmul.bf16.gmra.mxu0 %v753
        %v1310 = vpop.f32.mrf.mxu0
        %v1311 = vadd.f32 %v1298, %v1310
        %v1312 = vpop.f32.mrf.mxu0
        %1313 = vdwg.mxu0
        %1314 = vmatpush.bf16.msra.mxu0 %v1136
        %1315 = vmatpush.bf16.msra.mxu0 %v1135
        %1316 = vmatpush.bf16.msra.mxu0 %v1134
        %1317 = vmatpush.bf16.msra.mxu0 %v1133
        %1318 = vmatpush.bf16.msra.mxu0 %v1132
        %1319 = vmatpush.bf16.msra.mxu0 %v1131
        %1320 = vmatpush.bf16.msra.mxu0 %v1130
        %1321 = vmatpush.bf16.msra.mxu0 %v1129
        %1322 = vmatmul.bf16.gmra.mxu0 %v754
        %v1323 = vpop.f32.mrf.mxu0
        %v1324 = vadd.f32 %v1311, %v1323
        %v1325 = vpop.f32.mrf.mxu0
        %1326 = vdwg.mxu0
        %1327 = vmatpush.bf16.msra.mxu0 %v1144
        %1328 = vmatpush.bf16.msra.mxu0 %v1143
        %1329 = vmatpush.bf16.msra.mxu0 %v1142
        %1330 = vmatpush.bf16.msra.mxu0 %v1141
        %1331 = vmatpush.bf16.msra.mxu0 %v1140
        %1332 = vmatpush.bf16.msra.mxu0 %v1139
        %1333 = vmatpush.bf16.msra.mxu0 %v1138
        %1334 = vmatpush.bf16.msra.mxu0 %v1137
        %1335 = vmatmul.bf16.gmra.mxu0 %v755
        %v1336 = vpop.f32.mrf.mxu0
        %v1337 = vadd.f32 %v1324, %v1336
        %v1338 = vpop.f32.mrf.mxu0
        %1339 = vdwg.mxu0
        %1340 = vmatpush.bf16.msra.mxu0 %v1152
        %1341 = vmatpush.bf16.msra.mxu0 %v1151
        %1342 = vmatpush.bf16.msra.mxu0 %v1150
        %1343 = vmatpush.bf16.msra.mxu0 %v1149
        %1344 = vmatpush.bf16.msra.mxu0 %v1148
        %1345 = vmatpush.bf16.msra.mxu0 %v1147
        %1346 = vmatpush.bf16.msra.mxu0 %v1146
        %1347 = vmatpush.bf16.msra.mxu0 %v1145
        %1348 = vmatmul.bf16.gmra.mxu0 %v756
        %v1349 = vpop.f32.mrf.mxu0
        %v1350 = vadd.f32 %v1337, %v1349
        %v1351 = vpop.f32.mrf.mxu0
        %1352 = vdwg.mxu0
        %1353 = vmatpush.bf16.msra.mxu0 %v1160
        %1354 = vmatpush.bf16.msra.mxu0 %v1159
        %1355 = vmatpush.bf16.msra.mxu0 %v1158
        %1356 = vmatpush.bf16.msra.mxu0 %v1157
        %1357 = vmatpush.bf16.msra.mxu0 %v1156
        %1358 = vmatpush.bf16.msra.mxu0 %v1155
        %1359 = vmatpush.bf16.msra.mxu0 %v1154
        %1360 = vmatpush.bf16.msra.mxu0 %v1153
        %1361 = vmatmul.bf16.gmra.mxu0 %v757
        %v1362 = vpop.f32.mrf.mxu0
        %v1363 = vadd.f32 %v1350, %v1362
        %v1364 = vpop.f32.mrf.mxu0
        %1365 = vdwg.mxu0
        %1366 = vmatpush.bf16.msra.mxu0 %v1168
        %1367 = vmatpush.bf16.msra.mxu0 %v1167
        %1368 = vmatpush.bf16.msra.mxu0 %v1166
        %1369 = vmatpush.bf16.msra.mxu0 %v1165
        %1370 = vmatpush.bf16.msra.mxu0 %v1164
        %1371 = vmatpush.bf16.msra.mxu0 %v1163
        %1372 = vmatpush.bf16.msra.mxu0 %v1162
        %1373 = vmatpush.bf16.msra.mxu0 %v1161
        %1374 = vmatmul.bf16.gmra.mxu0 %v758
        %v1375 = vpop.f32.mrf.mxu0
        %v1376 = vadd.f32 %v1363, %v1375
        %v1377 = vpop.f32.mrf.mxu0
        %1378 = vdwg.mxu0
        %v1379 = vmax.f32 %v1376, 0.0
        %vm1380 = vcmask 523264
        %v1381 = vsel %vm1380, %v1379, 0.0
        %1382 = vadd.xlane.f32.xlu0 %v1381
        %v1383 = vpop.xlane.xlu0 %1382
        %v1384 = vrcp.pop 64.0
        %v1385 = vmul.f32 64.0, %v1384
        %v1386 = vsub.f32 1.0, %v1385
        %v1387 = vmul.f32 %v1384, %v1386
        %v1388 = vadd.f32 %v1384, %v1387
        %vm1389 = vweird.f32 %v1384
        %v1390 = vsel %vm1389, %v1384, %v1388
        %v1391 = vmul.f32 %v1383, %v1390
        %v1392 = vsub.f32 %v1379, %v1391
        %v1393 = vmul.f32 %v1392, %v1392
        %v1394 = vsel %vm1380, %v1393, 0.0
        %1395 = vadd.xlane.f32.xlu0 %v1394
        %v1396 = vpop.xlane.xlu0 %1395
        %v1397 = vmul.f32 %v1396, %v1390
        %v1398 = vadd.f32 %v1397, 1e-05
        %v1399 = vrsqrt.pop %v1398
        %v1400 = vmul.f32 %v1399, %v1398
        %v1401 = vmul.f32 %v1400, %v1399
        %v1402 = vmul.f32 0.5, %v1401
        %v1403 = vsub.f32 1.5, %v1402
        %v1404 = vmul.f32 %v1399, %v1403
        %vm1405 = vweird.f32 %v1398
        %vm1406 = vweird.f32 %v1399
        %vm1407 = vmor %vm1405, %vm1406
        %v1408 = vsel %vm1407, %v1399, %v1404
        %v1409 = vmul.f32 %v1392, %v1408
        %v1410 = vperm.slane %v732, 1
        %v1411 = vmul.f32 %v1409, %v1410
        %v1412 = vperm.slane %v732, 2
        %v1413 = vadd.f32 %v1411, %v1412
        %v1414 = vld [vmem:[%s4] sm:$0xf]
        %v1415 = vld [vmem:[%s4 + $0x4] sm:$0xf]
        %v1416 = vld [vmem:[%s4 + $0x8] sm:$0xf]
        %v1417 = vld [vmem:[%s4 + $0xc] sm:$0xf]
        %v1418 = vld [vmem:[%s4 + $0x10] sm:$0xf]
        %v1419 = vld [vmem:[%s4 + $0x14] sm:$0xf]
        %v1420 = vld [vmem:[%s4 + $0x18] sm:$0xf]
        %v1421 = vld [vmem:[%s4 + $0x1c] sm:$0xf]
        %v1422 = vld [vmem:[%s4 + $0x20] sm:$0xf]
        %v1423 = vld [vmem:[%s4 + $0x24] sm:$0xf]
        %v1424 = vld [vmem:[%s4 + $0x28] sm:$0xf]
        %v1425 = vld [vmem:[%s4 + $0x2c] sm:$0xf]
        %v1426 = vld [vmem:[%s4 + $0x30] sm:$0xf]
        %v1427 = vld [vmem:[%s4 + $0x34] sm:$0xf]
        %v1428 = vld [vmem:[%s4 + $0x38] sm:$0xf]
        %v1429 = vld [vmem:[%s4 + $0x3c] sm:$0xf]
        %v1430 = vld [vmem:[%s4 + $0x40] sm:$0xf]
        %v1431 = vld [vmem:[%s4 + $0x44] sm:$0xf]
        %v1432 = vld [vmem:[%s4 + $0x48] sm:$0xf]
        %v1433 = vld [vmem:[%s4 + $0x4c] sm:$0xf]
        %v1434 = vld [vmem:[%s4 + $0x50] sm:$0xf]
        %v1435 = vld [vmem:[%s4 + $0x54] sm:$0xf]
        %v1436 = vld [vmem:[%s4 + $0x58] sm:$0xf]
        %v1437 = vld [vmem:[%s4 + $0x5c] sm:$0xf]
        %v1438 = vld [vmem:[%s4 + $0x60] sm:$0xf]
        %v1439 = vld [vmem:[%s4 + $0x64] sm:$0xf]
        %v1440 = vld [vmem:[%s4 + $0x68] sm:$0xf]
        %v1441 = vld [vmem:[%s4 + $0x6c] sm:$0xf]
        %v1442 = vld [vmem:[%s4 + $0x70] sm:$0xf]
        %v1443 = vld [vmem:[%s4 + $0x74] sm:$0xf]
        %v1444 = vld [vmem:[%s4 + $0x78] sm:$0xf]
        %v1445 = vld [vmem:[%s4 + $0x7c] sm:$0xf]
        %v1446 = vld [vmem:[%s4 + $0x80] sm:$0xf]
        %v1447 = vld [vmem:[%s4 + $0x84] sm:$0xf]
        %v1448 = vld [vmem:[%s4 + $0x88] sm:$0xf]
        %v1449 = vld [vmem:[%s4 + $0x8c] sm:$0xf]
        %v1450 = vld [vmem:[%s4 + $0x90] sm:$0xf]
        %v1451 = vld [vmem:[%s4 + $0x94] sm:$0xf]
        %v1452 = vld [vmem:[%s4 + $0x98] sm:$0xf]
        %v1453 = vld [vmem:[%s4 + $0x9c] sm:$0xf]
        %v1454 = vld [vmem:[%s4 + $0xa0] sm:$0xf]
        %v1455 = vld [vmem:[%s4 + $0xa4] sm:$0xf]
        %v1456 = vld [vmem:[%s4 + $0xa8] sm:$0xf]
        %v1457 = vld [vmem:[%s4 + $0xac] sm:$0xf]
        %v1458 = vld [vmem:[%s4 + $0xb0] sm:$0xf]
        %v1459 = vld [vmem:[%s4 + $0xb4] sm:$0xf]
        %v1460 = vld [vmem:[%s4 + $0xb8] sm:$0xf]
        %v1461 = vld [vmem:[%s4 + $0xbc] sm:$0xf]
        %v1462 = vld [vmem:[%s4 + $0xc0] sm:$0xf]
        %v1463 = vld [vmem:[%s4 + $0xc4] sm:$0xf]
        %v1464 = vld [vmem:[%s4 + $0xc8] sm:$0xf]
        %v1465 = vld [vmem:[%s4 + $0xcc] sm:$0xf]
        %v1466 = vld [vmem:[%s4 + $0xd0] sm:$0xf]
        %v1467 = vld [vmem:[%s4 + $0xd4] sm:$0xf]
        %v1468 = vld [vmem:[%s4 + $0xd8] sm:$0xf]
        %v1469 = vld [vmem:[%s4 + $0xdc] sm:$0xf]
        %v1470 = vld [vmem:[%s4 + $0xe0] sm:$0xf]
        %v1471 = vld [vmem:[%s4 + $0xe4] sm:$0xf]
        %v1472 = vld [vmem:[%s4 + $0xe8] sm:$0xf]
        %v1473 = vld [vmem:[%s4 + $0xec] sm:$0xf]
        %v1474 = vld [vmem:[%s4 + $0xf0] sm:$0xf]
        %v1475 = vld [vmem:[%s4 + $0xf4] sm:$0xf]
        %v1476 = vld [vmem:[%s4 + $0xf8] sm:$0xf]
        %v1477 = vld [vmem:[%s4 + $0xfc] sm:$0xf]
        %v1478 = vld [vmem:[%s4 + $0x100] sm:$0xf]
        %v1479 = vld [vmem:[%s4 + $0x104] sm:$0xf]
        %v1480 = vld [vmem:[%s4 + $0x108] sm:$0xf]
        %v1481 = vld [vmem:[%s4 + $0x10c] sm:$0xf]
        %v1482 = vld [vmem:[%s4 + $0x110] sm:$0xf]
        %v1483 = vld [vmem:[%s4 + $0x114] sm:$0xf]
        %v1484 = vld [vmem:[%s4 + $0x118] sm:$0xf]
        %v1485 = vld [vmem:[%s4 + $0x11c] sm:$0xf]
        %v1486 = vld [vmem:[%s4 + $0x120] sm:$0xf]
        %v1487 = vld [vmem:[%s4 + $0x124] sm:$0xf]
        %v1488 = vld [vmem:[%s4 + $0x128] sm:$0xf]
        %v1489 = vld [vmem:[%s4 + $0x12c] sm:$0xf]
        %v1490 = vld [vmem:[%s4 + $0x130] sm:$0xf]
        %v1491 = vld [vmem:[%s4 + $0x134] sm:$0xf]
        %v1492 = vld [vmem:[%s4 + $0x138] sm:$0xf]
        %v1493 = vld [vmem:[%s4 + $0x13c] sm:$0xf]
        %v1494 = vld [vmem:[%s4 + $0x140] sm:$0xf]
        %v1495 = vld [vmem:[%s4 + $0x144] sm:$0xf]
        %v1496 = vld [vmem:[%s4 + $0x148] sm:$0xf]
        %v1497 = vld [vmem:[%s4 + $0x14c] sm:$0xf]
        %v1498 = vld [vmem:[%s4 + $0x150] sm:$0xf]
        %v1499 = vld [vmem:[%s4 + $0x154] sm:$0xf]
        %v1500 = vld [vmem:[%s4 + $0x158] sm:$0xf]
        %v1501 = vld [vmem:[%s4 + $0x15c] sm:$0xf]
        %v1502 = vld [vmem:[%s4 + $0x160] sm:$0xf]
        %v1503 = vld [vmem:[%s4 + $0x164] sm:$0xf]
        %v1504 = vld [vmem:[%s4 + $0x168] sm:$0xf]
        %v1505 = vld [vmem:[%s4 + $0x16c] sm:$0xf]
        %v1506 = vld [vmem:[%s4 + $0x170] sm:$0xf]
        %v1507 = vld [vmem:[%s4 + $0x174] sm:$0xf]
        %v1508 = vld [vmem:[%s4 + $0x178] sm:$0xf]
        %v1509 = vld [vmem:[%s4 + $0x17c] sm:$0xf]
        %v1510 = vld [vmem:[%s4 + $0x180] sm:$0xf]
        %v1511 = vld [vmem:[%s4 + $0x184] sm:$0xf]
        %v1512 = vld [vmem:[%s4 + $0x188] sm:$0xf]
        %v1513 = vld [vmem:[%s4 + $0x18c] sm:$0xf]
        %v1514 = vld [vmem:[%s4 + $0x190] sm:$0xf]
        %v1515 = vld [vmem:[%s4 + $0x194] sm:$0xf]
        %v1516 = vld [vmem:[%s4 + $0x198] sm:$0xf]
        %v1517 = vld [vmem:[%s4 + $0x19c] sm:$0xf]
        %v1518 = vld [vmem:[%s4 + $0x1a0] sm:$0xf]
        %v1519 = vld [vmem:[%s4 + $0x1a4] sm:$0xf]
        %v1520 = vld [vmem:[%s4 + $0x1a8] sm:$0xf]
        %v1521 = vld [vmem:[%s4 + $0x1ac] sm:$0xf]
        %v1522 = vld [vmem:[%s4 + $0x1b0] sm:$0xf]
        %v1523 = vld [vmem:[%s4 + $0x1b4] sm:$0xf]
        %v1524 = vld [vmem:[%s4 + $0x1b8] sm:$0xf]
        %v1525 = vld [vmem:[%s4 + $0x1bc] sm:$0xf]
        %v1526 = vld [vmem:[%s4 + $0x1c0] sm:$0xf]
        %v1527 = vld [vmem:[%s4 + $0x1c4] sm:$0xf]
        %v1528 = vld [vmem:[%s4 + $0x1c8] sm:$0xf]
        %v1529 = vld [vmem:[%s4 + $0x1cc] sm:$0xf]
        %v1530 = vld [vmem:[%s4 + $0x1d0] sm:$0xf]
        %v1531 = vld [vmem:[%s4 + $0x1d4] sm:$0xf]
        %v1532 = vld [vmem:[%s4 + $0x1d8] sm:$0xf]
        %v1533 = vld [vmem:[%s4 + $0x1dc] sm:$0xf]
        %v1534 = vld [vmem:[%s4 + $0x1e0] sm:$0xf]
        %v1535 = vld [vmem:[%s4 + $0x1e4] sm:$0xf]
        %v1536 = vld [vmem:[%s4 + $0x1e8] sm:$0xf]
        %v1537 = vld [vmem:[%s4 + $0x1ec] sm:$0xf]
        %v1538 = vld [vmem:[%s4 + $0x1f0] sm:$0xf]
        %v1539 = vld [vmem:[%s4 + $0x1f4] sm:$0xf]
        %v1540 = vld [vmem:[%s4 + $0x1f8] sm:$0xf]
        %v1541 = vld [vmem:[%s4 + $0x1fc] sm:$0xf]
        %v1542 = vld [vmem:[%s4 + $0x200] sm:$0xf]
        %v1543 = vld [vmem:[%s4 + $0x204] sm:$0xf]
        %v1544 = vld [vmem:[%s4 + $0x208] sm:$0xf]
        %v1545 = vld [vmem:[%s4 + $0x20c] sm:$0xf]
        %v1546 = vld [vmem:[%s4 + $0x210] sm:$0xf]
        %v1547 = vld [vmem:[%s4 + $0x214] sm:$0xf]
        %v1548 = vld [vmem:[%s4 + $0x218] sm:$0xf]
        %v1549 = vld [vmem:[%s4 + $0x21c] sm:$0xf]
        %v1550 = vld [vmem:[%s4 + $0x220] sm:$0xf]
        %v1551 = vld [vmem:[%s4 + $0x224] sm:$0xf]
        %v1552 = vld [vmem:[%s4 + $0x228] sm:$0xf]
        %v1553 = vld [vmem:[%s4 + $0x22c] sm:$0xf]
        %v1554 = vld [vmem:[%s4 + $0x230] sm:$0xf]
        %v1555 = vld [vmem:[%s4 + $0x234] sm:$0xf]
        %v1556 = vld [vmem:[%s4 + $0x238] sm:$0xf]
        %v1557 = vld [vmem:[%s4 + $0x23c] sm:$0xf]
        %v1558 = vld [vmem:[%s4 + $0x240] sm:$0xf]
        %v1559 = vld [vmem:[%s4 + $0x244] sm:$0xf]
        %v1560 = vld [vmem:[%s4 + $0x248] sm:$0xf]
        %v1561 = vld [vmem:[%s4 + $0x24c] sm:$0xf]
        %v1562 = vld [vmem:[%s4 + $0x250] sm:$0xf]
        %v1563 = vld [vmem:[%s4 + $0x254] sm:$0xf]
        %v1564 = vld [vmem:[%s4 + $0x258] sm:$0xf]
        %v1565 = vld [vmem:[%s4 + $0x25c] sm:$0xf]
        %v1566 = vld [vmem:[%s4 + $0x260] sm:$0xf]
        %v1567 = vld [vmem:[%s4 + $0x264] sm:$0xf]
        %v1568 = vld [vmem:[%s4 + $0x268] sm:$0x3]
        %v1569 = vld [vmem:[%s5] sm:$0x7]
        %v1570 = vperm.slane %v1569, 0
        %v1576 = vunpack.c.l.b16 %v567
        %v1577 = vunpack.c.h.b16 %v567
        %v1578 = vunpack.c.l.b16 %v568
        %v1579 = vunpack.c.h.b16 %v568
        %v1580 = vunpack.c.l.b16 %v569
        %v1581 = vunpack.c.h.b16 %v569
        %v1582 = vunpack.c.l.b16 %v570
        %v1583 = vunpack.c.h.b16 %v570
        %v1584 = vunpack.c.l.b16 %v571
        %v1585 = vunpack.c.h.b16 %v571
        %v1586 = vpack.c.b16 %v1576, %v1576
        %v1587 = vpack.c.b16 %v1577, %v1577
        %v1588 = vpack.c.b16 %v1578, %v1578
        %v1589 = vpack.c.b16 %v1579, %v1579
        %v1590 = vpack.c.b16 %v1580, %v1580
        %v1591 = vpack.c.b16 %v1581, %v1581
        %v1592 = vpack.c.b16 %v1582, %v1582
        %v1593 = vpack.c.b16 %v1583, %v1583
        %v1594 = vpack.c.b16 %v1584, %v1584
        %v1595 = vpack.c.b16 %v1585, %v1585
        %v1760 = vunpack.c.l.b16 %v1414
        %v1761 = vunpack.c.l.b16 %v1415
        %v1762 = vunpack.c.l.b16 %v1416
        %v1763 = vunpack.c.l.b16 %v1417
        %v1764 = vunpack.c.l.b16 %v1418
        %v1765 = vunpack.c.l.b16 %v1419
        %v1766 = vunpack.c.l.b16 %v1420
        %v1767 = vunpack.c.l.b16 %v1421
        %v1768 = vunpack.c.l.b16 %v1422
        %v1769 = vunpack.c.l.b16 %v1423
        %v1770 = vunpack.c.l.b16 %v1424
        %v1771 = vunpack.c.l.b16 %v1425
        %v1772 = vunpack.c.l.b16 %v1426
        %v1773 = vunpack.c.l.b16 %v1427
        %v1774 = vunpack.c.l.b16 %v1428
        %v1775 = vunpack.c.l.b16 %v1429
        %v1776 = vunpack.c.l.b16 %v1430
        %v1777 = vunpack.c.l.b16 %v1431
        %v1778 = vunpack.c.l.b16 %v1432
        %v1779 = vunpack.c.l.b16 %v1433
        %v1780 = vunpack.c.l.b16 %v1434
        %v1781 = vunpack.c.l.b16 %v1435
        %v1782 = vunpack.c.l.b16 %v1436
        %v1783 = vunpack.c.l.b16 %v1437
        %v1784 = vunpack.c.l.b16 %v1438
        %v1785 = vunpack.c.l.b16 %v1439
        %v1786 = vunpack.c.l.b16 %v1440
        %v1787 = vunpack.c.l.b16 %v1441
        %v1788 = vunpack.c.l.b16 %v1442
        %v1789 = vunpack.c.l.b16 %v1443
        %v1790 = vunpack.c.l.b16 %v1444
        %v1791 = vunpack.c.l.b16 %v1445
        %v1792 = vunpack.c.l.b16 %v1446
        %v1793 = vunpack.c.l.b16 %v1447
        %v1794 = vunpack.c.l.b16 %v1448
        %v1795 = vunpack.c.l.b16 %v1449
        %v1796 = vunpack.c.l.b16 %v1450
        %v1797 = vunpack.c.l.b16 %v1451
        %v1798 = vunpack.c.l.b16 %v1452
        %v1799 = vunpack.c.l.b16 %v1453
        %v1800 = vunpack.c.l.b16 %v1454
        %v1801 = vunpack.c.l.b16 %v1455
        %v1802 = vunpack.c.l.b16 %v1456
        %v1803 = vunpack.c.l.b16 %v1457
        %v1804 = vunpack.c.l.b16 %v1458
        %v1805 = vunpack.c.l.b16 %v1459
        %v1806 = vunpack.c.l.b16 %v1460
        %v1807 = vunpack.c.l.b16 %v1461
        %v1808 = vunpack.c.l.b16 %v1462
        %v1809 = vunpack.c.l.b16 %v1463
        %v1810 = vunpack.c.l.b16 %v1464
        %v1811 = vunpack.c.l.b16 %v1465
        %v1812 = vunpack.c.l.b16 %v1466
        %v1813 = vunpack.c.l.b16 %v1467
        %v1814 = vunpack.c.l.b16 %v1468
        %v1815 = vunpack.c.l.b16 %v1469
        %v1816 = vunpack.c.l.b16 %v1470
        %v1817 = vunpack.c.l.b16 %v1471
        %v1818 = vunpack.c.l.b16 %v1472
        %v1819 = vunpack.c.l.b16 %v1473
        %v1820 = vunpack.c.l.b16 %v1474
        %v1821 = vunpack.c.l.b16 %v1475
        %v1822 = vunpack.c.l.b16 %v1476
        %v1823 = vunpack.c.l.b16 %v1477
        %v1824 = vunpack.c.l.b16 %v1478
        %v1825 = vunpack.c.l.b16 %v1479
        %v1826 = vunpack.c.l.b16 %v1480
        %v1827 = vunpack.c.l.b16 %v1481
        %v1828 = vunpack.c.l.b16 %v1482
        %v1829 = vunpack.c.l.b16 %v1483
        %v1830 = vunpack.c.l.b16 %v1484
        %v1831 = vunpack.c.l.b16 %v1485
        %v1832 = vunpack.c.l.b16 %v1486
        %v1833 = vunpack.c.l.b16 %v1487
        %v1834 = vunpack.c.l.b16 %v1488
        %v1835 = vunpack.c.l.b16 %v1489
        %v1836 = vunpack.c.l.b16 %v1490
        %v1837 = vunpack.c.l.b16 %v1491
        %v1838 = vunpack.c.l.b16 %v1492
        %v1839 = vunpack.c.l.b16 %v1493
        %v1840 = vunpack.c.l.b16 %v1494
        %v1841 = vunpack.c.l.b16 %v1495
        %v1842 = vunpack.c.l.b16 %v1496
        %v1843 = vunpack.c.l.b16 %v1497
        %v1844 = vunpack.c.l.b16 %v1498
        %v1845 = vunpack.c.l.b16 %v1499
        %v1846 = vunpack.c.l.b16 %v1500
        %v1847 = vunpack.c.l.b16 %v1501
        %v1848 = vunpack.c.l.b16 %v1502
        %v1849 = vunpack.c.l.b16 %v1503
        %v1850 = vunpack.c.l.b16 %v1504
        %v1851 = vunpack.c.l.b16 %v1505
        %v1852 = vunpack.c.l.b16 %v1506
        %v1853 = vunpack.c.l.b16 %v1507
        %v1854 = vunpack.c.l.b16 %v1508
        %v1855 = vunpack.c.l.b16 %v1509
        %v1856 = vunpack.c.l.b16 %v1510
        %v1857 = vunpack.c.l.b16 %v1511
        %v1858 = vunpack.c.l.b16 %v1512
        %v1859 = vunpack.c.l.b16 %v1513
        %v1860 = vunpack.c.l.b16 %v1514
        %v1861 = vunpack.c.l.b16 %v1515
        %v1862 = vunpack.c.l.b16 %v1516
        %v1863 = vunpack.c.l.b16 %v1517
        %v1864 = vunpack.c.l.b16 %v1518
        %v1865 = vunpack.c.l.b16 %v1519
        %v1866 = vunpack.c.l.b16 %v1520
        %v1867 = vunpack.c.l.b16 %v1521
        %v1868 = vunpack.c.l.b16 %v1522
        %v1869 = vunpack.c.l.b16 %v1523
        %v1870 = vunpack.c.l.b16 %v1524
        %v1871 = vunpack.c.l.b16 %v1525
        %v1872 = vunpack.c.l.b16 %v1526
        %v1873 = vunpack.c.l.b16 %v1527
        %v1874 = vunpack.c.l.b16 %v1528
        %v1875 = vunpack.c.l.b16 %v1529
        %v1876 = vunpack.c.l.b16 %v1530
        %v1877 = vunpack.c.l.b16 %v1531
        %v1878 = vunpack.c.l.b16 %v1532
        %v1879 = vunpack.c.l.b16 %v1533
        %v1880 = vunpack.c.l.b16 %v1534
        %v1881 = vunpack.c.l.b16 %v1535
        %v1882 = vunpack.c.l.b16 %v1536
        %v1883 = vunpack.c.l.b16 %v1537
        %v1884 = vunpack.c.l.b16 %v1538
        %v1885 = vunpack.c.l.b16 %v1539
        %v1886 = vunpack.c.l.b16 %v1540
        %v1887 = vunpack.c.l.b16 %v1541
        %v1888 = vunpack.c.l.b16 %v1542
        %v1889 = vunpack.c.l.b16 %v1543
        %v1890 = vunpack.c.l.b16 %v1544
        %v1891 = vunpack.c.l.b16 %v1545
        %v1892 = vunpack.c.l.b16 %v1546
        %v1893 = vunpack.c.l.b16 %v1547
        %v1894 = vunpack.c.l.b16 %v1548
        %v1895 = vunpack.c.l.b16 %v1549
        %v1896 = vunpack.c.l.b16 %v1550
        %v1897 = vunpack.c.l.b16 %v1551
        %v1898 = vunpack.c.l.b16 %v1552
        %v1899 = vunpack.c.l.b16 %v1553
        %v1900 = vunpack.c.l.b16 %v1554
        %v1901 = vunpack.c.l.b16 %v1555
        %v1902 = vunpack.c.l.b16 %v1556
        %v1903 = vunpack.c.l.b16 %v1557
        %v1904 = vunpack.c.l.b16 %v1558
        %v1905 = vunpack.c.l.b16 %v1559
        %v1906 = vunpack.c.l.b16 %v1560
        %v1907 = vunpack.c.l.b16 %v1561
        %v1908 = vunpack.c.l.b16 %v1562
        %v1909 = vunpack.c.l.b16 %v1563
        %v1910 = vunpack.c.l.b16 %v1564
        %v1911 = vunpack.c.l.b16 %v1565
        %v1912 = vunpack.c.l.b16 %v1566
        %v1913 = vunpack.c.l.b16 %v1567
        %v1914 = vunpack.c.l.b16 %v1568
        %v1915 = vpack.c.b16 %v1761, %v1760
        %v1916 = vpack.c.b16 %v1763, %v1762
        %v1917 = vpack.c.b16 %v1765, %v1764
        %v1918 = vpack.c.b16 %v1767, %v1766
        %v1919 = vpack.c.b16 %v1769, %v1768
        %v1920 = vpack.c.b16 %v1771, %v1770
        %v1921 = vpack.c.b16 %v1773, %v1772
        %v1922 = vpack.c.b16 %v1775, %v1774
        %v1923 = vpack.c.b16 %v1777, %v1776
        %v1924 = vpack.c.b16 %v1779, %v1778
        %v1925 = vpack.c.b16 %v1781, %v1780
        %v1926 = vpack.c.b16 %v1783, %v1782
        %v1927 = vpack.c.b16 %v1785, %v1784
        %v1928 = vpack.c.b16 %v1787, %v1786
        %v1929 = vpack.c.b16 %v1789, %v1788
        %v1930 = vpack.c.b16 %v1791, %v1790
        %v1931 = vpack.c.b16 %v1793, %v1792
        %v1932 = vpack.c.b16 %v1795, %v1794
        %v1933 = vpack.c.b16 %v1797, %v1796
        %v1934 = vpack.c.b16 %v1799, %v1798
        %v1935 = vpack.c.b16 %v1801, %v1800
        %v1936 = vpack.c.b16 %v1803, %v1802
        %v1937 = vpack.c.b16 %v1805, %v1804
        %v1938 = vpack.c.b16 %v1807, %v1806
        %v1939 = vpack.c.b16 %v1809, %v1808
        %v1940 = vpack.c.b16 %v1811, %v1810
        %v1941 = vpack.c.b16 %v1813, %v1812
        %v1942 = vpack.c.b16 %v1815, %v1814
        %v1943 = vpack.c.b16 %v1817, %v1816
        %v1944 = vpack.c.b16 %v1819, %v1818
        %v1945 = vpack.c.b16 %v1821, %v1820
        %v1946 = vpack.c.b16 %v1823, %v1822
        %v1947 = vpack.c.b16 %v1825, %v1824
        %v1948 = vpack.c.b16 %v1827, %v1826
        %v1949 = vpack.c.b16 %v1829, %v1828
        %v1950 = vpack.c.b16 %v1831, %v1830
        %v1951 = vpack.c.b16 %v1833, %v1832
        %v1952 = vpack.c.b16 %v1835, %v1834
        %v1953 = vpack.c.b16 %v1837, %v1836
        %v1954 = vpack.c.b16 %v1839, %v1838
        %v1955 = vpack.c.b16 %v1841, %v1840
        %v1956 = vpack.c.b16 %v1843, %v1842
        %v1957 = vpack.c.b16 %v1845, %v1844
        %v1958 = vpack.c.b16 %v1847, %v1846
        %v1959 = vpack.c.b16 %v1849, %v1848
        %v1960 = vpack.c.b16 %v1851, %v1850
        %v1961 = vpack.c.b16 %v1853, %v1852
        %v1962 = vpack.c.b16 %v1855, %v1854
        %v1963 = vpack.c.b16 %v1857, %v1856
        %v1964 = vpack.c.b16 %v1859, %v1858
        %v1965 = vpack.c.b16 %v1861, %v1860
        %v1966 = vpack.c.b16 %v1863, %v1862
        %v1967 = vpack.c.b16 %v1865, %v1864
        %v1968 = vpack.c.b16 %v1867, %v1866
        %v1969 = vpack.c.b16 %v1869, %v1868
        %v1970 = vpack.c.b16 %v1871, %v1870
        %v1971 = vpack.c.b16 %v1873, %v1872
        %v1972 = vpack.c.b16 %v1875, %v1874
        %v1973 = vpack.c.b16 %v1877, %v1876
        %v1974 = vpack.c.b16 %v1879, %v1878
        %v1975 = vpack.c.b16 %v1881, %v1880
        %v1976 = vpack.c.b16 %v1883, %v1882
        %v1977 = vpack.c.b16 %v1885, %v1884
        %v1978 = vpack.c.b16 %v1887, %v1886
        %v1979 = vpack.c.b16 %v1889, %v1888
        %v1980 = vpack.c.b16 %v1891, %v1890
        %v1981 = vpack.c.b16 %v1893, %v1892
        %v1982 = vpack.c.b16 %v1895, %v1894
        %v1983 = vpack.c.b16 %v1897, %v1896
        %v1984 = vpack.c.b16 %v1899, %v1898
        %v1985 = vpack.c.b16 %v1901, %v1900
        %v1986 = vpack.c.b16 %v1903, %v1902
        %v1987 = vpack.c.b16 %v1905, %v1904
        %v1988 = vpack.c.b16 %v1907, %v1906
        %v1989 = vpack.c.b16 %v1909, %v1908
        %v1990 = vpack.c.b16 %v1911, %v1910
        %v1991 = vpack.c.b16 %v1913, %v1912
        %v1992 = vpack.c.b16 %v1914, %v1914
        %vm2070 = vcmask 678912
        %v2072 = vsel %vm2070, %v1595, 0
        %vm2074 = vcmask 1040384
        %vm2075 = vcmask 1041408
        %v2076 = vsel %vm2074, 4294967295, 65535
        %v2077 = vsel %vm2075, %v2076, 0
        %v2079 = vand.u32 %v1992, %v2077
        %2081 = vmatpush.bf16.msra.mxu0 %v1922
        %2082 = vmatpush.bf16.msra.mxu0 %v1921
        %2083 = vmatpush.bf16.msra.mxu0 %v1920
        %2084 = vmatpush.bf16.msra.mxu0 %v1919
        %2085 = vmatpush.bf16.msra.mxu0 %v1918
        %2086 = vmatpush.bf16.msra.mxu0 %v1917
        %2087 = vmatpush.bf16.msra.mxu0 %v1916
        %2088 = vmatpush.bf16.msra.mxu0 %v1915
        %2089 = vmatmul.bf16.gmra.mxu0 %v1586
        %v2090 = vpop.f32.mrf.mxu0
        %v2091 = vadd.f32 %v1570, %v2090
        %v2092 = vpop.f32.mrf.mxu0
        %2093 = vdwg.mxu0
        %2094 = vmatpush.bf16.msra.mxu0 %v1930
        %2095 = vmatpush.bf16.msra.mxu0 %v1929
        %2096 = vmatpush.bf16.msra.mxu0 %v1928
        %2097 = vmatpush.bf16.msra.mxu0 %v1927
        %2098 = vmatpush.bf16.msra.mxu0 %v1926
        %2099 = vmatpush.bf16.msra.mxu0 %v1925
        %2100 = vmatpush.bf16.msra.mxu0 %v1924
        %2101 = vmatpush.bf16.msra.mxu0 %v1923
        %2102 = vmatmul.bf16.gmra.mxu0 %v1587
        %v2103 = vpop.f32.mrf.mxu0
        %v2104 = vadd.f32 %v2091, %v2103
        %v2105 = vpop.f32.mrf.mxu0
        %2106 = vdwg.mxu0
        %2107 = vmatpush.bf16.msra.mxu0 %v1938
        %2108 = vmatpush.bf16.msra.mxu0 %v1937
        %2109 = vmatpush.bf16.msra.mxu0 %v1936
        %2110 = vmatpush.bf16.msra.mxu0 %v1935
        %2111 = vmatpush.bf16.msra.mxu0 %v1934
        %2112 = vmatpush.bf16.msra.mxu0 %v1933
        %2113 = vmatpush.bf16.msra.mxu0 %v1932
        %2114 = vmatpush.bf16.msra.mxu0 %v1931
        %2115 = vmatmul.bf16.gmra.mxu0 %v1588
        %v2116 = vpop.f32.mrf.mxu0
        %v2117 = vadd.f32 %v2104, %v2116
        %v2118 = vpop.f32.mrf.mxu0
        %2119 = vdwg.mxu0
        %2120 = vmatpush.bf16.msra.mxu0 %v1946
        %2121 = vmatpush.bf16.msra.mxu0 %v1945
        %2122 = vmatpush.bf16.msra.mxu0 %v1944
        %2123 = vmatpush.bf16.msra.mxu0 %v1943
        %2124 = vmatpush.bf16.msra.mxu0 %v1942
        %2125 = vmatpush.bf16.msra.mxu0 %v1941
        %2126 = vmatpush.bf16.msra.mxu0 %v1940
        %2127 = vmatpush.bf16.msra.mxu0 %v1939
        %2128 = vmatmul.bf16.gmra.mxu0 %v1589
        %v2129 = vpop.f32.mrf.mxu0
        %v2130 = vadd.f32 %v2117, %v2129
        %v2131 = vpop.f32.mrf.mxu0
        %2132 = vdwg.mxu0
        %2133 = vmatpush.bf16.msra.mxu0 %v1954
        %2134 = vmatpush.bf16.msra.mxu0 %v1953
        %2135 = vmatpush.bf16.msra.mxu0 %v1952
        %2136 = vmatpush.bf16.msra.mxu0 %v1951
        %2137 = vmatpush.bf16.msra.mxu0 %v1950
        %2138 = vmatpush.bf16.msra.mxu0 %v1949
        %2139 = vmatpush.bf16.msra.mxu0 %v1948
        %2140 = vmatpush.bf16.msra.mxu0 %v1947
        %2141 = vmatmul.bf16.gmra.mxu0 %v1590
        %v2142 = vpop.f32.mrf.mxu0
        %v2143 = vadd.f32 %v2130, %v2142
        %v2144 = vpop.f32.mrf.mxu0
        %2145 = vdwg.mxu0
        %2146 = vmatpush.bf16.msra.mxu0 %v1962
        %2147 = vmatpush.bf16.msra.mxu0 %v1961
        %2148 = vmatpush.bf16.msra.mxu0 %v1960
        %2149 = vmatpush.bf16.msra.mxu0 %v1959
        %2150 = vmatpush.bf16.msra.mxu0 %v1958
        %2151 = vmatpush.bf16.msra.mxu0 %v1957
        %2152 = vmatpush.bf16.msra.mxu0 %v1956
        %2153 = vmatpush.bf16.msra.mxu0 %v1955
        %2154 = vmatmul.bf16.gmra.mxu0 %v1591
        %v2155 = vpop.f32.mrf.mxu0
        %v2156 = vadd.f32 %v2143, %v2155
        %v2157 = vpop.f32.mrf.mxu0
        %2158 = vdwg.mxu0
        %2159 = vmatpush.bf16.msra.mxu0 %v1970
        %2160 = vmatpush.bf16.msra.mxu0 %v1969
        %2161 = vmatpush.bf16.msra.mxu0 %v1968
        %2162 = vmatpush.bf16.msra.mxu0 %v1967
        %2163 = vmatpush.bf16.msra.mxu0 %v1966
        %2164 = vmatpush.bf16.msra.mxu0 %v1965
        %2165 = vmatpush.bf16.msra.mxu0 %v1964
        %2166 = vmatpush.bf16.msra.mxu0 %v1963
        %2167 = vmatmul.bf16.gmra.mxu0 %v1592
        %v2168 = vpop.f32.mrf.mxu0
        %v2169 = vadd.f32 %v2156, %v2168
        %v2170 = vpop.f32.mrf.mxu0
        %2171 = vdwg.mxu0
        %2172 = vmatpush.bf16.msra.mxu0 %v1978
        %2173 = vmatpush.bf16.msra.mxu0 %v1977
        %2174 = vmatpush.bf16.msra.mxu0 %v1976
        %2175 = vmatpush.bf16.msra.mxu0 %v1975
        %2176 = vmatpush.bf16.msra.mxu0 %v1974
        %2177 = vmatpush.bf16.msra.mxu0 %v1973
        %2178 = vmatpush.bf16.msra.mxu0 %v1972
        %2179 = vmatpush.bf16.msra.mxu0 %v1971
        %2180 = vmatmul.bf16.gmra.mxu0 %v1593
        %v2181 = vpop.f32.mrf.mxu0
        %v2182 = vadd.f32 %v2169, %v2181
        %v2183 = vpop.f32.mrf.mxu0
        %2184 = vdwg.mxu0
        %2185 = vmatpush.bf16.msra.mxu0 %v1986
        %2186 = vmatpush.bf16.msra.mxu0 %v1985
        %2187 = vmatpush.bf16.msra.mxu0 %v1984
        %2188 = vmatpush.bf16.msra.mxu0 %v1983
        %2189 = vmatpush.bf16.msra.mxu0 %v1982
        %2190 = vmatpush.bf16.msra.mxu0 %v1981
        %2191 = vmatpush.bf16.msra.mxu0 %v1980
        %2192 = vmatpush.bf16.msra.mxu0 %v1979
        %2193 = vmatmul.bf16.gmra.mxu0 %v1594
        %v2194 = vpop.f32.mrf.mxu0
        %v2195 = vadd.f32 %v2182, %v2194
        %v2196 = vpop.f32.mrf.mxu0
        %2197 = vdwg.mxu0
        %2198 = vmatpush.bf16.msra.mxu0 0
        %2199 = vmatpush.bf16.msra.mxu0 0
        %2200 = vmatpush.bf16.msra.mxu0 %v2079
        %2201 = vmatpush.bf16.msra.mxu0 %v1991
        %2202 = vmatpush.bf16.msra.mxu0 %v1990
        %2203 = vmatpush.bf16.msra.mxu0 %v1989
        %2204 = vmatpush.bf16.msra.mxu0 %v1988
        %2205 = vmatpush.bf16.msra.mxu0 %v1987
        %2206 = vmatmul.bf16.gmra.mxu0 %v2072
        %v2207 = vpop.f32.mrf.mxu0
        %v2208 = vadd.f32 %v2195, %v2207
        %v2209 = vpop.f32.mrf.mxu0
        %2210 = vdwg.mxu0
        %v2211 = vmax.f32 %v2208, 0.0
        %v2212 = vsel %vm1380, %v2211, 0.0
        %2213 = vadd.xlane.f32.xlu0 %v2212
        %v2214 = vpop.xlane.xlu0 %2213
        %v2215 = vmul.f32 %v2214, %v1390
        %v2216 = vsub.f32 %v2211, %v2215
        %v2217 = vmul.f32 %v2216, %v2216
        %v2218 = vsel %vm1380, %v2217, 0.0
        %2219 = vadd.xlane.f32.xlu0 %v2218
        %v2220 = vpop.xlane.xlu0 %2219
        %v2221 = vmul.f32 %v2220, %v1390
        %v2222 = vadd.f32 %v2221, 1e-05
        %v2223 = vrsqrt.pop %v2222
        %v2224 = vmul.f32 %v2223, %v2222
        %v2225 = vmul.f32 %v2224, %v2223
        %v2226 = vmul.f32 0.5, %v2225
        %v2227 = vsub.f32 1.5, %v2226
        %v2228 = vmul.f32 %v2223, %v2227
        %vm2229 = vweird.f32 %v2222
        %vm2230 = vweird.f32 %v2223
        %vm2231 = vmor %vm2229, %vm2230
        %v2232 = vsel %vm2231, %v2223, %v2228
        %v2233 = vmul.f32 %v2216, %v2232
        %v2234 = vperm.slane %v1569, 1
        %v2235 = vmul.f32 %v2233, %v2234
        %v2236 = vperm.slane %v1569, 2
        %v2237 = vadd.f32 %v2235, %v2236
        %2238 = vst.msk [vmem:[%s530] sm:$0xff] %vm1380, %v1413
        %2240 = vrot.lane.b32.xlu0 %v2237, 64
        %v2241 = vpop.permute.xlu0 %2240
        %vm2243 = vcmask 1048064
        %2244 = vst.msk [vmem:[%s530] sm:$0xff] %vm2243, %v2241
        %v2245 = vld [vmem:[%s6] sm:$0xf]
        %v2246 = vld [vmem:[%s6 + $0x4] sm:$0xf]
        %v2247 = vld [vmem:[%s6 + $0x8] sm:$0xf]
        %v2248 = vld [vmem:[%s6 + $0xc] sm:$0xf]
        %v2249 = vld [vmem:[%s6 + $0x10] sm:$0xf]
        %v2250 = vld [vmem:[%s6 + $0x14] sm:$0xf]
        %v2251 = vld [vmem:[%s6 + $0x18] sm:$0xf]
        %v2252 = vld [vmem:[%s6 + $0x1c] sm:$0xf]
        %v2253 = vld [vmem:[%s6 + $0x20] sm:$0xf]
        %v2254 = vld [vmem:[%s6 + $0x24] sm:$0xf]
        %v2255 = vld [vmem:[%s6 + $0x28] sm:$0xf]
        %v2256 = vld [vmem:[%s6 + $0x2c] sm:$0xf]
        %v2257 = vld [vmem:[%s6 + $0x30] sm:$0xf]
        %v2258 = vld [vmem:[%s6 + $0x34] sm:$0xf]
        %v2259 = vld [vmem:[%s6 + $0x38] sm:$0xf]
        %v2260 = vld [vmem:[%s6 + $0x3c] sm:$0xf]
        %v2261 = vld [vmem:[%s6 + $0x40] sm:$0xf]
        %v2262 = vld [vmem:[%s6 + $0x44] sm:$0xf]
        %v2263 = vld [vmem:[%s6 + $0x48] sm:$0xf]
        %v2264 = vld [vmem:[%s6 + $0x4c] sm:$0xf]
        %v2265 = vld [vmem:[%s6 + $0x50] sm:$0xf]
        %v2266 = vld [vmem:[%s6 + $0x54] sm:$0xf]
        %v2267 = vld [vmem:[%s6 + $0x58] sm:$0xf]
        %v2268 = vld [vmem:[%s6 + $0x5c] sm:$0xf]
        %v2269 = vld [vmem:[%s6 + $0x60] sm:$0xf]
        %v2270 = vld [vmem:[%s6 + $0x64] sm:$0xf]
        %v2271 = vld [vmem:[%s6 + $0x68] sm:$0xf]
        %v2272 = vld [vmem:[%s6 + $0x6c] sm:$0xf]
        %v2273 = vld [vmem:[%s6 + $0x70] sm:$0xf]
        %v2274 = vld [vmem:[%s6 + $0x74] sm:$0xf]
        %v2275 = vld [vmem:[%s6 + $0x78] sm:$0xf]
        %v2276 = vld [vmem:[%s6 + $0x7c] sm:$0xf]
        %v2277 = vld [vmem:[%s6 + $0x80] sm:$0xf]
        %v2278 = vld [vmem:[%s6 + $0x84] sm:$0xf]
        %v2279 = vld [vmem:[%s6 + $0x88] sm:$0xf]
        %v2280 = vld [vmem:[%s6 + $0x8c] sm:$0xf]
        %v2281 = vld [vmem:[%s6 + $0x90] sm:$0xf]
        %v2282 = vld [vmem:[%s6 + $0x94] sm:$0xf]
        %v2283 = vld [vmem:[%s6 + $0x98] sm:$0xf]
        %v2284 = vld [vmem:[%s6 + $0x9c] sm:$0xf]
        %v2285 = vld [vmem:[%s6 + $0xa0] sm:$0xf]
        %v2286 = vld [vmem:[%s6 + $0xa4] sm:$0xf]
        %v2287 = vld [vmem:[%s6 + $0xa8] sm:$0xf]
        %v2288 = vld [vmem:[%s6 + $0xac] sm:$0xf]
        %v2289 = vld [vmem:[%s6 + $0xb0] sm:$0xf]
        %v2290 = vld [vmem:[%s6 + $0xb4] sm:$0xf]
        %v2291 = vld [vmem:[%s6 + $0xb8] sm:$0xf]
        %v2292 = vld [vmem:[%s6 + $0xbc] sm:$0xf]
        %v2293 = vld [vmem:[%s6 + $0xc0] sm:$0xf]
        %v2294 = vld [vmem:[%s6 + $0xc4] sm:$0xf]
        %v2295 = vld [vmem:[%s6 + $0xc8] sm:$0xf]
        %v2296 = vld [vmem:[%s6 + $0xcc] sm:$0xf]
        %v2297 = vld [vmem:[%s6 + $0xd0] sm:$0xf]
        %v2298 = vld [vmem:[%s6 + $0xd4] sm:$0xf]
        %v2299 = vld [vmem:[%s6 + $0xd8] sm:$0xf]
        %v2300 = vld [vmem:[%s6 + $0xdc] sm:$0xf]
        %v2301 = vld [vmem:[%s6 + $0xe0] sm:$0xf]
        %v2302 = vld [vmem:[%s6 + $0xe4] sm:$0xf]
        %v2303 = vld [vmem:[%s6 + $0xe8] sm:$0xf]
        %v2304 = vld [vmem:[%s6 + $0xec] sm:$0xf]
        %v2305 = vld [vmem:[%s6 + $0xf0] sm:$0xf]
        %v2306 = vld [vmem:[%s6 + $0xf4] sm:$0xf]
        %v2307 = vld [vmem:[%s6 + $0xf8] sm:$0xf]
        %v2308 = vld [vmem:[%s6 + $0xfc] sm:$0xf]
        %v2309 = vld [vmem:[%s6 + $0x100] sm:$0xf]
        %v2310 = vld [vmem:[%s6 + $0x104] sm:$0xf]
        %v2311 = vld [vmem:[%s6 + $0x108] sm:$0xf]
        %v2312 = vld [vmem:[%s6 + $0x10c] sm:$0xf]
        %v2313 = vld [vmem:[%s6 + $0x110] sm:$0xf]
        %v2314 = vld [vmem:[%s6 + $0x114] sm:$0xf]
        %v2315 = vld [vmem:[%s6 + $0x118] sm:$0xf]
        %v2316 = vld [vmem:[%s6 + $0x11c] sm:$0xf]
        %v2317 = vld [vmem:[%s6 + $0x120] sm:$0xf]
        %v2318 = vld [vmem:[%s6 + $0x124] sm:$0xf]
        %v2319 = vld [vmem:[%s6 + $0x128] sm:$0xf]
        %v2320 = vld [vmem:[%s6 + $0x12c] sm:$0xf]
        %v2321 = vld [vmem:[%s6 + $0x130] sm:$0xf]
        %v2322 = vld [vmem:[%s6 + $0x134] sm:$0xf]
        %v2323 = vld [vmem:[%s6 + $0x138] sm:$0xf]
        %v2324 = vld [vmem:[%s6 + $0x13c] sm:$0xf]
        %v2325 = vld [vmem:[%s6 + $0x140] sm:$0xf]
        %v2326 = vld [vmem:[%s6 + $0x144] sm:$0xf]
        %v2327 = vld [vmem:[%s6 + $0x148] sm:$0xf]
        %v2328 = vld [vmem:[%s6 + $0x14c] sm:$0xf]
        %v2329 = vld [vmem:[%s6 + $0x150] sm:$0xf]
        %v2330 = vld [vmem:[%s6 + $0x154] sm:$0xf]
        %v2331 = vld [vmem:[%s6 + $0x158] sm:$0xf]
        %v2332 = vld [vmem:[%s6 + $0x15c] sm:$0xf]
        %v2333 = vld [vmem:[%s6 + $0x160] sm:$0xf]
        %v2334 = vld [vmem:[%s6 + $0x164] sm:$0xf]
        %v2335 = vld [vmem:[%s6 + $0x168] sm:$0xf]
        %v2336 = vld [vmem:[%s6 + $0x16c] sm:$0xf]
        %v2337 = vld [vmem:[%s6 + $0x170] sm:$0xf]
        %v2338 = vld [vmem:[%s6 + $0x174] sm:$0xf]
        %v2339 = vld [vmem:[%s6 + $0x178] sm:$0xf]
        %v2340 = vld [vmem:[%s6 + $0x17c] sm:$0xf]
        %v2341 = vld [vmem:[%s6 + $0x180] sm:$0xf]
        %v2342 = vld [vmem:[%s6 + $0x184] sm:$0xf]
        %v2343 = vld [vmem:[%s6 + $0x188] sm:$0xf]
        %v2344 = vld [vmem:[%s6 + $0x18c] sm:$0xf]
        %v2345 = vld [vmem:[%s6 + $0x190] sm:$0xf]
        %v2346 = vld [vmem:[%s6 + $0x194] sm:$0xf]
        %v2347 = vld [vmem:[%s6 + $0x198] sm:$0xf]
        %v2348 = vld [vmem:[%s6 + $0x19c] sm:$0xf]
        %v2349 = vld [vmem:[%s6 + $0x1a0] sm:$0xf]
        %v2350 = vld [vmem:[%s6 + $0x1a4] sm:$0xf]
        %v2351 = vld [vmem:[%s6 + $0x1a8] sm:$0xf]
        %v2352 = vld [vmem:[%s6 + $0x1ac] sm:$0xf]
        %v2353 = vld [vmem:[%s6 + $0x1b0] sm:$0xf]
        %v2354 = vld [vmem:[%s6 + $0x1b4] sm:$0xf]
        %v2355 = vld [vmem:[%s6 + $0x1b8] sm:$0xf]
        %v2356 = vld [vmem:[%s6 + $0x1bc] sm:$0xf]
        %v2357 = vld [vmem:[%s6 + $0x1c0] sm:$0xf]
        %v2358 = vld [vmem:[%s6 + $0x1c4] sm:$0xf]
        %v2359 = vld [vmem:[%s6 + $0x1c8] sm:$0xf]
        %v2360 = vld [vmem:[%s6 + $0x1cc] sm:$0xf]
        %v2361 = vld [vmem:[%s6 + $0x1d0] sm:$0xf]
        %v2362 = vld [vmem:[%s6 + $0x1d4] sm:$0xf]
        %v2363 = vld [vmem:[%s6 + $0x1d8] sm:$0xf]
        %v2364 = vld [vmem:[%s6 + $0x1dc] sm:$0xf]
        %v2365 = vld [vmem:[%s6 + $0x1e0] sm:$0xf]
        %v2366 = vld [vmem:[%s6 + $0x1e4] sm:$0xf]
        %v2367 = vld [vmem:[%s6 + $0x1e8] sm:$0xf]
        %v2368 = vld [vmem:[%s6 + $0x1ec] sm:$0xf]
        %v2369 = vld [vmem:[%s6 + $0x1f0] sm:$0xf]
        %v2370 = vld [vmem:[%s6 + $0x1f4] sm:$0xf]
        %v2371 = vld [vmem:[%s6 + $0x1f8] sm:$0xf]
        %v2372 = vld [vmem:[%s6 + $0x1fc] sm:$0xf]
        %v2373 = vld [vmem:[%s6 + $0x200] sm:$0xf]
        %v2374 = vld [vmem:[%s6 + $0x204] sm:$0xf]
        %v2375 = vld [vmem:[%s6 + $0x208] sm:$0xf]
        %v2376 = vld [vmem:[%s6 + $0x20c] sm:$0xf]
        %v2377 = vld [vmem:[%s6 + $0x210] sm:$0xf]
        %v2378 = vld [vmem:[%s6 + $0x214] sm:$0xf]
        %v2379 = vld [vmem:[%s6 + $0x218] sm:$0xf]
        %v2380 = vld [vmem:[%s6 + $0x21c] sm:$0xf]
        %v2381 = vld [vmem:[%s6 + $0x220] sm:$0xf]
        %v2382 = vld [vmem:[%s6 + $0x224] sm:$0xf]
        %v2383 = vld [vmem:[%s6 + $0x228] sm:$0xf]
        %v2384 = vld [vmem:[%s6 + $0x22c] sm:$0xf]
        %v2385 = vld [vmem:[%s6 + $0x230] sm:$0xf]
        %v2386 = vld [vmem:[%s6 + $0x234] sm:$0xf]
        %v2387 = vld [vmem:[%s6 + $0x238] sm:$0xf]
        %v2388 = vld [vmem:[%s6 + $0x23c] sm:$0xf]
        %v2389 = vld [vmem:[%s6 + $0x240] sm:$0xf]
        %v2390 = vld [vmem:[%s6 + $0x244] sm:$0xf]
        %v2391 = vld [vmem:[%s6 + $0x248] sm:$0xf]
        %v2392 = vld [vmem:[%s6 + $0x24c] sm:$0xf]
        %v2393 = vld [vmem:[%s6 + $0x250] sm:$0xf]
        %v2394 = vld [vmem:[%s6 + $0x254] sm:$0xf]
        %v2395 = vld [vmem:[%s6 + $0x258] sm:$0xf]
        %v2396 = vld [vmem:[%s6 + $0x25c] sm:$0xf]
        %v2397 = vld [vmem:[%s6 + $0x260] sm:$0xf]
        %v2398 = vld [vmem:[%s6 + $0x264] sm:$0xf]
        %v2399 = vld [vmem:[%s6 + $0x268] sm:$0xf]
        %v2400 = vld [vmem:[%s6 + $0x26c] sm:$0xf]
        %v2401 = vld [vmem:[%s6 + $0x270] sm:$0xf]
        %v2402 = vld [vmem:[%s6 + $0x274] sm:$0xf]
        %v2403 = vld [vmem:[%s6 + $0x278] sm:$0xf]
        %v2404 = vld [vmem:[%s6 + $0x27c] sm:$0xf]
        %v2405 = vld [vmem:[%s7] sm:$0x7]
        %v2406 = vperm.slane %v2405, 0
        %v2567 = vunpack.c.l.b16 %v2245
        %v2568 = vunpack.c.l.b16 %v2246
        %v2569 = vunpack.c.l.b16 %v2247
        %v2570 = vunpack.c.l.b16 %v2248
        %v2571 = vunpack.c.l.b16 %v2249
        %v2572 = vunpack.c.l.b16 %v2250
        %v2573 = vunpack.c.l.b16 %v2251
        %v2574 = vunpack.c.l.b16 %v2252
        %v2575 = vunpack.c.l.b16 %v2253
        %v2576 = vunpack.c.l.b16 %v2254
        %v2577 = vunpack.c.l.b16 %v2255
        %v2578 = vunpack.c.l.b16 %v2256
        %v2579 = vunpack.c.l.b16 %v2257
        %v2580 = vunpack.c.l.b16 %v2258
        %v2581 = vunpack.c.l.b16 %v2259
        %v2582 = vunpack.c.l.b16 %v2260
        %v2583 = vunpack.c.l.b16 %v2261
        %v2584 = vunpack.c.l.b16 %v2262
        %v2585 = vunpack.c.l.b16 %v2263
        %v2586 = vunpack.c.l.b16 %v2264
        %v2587 = vunpack.c.l.b16 %v2265
        %v2588 = vunpack.c.l.b16 %v2266
        %v2589 = vunpack.c.l.b16 %v2267
        %v2590 = vunpack.c.l.b16 %v2268
        %v2591 = vunpack.c.l.b16 %v2269
        %v2592 = vunpack.c.l.b16 %v2270
        %v2593 = vunpack.c.l.b16 %v2271
        %v2594 = vunpack.c.l.b16 %v2272
        %v2595 = vunpack.c.l.b16 %v2273
        %v2596 = vunpack.c.l.b16 %v2274
        %v2597 = vunpack.c.l.b16 %v2275
        %v2598 = vunpack.c.l.b16 %v2276
        %v2599 = vunpack.c.l.b16 %v2277
        %v2600 = vunpack.c.l.b16 %v2278
        %v2601 = vunpack.c.l.b16 %v2279
        %v2602 = vunpack.c.l.b16 %v2280
        %v2603 = vunpack.c.l.b16 %v2281
        %v2604 = vunpack.c.l.b16 %v2282
        %v2605 = vunpack.c.l.b16 %v2283
        %v2606 = vunpack.c.l.b16 %v2284
        %v2607 = vunpack.c.l.b16 %v2285
        %v2608 = vunpack.c.l.b16 %v2286
        %v2609 = vunpack.c.l.b16 %v2287
        %v2610 = vunpack.c.l.b16 %v2288
        %v2611 = vunpack.c.l.b16 %v2289
        %v2612 = vunpack.c.l.b16 %v2290
        %v2613 = vunpack.c.l.b16 %v2291
        %v2614 = vunpack.c.l.b16 %v2292
        %v2615 = vunpack.c.l.b16 %v2293
        %v2616 = vunpack.c.l.b16 %v2294
        %v2617 = vunpack.c.l.b16 %v2295
        %v2618 = vunpack.c.l.b16 %v2296
        %v2619 = vunpack.c.l.b16 %v2297
        %v2620 = vunpack.c.l.b16 %v2298
        %v2621 = vunpack.c.l.b16 %v2299
        %v2622 = vunpack.c.l.b16 %v2300
        %v2623 = vunpack.c.l.b16 %v2301
        %v2624 = vunpack.c.l.b16 %v2302
        %v2625 = vunpack.c.l.b16 %v2303
        %v2626 = vunpack.c.l.b16 %v2304
        %v2627 = vunpack.c.l.b16 %v2305
        %v2628 = vunpack.c.l.b16 %v2306
        %v2629 = vunpack.c.l.b16 %v2307
        %v2630 = vunpack.c.l.b16 %v2308
        %v2631 = vunpack.c.l.b16 %v2309
        %v2632 = vunpack.c.l.b16 %v2310
        %v2633 = vunpack.c.l.b16 %v2311
        %v2634 = vunpack.c.l.b16 %v2312
        %v2635 = vunpack.c.l.b16 %v2313
        %v2636 = vunpack.c.l.b16 %v2314
        %v2637 = vunpack.c.l.b16 %v2315
        %v2638 = vunpack.c.l.b16 %v2316
        %v2639 = vunpack.c.l.b16 %v2317
        %v2640 = vunpack.c.l.b16 %v2318
        %v2641 = vunpack.c.l.b16 %v2319
        %v2642 = vunpack.c.l.b16 %v2320
        %v2643 = vunpack.c.l.b16 %v2321
        %v2644 = vunpack.c.l.b16 %v2322
        %v2645 = vunpack.c.l.b16 %v2323
        %v2646 = vunpack.c.l.b16 %v2324
        %v2647 = vunpack.c.l.b16 %v2325
        %v2648 = vunpack.c.l.b16 %v2326
        %v2649 = vunpack.c.l.b16 %v2327
        %v2650 = vunpack.c.l.b16 %v2328
        %v2651 = vunpack.c.l.b16 %v2329
        %v2652 = vunpack.c.l.b16 %v2330
        %v2653 = vunpack.c.l.b16 %v2331
        %v2654 = vunpack.c.l.b16 %v2332
        %v2655 = vunpack.c.l.b16 %v2333
        %v2656 = vunpack.c.l.b16 %v2334
        %v2657 = vunpack.c.l.b16 %v2335
        %v2658 = vunpack.c.l.b16 %v2336
        %v2659 = vunpack.c.l.b16 %v2337
        %v2660 = vunpack.c.l.b16 %v2338
        %v2661 = vunpack.c.l.b16 %v2339
        %v2662 = vunpack.c.l.b16 %v2340
        %v2663 = vunpack.c.l.b16 %v2341
        %v2664 = vunpack.c.l.b16 %v2342
        %v2665 = vunpack.c.l.b16 %v2343
        %v2666 = vunpack.c.l.b16 %v2344
        %v2667 = vunpack.c.l.b16 %v2345
        %v2668 = vunpack.c.l.b16 %v2346
        %v2669 = vunpack.c.l.b16 %v2347
        %v2670 = vunpack.c.l.b16 %v2348
        %v2671 = vunpack.c.l.b16 %v2349
        %v2672 = vunpack.c.l.b16 %v2350
        %v2673 = vunpack.c.l.b16 %v2351
        %v2674 = vunpack.c.l.b16 %v2352
        %v2675 = vunpack.c.l.b16 %v2353
        %v2676 = vunpack.c.l.b16 %v2354
        %v2677 = vunpack.c.l.b16 %v2355
        %v2678 = vunpack.c.l.b16 %v2356
        %v2679 = vunpack.c.l.b16 %v2357
        %v2680 = vunpack.c.l.b16 %v2358
        %v2681 = vunpack.c.l.b16 %v2359
        %v2682 = vunpack.c.l.b16 %v2360
        %v2683 = vunpack.c.l.b16 %v2361
        %v2684 = vunpack.c.l.b16 %v2362
        %v2685 = vunpack.c.l.b16 %v2363
        %v2686 = vunpack.c.l.b16 %v2364
        %v2687 = vunpack.c.l.b16 %v2365
        %v2688 = vunpack.c.l.b16 %v2366
        %v2689 = vunpack.c.l.b16 %v2367
        %v2690 = vunpack.c.l.b16 %v2368
        %v2691 = vunpack.c.l.b16 %v2369
        %v2692 = vunpack.c.l.b16 %v2370
        %v2693 = vunpack.c.l.b16 %v2371
        %v2694 = vunpack.c.l.b16 %v2372
        %v2695 = vunpack.c.l.b16 %v2373
        %v2696 = vunpack.c.l.b16 %v2374
        %v2697 = vunpack.c.l.b16 %v2375
        %v2698 = vunpack.c.l.b16 %v2376
        %v2699 = vunpack.c.l.b16 %v2377
        %v2700 = vunpack.c.l.b16 %v2378
        %v2701 = vunpack.c.l.b16 %v2379
        %v2702 = vunpack.c.l.b16 %v2380
        %v2703 = vunpack.c.l.b16 %v2381
        %v2704 = vunpack.c.l.b16 %v2382
        %v2705 = vunpack.c.l.b16 %v2383
        %v2706 = vunpack.c.l.b16 %v2384
        %v2707 = vunpack.c.l.b16 %v2385
        %v2708 = vunpack.c.l.b16 %v2386
        %v2709 = vunpack.c.l.b16 %v2387
        %v2710 = vunpack.c.l.b16 %v2388
        %v2711 = vunpack.c.l.b16 %v2389
        %v2712 = vunpack.c.l.b16 %v2390
        %v2713 = vunpack.c.l.b16 %v2391
        %v2714 = vunpack.c.l.b16 %v2392
        %v2715 = vunpack.c.l.b16 %v2393
        %v2716 = vunpack.c.l.b16 %v2394
        %v2717 = vunpack.c.l.b16 %v2395
        %v2718 = vunpack.c.l.b16 %v2396
        %v2719 = vunpack.c.l.b16 %v2397
        %v2720 = vunpack.c.l.b16 %v2398
        %v2721 = vunpack.c.l.b16 %v2399
        %v2722 = vunpack.c.l.b16 %v2400
        %v2723 = vunpack.c.l.b16 %v2401
        %v2724 = vunpack.c.l.b16 %v2402
        %v2725 = vunpack.c.l.b16 %v2403
        %v2726 = vunpack.c.l.b16 %v2404
        %v2727 = vpack.c.b16 %v2568, %v2567
        %v2728 = vpack.c.b16 %v2570, %v2569
        %v2729 = vpack.c.b16 %v2572, %v2571
        %v2730 = vpack.c.b16 %v2574, %v2573
        %v2731 = vpack.c.b16 %v2576, %v2575
        %v2732 = vpack.c.b16 %v2578, %v2577
        %v2733 = vpack.c.b16 %v2580, %v2579
        %v2734 = vpack.c.b16 %v2582, %v2581
        %v2735 = vpack.c.b16 %v2584, %v2583
        %v2736 = vpack.c.b16 %v2586, %v2585
        %v2737 = vpack.c.b16 %v2588, %v2587
        %v2738 = vpack.c.b16 %v2590, %v2589
        %v2739 = vpack.c.b16 %v2592, %v2591
        %v2740 = vpack.c.b16 %v2594, %v2593
        %v2741 = vpack.c.b16 %v2596, %v2595
        %v2742 = vpack.c.b16 %v2598, %v2597
        %v2743 = vpack.c.b16 %v2600, %v2599
        %v2744 = vpack.c.b16 %v2602, %v2601
        %v2745 = vpack.c.b16 %v2604, %v2603
        %v2746 = vpack.c.b16 %v2606, %v2605
        %v2747 = vpack.c.b16 %v2608, %v2607
        %v2748 = vpack.c.b16 %v2610, %v2609
        %v2749 = vpack.c.b16 %v2612, %v2611
        %v2750 = vpack.c.b16 %v2614, %v2613
        %v2751 = vpack.c.b16 %v2616, %v2615
        %v2752 = vpack.c.b16 %v2618, %v2617
        %v2753 = vpack.c.b16 %v2620, %v2619
        %v2754 = vpack.c.b16 %v2622, %v2621
        %v2755 = vpack.c.b16 %v2624, %v2623
        %v2756 = vpack.c.b16 %v2626, %v2625
        %v2757 = vpack.c.b16 %v2628, %v2627
        %v2758 = vpack.c.b16 %v2630, %v2629
        %v2759 = vpack.c.b16 %v2632, %v2631
        %v2760 = vpack.c.b16 %v2634, %v2633
        %v2761 = vpack.c.b16 %v2636, %v2635
        %v2762 = vpack.c.b16 %v2638, %v2637
        %v2763 = vpack.c.b16 %v2640, %v2639
        %v2764 = vpack.c.b16 %v2642, %v2641
        %v2765 = vpack.c.b16 %v2644, %v2643
        %v2766 = vpack.c.b16 %v2646, %v2645
        %v2767 = vpack.c.b16 %v2648, %v2647
        %v2768 = vpack.c.b16 %v2650, %v2649
        %v2769 = vpack.c.b16 %v2652, %v2651
        %v2770 = vpack.c.b16 %v2654, %v2653
        %v2771 = vpack.c.b16 %v2656, %v2655
        %v2772 = vpack.c.b16 %v2658, %v2657
        %v2773 = vpack.c.b16 %v2660, %v2659
        %v2774 = vpack.c.b16 %v2662, %v2661
        %v2775 = vpack.c.b16 %v2664, %v2663
        %v2776 = vpack.c.b16 %v2666, %v2665
        %v2777 = vpack.c.b16 %v2668, %v2667
        %v2778 = vpack.c.b16 %v2670, %v2669
        %v2779 = vpack.c.b16 %v2672, %v2671
        %v2780 = vpack.c.b16 %v2674, %v2673
        %v2781 = vpack.c.b16 %v2676, %v2675
        %v2782 = vpack.c.b16 %v2678, %v2677
        %v2783 = vpack.c.b16 %v2680, %v2679
        %v2784 = vpack.c.b16 %v2682, %v2681
        %v2785 = vpack.c.b16 %v2684, %v2683
        %v2786 = vpack.c.b16 %v2686, %v2685
        %v2787 = vpack.c.b16 %v2688, %v2687
        %v2788 = vpack.c.b16 %v2690, %v2689
        %v2789 = vpack.c.b16 %v2692, %v2691
        %v2790 = vpack.c.b16 %v2694, %v2693
        %v2791 = vpack.c.b16 %v2696, %v2695
        %v2792 = vpack.c.b16 %v2698, %v2697
        %v2793 = vpack.c.b16 %v2700, %v2699
        %v2794 = vpack.c.b16 %v2702, %v2701
        %v2795 = vpack.c.b16 %v2704, %v2703
        %v2796 = vpack.c.b16 %v2706, %v2705
        %v2797 = vpack.c.b16 %v2708, %v2707
        %v2798 = vpack.c.b16 %v2710, %v2709
        %v2799 = vpack.c.b16 %v2712, %v2711
        %v2800 = vpack.c.b16 %v2714, %v2713
        %v2801 = vpack.c.b16 %v2716, %v2715
        %v2802 = vpack.c.b16 %v2718, %v2717
        %v2803 = vpack.c.b16 %v2720, %v2719
        %v2804 = vpack.c.b16 %v2722, %v2721
        %v2805 = vpack.c.b16 %v2724, %v2723
        %v2806 = vpack.c.b16 %v2726, %v2725
        %2887 = vmatpush.bf16.msra.mxu0 %v2734
        %2888 = vmatpush.bf16.msra.mxu0 %v2733
        %2889 = vmatpush.bf16.msra.mxu0 %v2732
        %2890 = vmatpush.bf16.msra.mxu0 %v2731
        %2891 = vmatpush.bf16.msra.mxu0 %v2730
        %2892 = vmatpush.bf16.msra.mxu0 %v2729
        %2893 = vmatpush.bf16.msra.mxu0 %v2728
        %2894 = vmatpush.bf16.msra.mxu0 %v2727
        %2895 = vmatmul.bf16.gmra.mxu0 %v749
        %v2896 = vpop.f32.mrf.mxu0
        %v2897 = vadd.f32 %v2406, %v2896
        %v2898 = vpop.f32.mrf.mxu0
        %2899 = vdwg.mxu0
        %2900 = vmatpush.bf16.msra.mxu0 %v2742
        %2901 = vmatpush.bf16.msra.mxu0 %v2741
        %2902 = vmatpush.bf16.msra.mxu0 %v2740
        %2903 = vmatpush.bf16.msra.mxu0 %v2739
        %2904 = vmatpush.bf16.msra.mxu0 %v2738
        %2905 = vmatpush.bf16.msra.mxu0 %v2737
        %2906 = vmatpush.bf16.msra.mxu0 %v2736
        %2907 = vmatpush.bf16.msra.mxu0 %v2735
        %2908 = vmatmul.bf16.gmra.mxu0 %v750
        %v2909 = vpop.f32.mrf.mxu0
        %v2910 = vadd.f32 %v2897, %v2909
        %v2911 = vpop.f32.mrf.mxu0
        %2912 = vdwg.mxu0
        %2913 = vmatpush.bf16.msra.mxu0 %v2750
        %2914 = vmatpush.bf16.msra.mxu0 %v2749
        %2915 = vmatpush.bf16.msra.mxu0 %v2748
        %2916 = vmatpush.bf16.msra.mxu0 %v2747
        %2917 = vmatpush.bf16.msra.mxu0 %v2746
        %2918 = vmatpush.bf16.msra.mxu0 %v2745
        %2919 = vmatpush.bf16.msra.mxu0 %v2744
        %2920 = vmatpush.bf16.msra.mxu0 %v2743
        %2921 = vmatmul.bf16.gmra.mxu0 %v751
        %v2922 = vpop.f32.mrf.mxu0
        %v2923 = vadd.f32 %v2910, %v2922
        %v2924 = vpop.f32.mrf.mxu0
        %2925 = vdwg.mxu0
        %2926 = vmatpush.bf16.msra.mxu0 %v2758
        %2927 = vmatpush.bf16.msra.mxu0 %v2757
        %2928 = vmatpush.bf16.msra.mxu0 %v2756
        %2929 = vmatpush.bf16.msra.mxu0 %v2755
        %2930 = vmatpush.bf16.msra.mxu0 %v2754
        %2931 = vmatpush.bf16.msra.mxu0 %v2753
        %2932 = vmatpush.bf16.msra.mxu0 %v2752
        %2933 = vmatpush.bf16.msra.mxu0 %v2751
        %2934 = vmatmul.bf16.gmra.mxu0 %v752
        %v2935 = vpop.f32.mrf.mxu0
        %v2936 = vadd.f32 %v2923, %v2935
        %v2937 = vpop.f32.mrf.mxu0
        %2938 = vdwg.mxu0
        %2939 = vmatpush.bf16.msra.mxu0 %v2766
        %2940 = vmatpush.bf16.msra.mxu0 %v2765
        %2941 = vmatpush.bf16.msra.mxu0 %v2764
        %2942 = vmatpush.bf16.msra.mxu0 %v2763
        %2943 = vmatpush.bf16.msra.mxu0 %v2762
        %2944 = vmatpush.bf16.msra.mxu0 %v2761
        %2945 = vmatpush.bf16.msra.mxu0 %v2760
        %2946 = vmatpush.bf16.msra.mxu0 %v2759
        %2947 = vmatmul.bf16.gmra.mxu0 %v753
        %v2948 = vpop.f32.mrf.mxu0
        %v2949 = vadd.f32 %v2936, %v2948
        %v2950 = vpop.f32.mrf.mxu0
        %2951 = vdwg.mxu0
        %2952 = vmatpush.bf16.msra.mxu0 %v2774
        %2953 = vmatpush.bf16.msra.mxu0 %v2773
        %2954 = vmatpush.bf16.msra.mxu0 %v2772
        %2955 = vmatpush.bf16.msra.mxu0 %v2771
        %2956 = vmatpush.bf16.msra.mxu0 %v2770
        %2957 = vmatpush.bf16.msra.mxu0 %v2769
        %2958 = vmatpush.bf16.msra.mxu0 %v2768
        %2959 = vmatpush.bf16.msra.mxu0 %v2767
        %2960 = vmatmul.bf16.gmra.mxu0 %v754
        %v2961 = vpop.f32.mrf.mxu0
        %v2962 = vadd.f32 %v2949, %v2961
        %v2963 = vpop.f32.mrf.mxu0
        %2964 = vdwg.mxu0
        %2965 = vmatpush.bf16.msra.mxu0 %v2782
        %2966 = vmatpush.bf16.msra.mxu0 %v2781
        %2967 = vmatpush.bf16.msra.mxu0 %v2780
        %2968 = vmatpush.bf16.msra.mxu0 %v2779
        %2969 = vmatpush.bf16.msra.mxu0 %v2778
        %2970 = vmatpush.bf16.msra.mxu0 %v2777
        %2971 = vmatpush.bf16.msra.mxu0 %v2776
        %2972 = vmatpush.bf16.msra.mxu0 %v2775
        %2973 = vmatmul.bf16.gmra.mxu0 %v755
        %v2974 = vpop.f32.mrf.mxu0
        %v2975 = vadd.f32 %v2962, %v2974
        %v2976 = vpop.f32.mrf.mxu0
        %2977 = vdwg.mxu0
        %2978 = vmatpush.bf16.msra.mxu0 %v2790
        %2979 = vmatpush.bf16.msra.mxu0 %v2789
        %2980 = vmatpush.bf16.msra.mxu0 %v2788
        %2981 = vmatpush.bf16.msra.mxu0 %v2787
        %2982 = vmatpush.bf16.msra.mxu0 %v2786
        %2983 = vmatpush.bf16.msra.mxu0 %v2785
        %2984 = vmatpush.bf16.msra.mxu0 %v2784
        %2985 = vmatpush.bf16.msra.mxu0 %v2783
        %2986 = vmatmul.bf16.gmra.mxu0 %v756
        %v2987 = vpop.f32.mrf.mxu0
        %v2988 = vadd.f32 %v2975, %v2987
        %v2989 = vpop.f32.mrf.mxu0
        %2990 = vdwg.mxu0
        %2991 = vmatpush.bf16.msra.mxu0 %v2798
        %2992 = vmatpush.bf16.msra.mxu0 %v2797
        %2993 = vmatpush.bf16.msra.mxu0 %v2796
        %2994 = vmatpush.bf16.msra.mxu0 %v2795
        %2995 = vmatpush.bf16.msra.mxu0 %v2794
        %2996 = vmatpush.bf16.msra.mxu0 %v2793
        %2997 = vmatpush.bf16.msra.mxu0 %v2792
        %2998 = vmatpush.bf16.msra.mxu0 %v2791
        %2999 = vmatmul.bf16.gmra.mxu0 %v757
        %v3000 = vpop.f32.mrf.mxu0
        %v3001 = vadd.f32 %v2988, %v3000
        %v3002 = vpop.f32.mrf.mxu0
        %3003 = vdwg.mxu0
        %3004 = vmatpush.bf16.msra.mxu0 %v2806
        %3005 = vmatpush.bf16.msra.mxu0 %v2805
        %3006 = vmatpush.bf16.msra.mxu0 %v2804
        %3007 = vmatpush.bf16.msra.mxu0 %v2803
        %3008 = vmatpush.bf16.msra.mxu0 %v2802
        %3009 = vmatpush.bf16.msra.mxu0 %v2801
        %3010 = vmatpush.bf16.msra.mxu0 %v2800
        %3011 = vmatpush.bf16.msra.mxu0 %v2799
        %3012 = vmatmul.bf16.gmra.mxu0 %v758
        %v3013 = vpop.f32.mrf.mxu0
        %v3014 = vadd.f32 %v3001, %v3013
        %v3015 = vpop.f32.mrf.mxu0
        %3016 = vdwg.mxu0
        %v3017 = vmax.f32 %v3014, 0.0
        %3018 = vadd.xlane.f32.xlu0 %v3017
        %v3019 = vpop.xlane.xlu0 %3018
        %v3020 = vrcp.pop 128.0
        %v3021 = vmul.f32 128.0, %v3020
        %v3022 = vsub.f32 1.0, %v3021
        %v3023 = vmul.f32 %v3020, %v3022
        %v3024 = vadd.f32 %v3020, %v3023
        %vm3025 = vweird.f32 %v3020
        %v3026 = vsel %vm3025, %v3020, %v3024
        %v3027 = vmul.f32 %v3019, %v3026
        %v3028 = vsub.f32 %v3017, %v3027
        %v3029 = vmul.f32 %v3028, %v3028
        %3030 = vadd.xlane.f32.xlu0 %v3029
        %v3031 = vpop.xlane.xlu0 %3030
        %v3032 = vmul.f32 %v3031, %v3026
        %v3033 = vadd.f32 %v3032, 1e-05
        %v3034 = vrsqrt.pop %v3033
        %v3035 = vmul.f32 %v3034, %v3033
        %v3036 = vmul.f32 %v3035, %v3034
        %v3037 = vmul.f32 0.5, %v3036
        %v3038 = vsub.f32 1.5, %v3037
        %v3039 = vmul.f32 %v3034, %v3038
        %vm3040 = vweird.f32 %v3033
        %vm3041 = vweird.f32 %v3034
        %vm3042 = vmor %vm3040, %vm3041
        %v3043 = vsel %vm3042, %v3034, %v3039
        %v3044 = vmul.f32 %v3028, %v3043
        %v3045 = vperm.slane %v2405, 1
        %v3046 = vmul.f32 %v3044, %v3045
        %v3047 = vperm.slane %v2405, 2
        %v3048 = vadd.f32 %v3046, %v3047
        %v3049 = vpack.c.bf16 %v3048, %v3048
        %v3050 = vld [vmem:[%s8] sm:$0xf]
        %v3051 = vld [vmem:[%s8 + $0x4] sm:$0xf]
        %v3052 = vld [vmem:[%s8 + $0x8] sm:$0xf]
        %v3053 = vld [vmem:[%s8 + $0xc] sm:$0xf]
        %v3054 = vld [vmem:[%s8 + $0x10] sm:$0xf]
        %v3055 = vld [vmem:[%s8 + $0x14] sm:$0xf]
        %v3056 = vld [vmem:[%s8 + $0x18] sm:$0xf]
        %v3057 = vld [vmem:[%s8 + $0x1c] sm:$0xf]
        %v3058 = vld [vmem:[%s8 + $0x20] sm:$0xf]
        %v3059 = vld [vmem:[%s8 + $0x24] sm:$0xf]
        %v3060 = vld [vmem:[%s8 + $0x28] sm:$0xf]
        %v3061 = vld [vmem:[%s8 + $0x2c] sm:$0xf]
        %v3062 = vld [vmem:[%s8 + $0x30] sm:$0xf]
        %v3063 = vld [vmem:[%s8 + $0x34] sm:$0xf]
        %v3064 = vld [vmem:[%s8 + $0x38] sm:$0xf]
        %v3065 = vld [vmem:[%s8 + $0x3c] sm:$0xf]
        %v3066 = vld [vmem:[%s9] sm:$0xf]
        %v3067 = vld [vmem:[%s9 + $0x4] sm:$0xf]
        %v3068 = vld [vmem:[%s9 + $0x8] sm:$0xf]
        %v3069 = vld [vmem:[%s9 + $0xc] sm:$0xf]
        %v3070 = vld [vmem:[%s9 + $0x10] sm:$0xf]
        %v3071 = vld [vmem:[%s9 + $0x14] sm:$0xf]
        %v3072 = vld [vmem:[%s9 + $0x18] sm:$0xf]
        %v3073 = vld [vmem:[%s9 + $0x1c] sm:$0xf]
        %v3074 = vld [vmem:[%s9 + $0x20] sm:$0xf]
        %v3075 = vld [vmem:[%s9 + $0x24] sm:$0xf]
        %v3076 = vld [vmem:[%s9 + $0x28] sm:$0xf]
        %v3077 = vld [vmem:[%s9 + $0x2c] sm:$0xf]
        %v3078 = vld [vmem:[%s9 + $0x30] sm:$0xf]
        %v3079 = vld [vmem:[%s9 + $0x34] sm:$0xf]
        %v3080 = vld [vmem:[%s9 + $0x38] sm:$0xf]
        %v3081 = vld [vmem:[%s9 + $0x3c] sm:$0xf]
        %v3082 = vld [vmem:[%s9 + $0x40] sm:$0xf]
        %v3083 = vld [vmem:[%s9 + $0x44] sm:$0xf]
        %v3084 = vld [vmem:[%s9 + $0x48] sm:$0xf]
        %v3085 = vld [vmem:[%s9 + $0x4c] sm:$0xf]
        %v3086 = vld [vmem:[%s9 + $0x50] sm:$0xf]
        %v3087 = vld [vmem:[%s9 + $0x54] sm:$0xf]
        %v3088 = vld [vmem:[%s9 + $0x58] sm:$0xf]
        %v3089 = vld [vmem:[%s9 + $0x5c] sm:$0xf]
        %v3090 = vld [vmem:[%s9 + $0x60] sm:$0xf]
        %v3091 = vld [vmem:[%s9 + $0x64] sm:$0xf]
        %v3092 = vld [vmem:[%s9 + $0x68] sm:$0xf]
        %v3093 = vld [vmem:[%s9 + $0x6c] sm:$0xf]
        %v3094 = vld [vmem:[%s9 + $0x70] sm:$0xf]
        %v3095 = vld [vmem:[%s9 + $0x74] sm:$0xf]
        %v3096 = vld [vmem:[%s9 + $0x78] sm:$0xf]
        %v3097 = vld [vmem:[%s9 + $0x7c] sm:$0xf]
        %v3098 = vld [vmem:[%s9 + $0x80] sm:$0xf]
        %v3099 = vld [vmem:[%s9 + $0x84] sm:$0xf]
        %v3100 = vld [vmem:[%s9 + $0x88] sm:$0xf]
        %v3101 = vld [vmem:[%s9 + $0x8c] sm:$0xf]
        %v3102 = vld [vmem:[%s9 + $0x90] sm:$0xf]
        %v3103 = vld [vmem:[%s9 + $0x94] sm:$0xf]
        %v3104 = vld [vmem:[%s9 + $0x98] sm:$0xf]
        %v3105 = vld [vmem:[%s9 + $0x9c] sm:$0xf]
        %v3106 = vld [vmem:[%s9 + $0xa0] sm:$0xf]
        %v3107 = vld [vmem:[%s9 + $0xa4] sm:$0xf]
        %v3108 = vld [vmem:[%s9 + $0xa8] sm:$0xf]
        %v3109 = vld [vmem:[%s9 + $0xac] sm:$0xf]
        %v3110 = vld [vmem:[%s9 + $0xb0] sm:$0xf]
        %v3111 = vld [vmem:[%s9 + $0xb4] sm:$0xf]
        %v3112 = vld [vmem:[%s9 + $0xb8] sm:$0xf]
        %v3113 = vld [vmem:[%s9 + $0xbc] sm:$0xf]
        %v3114 = vld [vmem:[%s9 + $0xc0] sm:$0xf]
        %v3115 = vld [vmem:[%s9 + $0xc4] sm:$0xf]
        %v3116 = vld [vmem:[%s9 + $0xc8] sm:$0xf]
        %v3117 = vld [vmem:[%s9 + $0xcc] sm:$0xf]
        %v3118 = vld [vmem:[%s9 + $0xd0] sm:$0xf]
        %v3119 = vld [vmem:[%s9 + $0xd4] sm:$0xf]
        %v3120 = vld [vmem:[%s9 + $0xd8] sm:$0xf]
        %v3121 = vld [vmem:[%s9 + $0xdc] sm:$0xf]
        %v3122 = vld [vmem:[%s9 + $0xe0] sm:$0xf]
        %v3123 = vld [vmem:[%s9 + $0xe4] sm:$0xf]
        %v3124 = vld [vmem:[%s9 + $0xe8] sm:$0xf]
        %v3125 = vld [vmem:[%s9 + $0xec] sm:$0xf]
        %v3126 = vld [vmem:[%s9 + $0xf0] sm:$0xf]
        %v3127 = vld [vmem:[%s9 + $0xf4] sm:$0xf]
        %v3128 = vld [vmem:[%s9 + $0xf8] sm:$0xf]
        %v3129 = vld [vmem:[%s9 + $0xfc] sm:$0xf]
        %v3130 = vld [vmem:[%s9 + $0x100] sm:$0xf]
        %v3131 = vld [vmem:[%s9 + $0x104] sm:$0xf]
        %v3132 = vld [vmem:[%s9 + $0x108] sm:$0xf]
        %v3133 = vld [vmem:[%s9 + $0x10c] sm:$0xf]
        %v3134 = vld [vmem:[%s9 + $0x110] sm:$0xf]
        %v3135 = vld [vmem:[%s9 + $0x114] sm:$0xf]
        %v3136 = vld [vmem:[%s9 + $0x118] sm:$0xf]
        %v3137 = vld [vmem:[%s9 + $0x11c] sm:$0xf]
        %v3138 = vld [vmem:[%s9 + $0x120] sm:$0xf]
        %v3139 = vld [vmem:[%s9 + $0x124] sm:$0xf]
        %v3140 = vld [vmem:[%s9 + $0x128] sm:$0xf]
        %v3141 = vld [vmem:[%s9 + $0x12c] sm:$0xf]
        %v3142 = vld [vmem:[%s9 + $0x130] sm:$0xf]
        %v3143 = vld [vmem:[%s9 + $0x134] sm:$0xf]
        %v3144 = vld [vmem:[%s9 + $0x138] sm:$0xf]
        %v3145 = vld [vmem:[%s9 + $0x13c] sm:$0xf]
        %v3146 = vld [vmem:[%s9 + $0x140] sm:$0xf]
        %v3147 = vld [vmem:[%s9 + $0x144] sm:$0xf]
        %v3148 = vld [vmem:[%s9 + $0x148] sm:$0xf]
        %v3149 = vld [vmem:[%s9 + $0x14c] sm:$0xf]
        %v3150 = vld [vmem:[%s9 + $0x150] sm:$0xf]
        %v3151 = vld [vmem:[%s9 + $0x154] sm:$0xf]
        %v3152 = vld [vmem:[%s9 + $0x158] sm:$0xf]
        %v3153 = vld [vmem:[%s9 + $0x15c] sm:$0xf]
        %v3154 = vld [vmem:[%s9 + $0x160] sm:$0xf]
        %v3155 = vld [vmem:[%s9 + $0x164] sm:$0xf]
        %v3156 = vld [vmem:[%s9 + $0x168] sm:$0xf]
        %v3157 = vld [vmem:[%s9 + $0x16c] sm:$0xf]
        %v3158 = vld [vmem:[%s9 + $0x170] sm:$0xf]
        %v3159 = vld [vmem:[%s9 + $0x174] sm:$0xf]
        %v3160 = vld [vmem:[%s9 + $0x178] sm:$0xf]
        %v3161 = vld [vmem:[%s9 + $0x17c] sm:$0xf]
        %v3162 = vld [vmem:[%s9 + $0x180] sm:$0xf]
        %v3163 = vld [vmem:[%s9 + $0x184] sm:$0xf]
        %v3164 = vld [vmem:[%s9 + $0x188] sm:$0xf]
        %v3165 = vld [vmem:[%s9 + $0x18c] sm:$0xf]
        %v3166 = vld [vmem:[%s9 + $0x190] sm:$0xf]
        %v3167 = vld [vmem:[%s9 + $0x194] sm:$0xf]
        %v3168 = vld [vmem:[%s9 + $0x198] sm:$0xf]
        %v3169 = vld [vmem:[%s9 + $0x19c] sm:$0xf]
        %v3170 = vld [vmem:[%s9 + $0x1a0] sm:$0xf]
        %v3171 = vld [vmem:[%s9 + $0x1a4] sm:$0xf]
        %v3172 = vld [vmem:[%s9 + $0x1a8] sm:$0xf]
        %v3173 = vld [vmem:[%s9 + $0x1ac] sm:$0xf]
        %v3174 = vld [vmem:[%s9 + $0x1b0] sm:$0xf]
        %v3175 = vld [vmem:[%s9 + $0x1b4] sm:$0xf]
        %v3176 = vld [vmem:[%s9 + $0x1b8] sm:$0xf]
        %v3177 = vld [vmem:[%s9 + $0x1bc] sm:$0xf]
        %v3178 = vld [vmem:[%s9 + $0x1c0] sm:$0xf]
        %v3179 = vld [vmem:[%s9 + $0x1c4] sm:$0xf]
        %v3180 = vld [vmem:[%s9 + $0x1c8] sm:$0xf]
        %v3181 = vld [vmem:[%s9 + $0x1cc] sm:$0xf]
        %v3182 = vld [vmem:[%s9 + $0x1d0] sm:$0xf]
        %v3183 = vld [vmem:[%s9 + $0x1d4] sm:$0xf]
        %v3184 = vld [vmem:[%s9 + $0x1d8] sm:$0xf]
        %v3185 = vld [vmem:[%s9 + $0x1dc] sm:$0xf]
        %v3186 = vld [vmem:[%s9 + $0x1e0] sm:$0xf]
        %v3187 = vld [vmem:[%s9 + $0x1e4] sm:$0xf]
        %v3188 = vld [vmem:[%s9 + $0x1e8] sm:$0xf]
        %v3189 = vld [vmem:[%s9 + $0x1ec] sm:$0xf]
        %v3190 = vld [vmem:[%s9 + $0x1f0] sm:$0xf]
        %v3191 = vld [vmem:[%s9 + $0x1f4] sm:$0xf]
        %v3192 = vld [vmem:[%s9 + $0x1f8] sm:$0xf]
        %v3193 = vld [vmem:[%s9 + $0x1fc] sm:$0xf]
        %v3194 = vld [vmem:[%s9 + $0x200] sm:$0xf]
        %v3195 = vld [vmem:[%s9 + $0x204] sm:$0xf]
        %v3196 = vld [vmem:[%s9 + $0x208] sm:$0xf]
        %v3197 = vld [vmem:[%s9 + $0x20c] sm:$0xf]
        %v3198 = vld [vmem:[%s9 + $0x210] sm:$0xf]
        %v3199 = vld [vmem:[%s9 + $0x214] sm:$0xf]
        %v3200 = vld [vmem:[%s9 + $0x218] sm:$0xf]
        %v3201 = vld [vmem:[%s9 + $0x21c] sm:$0xf]
        %v3202 = vld [vmem:[%s9 + $0x220] sm:$0xf]
        %v3203 = vld [vmem:[%s9 + $0x224] sm:$0xf]
        %v3204 = vld [vmem:[%s9 + $0x228] sm:$0xf]
        %v3205 = vld [vmem:[%s9 + $0x22c] sm:$0xf]
        %v3206 = vld [vmem:[%s9 + $0x230] sm:$0xf]
        %v3207 = vld [vmem:[%s9 + $0x234] sm:$0xf]
        %v3208 = vld [vmem:[%s9 + $0x238] sm:$0xf]
        %v3209 = vld [vmem:[%s9 + $0x23c] sm:$0xf]
        %v3210 = vld [vmem:[%s9 + $0x240] sm:$0xf]
        %v3211 = vld [vmem:[%s9 + $0x244] sm:$0xf]
        %v3212 = vld [vmem:[%s9 + $0x248] sm:$0xf]
        %v3213 = vld [vmem:[%s9 + $0x24c] sm:$0xf]
        %v3214 = vld [vmem:[%s9 + $0x250] sm:$0xf]
        %v3215 = vld [vmem:[%s9 + $0x254] sm:$0xf]
        %v3216 = vld [vmem:[%s9 + $0x258] sm:$0xf]
        %v3217 = vld [vmem:[%s9 + $0x25c] sm:$0xf]
        %v3218 = vld [vmem:[%s9 + $0x260] sm:$0xf]
        %v3219 = vld [vmem:[%s9 + $0x264] sm:$0xf]
        %v3220 = vld [vmem:[%s9 + $0x268] sm:$0x3]
        %v3376 = vunpack.c.l.b16 %v3066
        %v3377 = vunpack.c.l.b16 %v3067
        %v3378 = vunpack.c.l.b16 %v3068
        %v3379 = vunpack.c.l.b16 %v3069
        %v3380 = vunpack.c.l.b16 %v3070
        %v3381 = vunpack.c.l.b16 %v3071
        %v3382 = vunpack.c.l.b16 %v3072
        %v3383 = vunpack.c.l.b16 %v3073
        %v3384 = vunpack.c.l.b16 %v3074
        %v3385 = vunpack.c.l.b16 %v3075
        %v3386 = vunpack.c.l.b16 %v3076
        %v3387 = vunpack.c.l.b16 %v3077
        %v3388 = vunpack.c.l.b16 %v3078
        %v3389 = vunpack.c.l.b16 %v3079
        %v3390 = vunpack.c.l.b16 %v3080
        %v3391 = vunpack.c.l.b16 %v3081
        %v3392 = vunpack.c.l.b16 %v3082
        %v3393 = vunpack.c.l.b16 %v3083
        %v3394 = vunpack.c.l.b16 %v3084
        %v3395 = vunpack.c.l.b16 %v3085
        %v3396 = vunpack.c.l.b16 %v3086
        %v3397 = vunpack.c.l.b16 %v3087
        %v3398 = vunpack.c.l.b16 %v3088
        %v3399 = vunpack.c.l.b16 %v3089
        %v3400 = vunpack.c.l.b16 %v3090
        %v3401 = vunpack.c.l.b16 %v3091
        %v3402 = vunpack.c.l.b16 %v3092
        %v3403 = vunpack.c.l.b16 %v3093
        %v3404 = vunpack.c.l.b16 %v3094
        %v3405 = vunpack.c.l.b16 %v3095
        %v3406 = vunpack.c.l.b16 %v3096
        %v3407 = vunpack.c.l.b16 %v3097
        %v3408 = vunpack.c.l.b16 %v3098
        %v3409 = vunpack.c.l.b16 %v3099
        %v3410 = vunpack.c.l.b16 %v3100
        %v3411 = vunpack.c.l.b16 %v3101
        %v3412 = vunpack.c.l.b16 %v3102
        %v3413 = vunpack.c.l.b16 %v3103
        %v3414 = vunpack.c.l.b16 %v3104
        %v3415 = vunpack.c.l.b16 %v3105
        %v3416 = vunpack.c.l.b16 %v3106
        %v3417 = vunpack.c.l.b16 %v3107
        %v3418 = vunpack.c.l.b16 %v3108
        %v3419 = vunpack.c.l.b16 %v3109
        %v3420 = vunpack.c.l.b16 %v3110
        %v3421 = vunpack.c.l.b16 %v3111
        %v3422 = vunpack.c.l.b16 %v3112
        %v3423 = vunpack.c.l.b16 %v3113
        %v3424 = vunpack.c.l.b16 %v3114
        %v3425 = vunpack.c.l.b16 %v3115
        %v3426 = vunpack.c.l.b16 %v3116
        %v3427 = vunpack.c.l.b16 %v3117
        %v3428 = vunpack.c.l.b16 %v3118
        %v3429 = vunpack.c.l.b16 %v3119
        %v3430 = vunpack.c.l.b16 %v3120
        %v3431 = vunpack.c.l.b16 %v3121
        %v3432 = vunpack.c.l.b16 %v3122
        %v3433 = vunpack.c.l.b16 %v3123
        %v3434 = vunpack.c.l.b16 %v3124
        %v3435 = vunpack.c.l.b16 %v3125
        %v3436 = vunpack.c.l.b16 %v3126
        %v3437 = vunpack.c.l.b16 %v3127
        %v3438 = vunpack.c.l.b16 %v3128
        %v3439 = vunpack.c.l.b16 %v3129
        %v3440 = vunpack.c.l.b16 %v3130
        %v3441 = vunpack.c.l.b16 %v3131
        %v3442 = vunpack.c.l.b16 %v3132
        %v3443 = vunpack.c.l.b16 %v3133
        %v3444 = vunpack.c.l.b16 %v3134
        %v3445 = vunpack.c.l.b16 %v3135
        %v3446 = vunpack.c.l.b16 %v3136
        %v3447 = vunpack.c.l.b16 %v3137
        %v3448 = vunpack.c.l.b16 %v3138
        %v3449 = vunpack.c.l.b16 %v3139
        %v3450 = vunpack.c.l.b16 %v3140
        %v3451 = vunpack.c.l.b16 %v3141
        %v3452 = vunpack.c.l.b16 %v3142
        %v3453 = vunpack.c.l.b16 %v3143
        %v3454 = vunpack.c.l.b16 %v3144
        %v3455 = vunpack.c.l.b16 %v3145
        %v3456 = vunpack.c.l.b16 %v3146
        %v3457 = vunpack.c.l.b16 %v3147
        %v3458 = vunpack.c.l.b16 %v3148
        %v3459 = vunpack.c.l.b16 %v3149
        %v3460 = vunpack.c.l.b16 %v3150
        %v3461 = vunpack.c.l.b16 %v3151
        %v3462 = vunpack.c.l.b16 %v3152
        %v3463 = vunpack.c.l.b16 %v3153
        %v3464 = vunpack.c.l.b16 %v3154
        %v3465 = vunpack.c.l.b16 %v3155
        %v3466 = vunpack.c.l.b16 %v3156
        %v3467 = vunpack.c.l.b16 %v3157
        %v3468 = vunpack.c.l.b16 %v3158
        %v3469 = vunpack.c.l.b16 %v3159
        %v3470 = vunpack.c.l.b16 %v3160
        %v3471 = vunpack.c.l.b16 %v3161
        %v3472 = vunpack.c.l.b16 %v3162
        %v3473 = vunpack.c.l.b16 %v3163
        %v3474 = vunpack.c.l.b16 %v3164
        %v3475 = vunpack.c.l.b16 %v3165
        %v3476 = vunpack.c.l.b16 %v3166
        %v3477 = vunpack.c.l.b16 %v3167
        %v3478 = vunpack.c.l.b16 %v3168
        %v3479 = vunpack.c.l.b16 %v3169
        %v3480 = vunpack.c.l.b16 %v3170
        %v3481 = vunpack.c.l.b16 %v3171
        %v3482 = vunpack.c.l.b16 %v3172
        %v3483 = vunpack.c.l.b16 %v3173
        %v3484 = vunpack.c.l.b16 %v3174
        %v3485 = vunpack.c.l.b16 %v3175
        %v3486 = vunpack.c.l.b16 %v3176
        %v3487 = vunpack.c.l.b16 %v3177
        %v3488 = vunpack.c.l.b16 %v3178
        %v3489 = vunpack.c.l.b16 %v3179
        %v3490 = vunpack.c.l.b16 %v3180
        %v3491 = vunpack.c.l.b16 %v3181
        %v3492 = vunpack.c.l.b16 %v3182
        %v3493 = vunpack.c.l.b16 %v3183
        %v3494 = vunpack.c.l.b16 %v3184
        %v3495 = vunpack.c.l.b16 %v3185
        %v3496 = vunpack.c.l.b16 %v3186
        %v3497 = vunpack.c.l.b16 %v3187
        %v3498 = vunpack.c.l.b16 %v3188
        %v3499 = vunpack.c.l.b16 %v3189
        %v3500 = vunpack.c.l.b16 %v3190
        %v3501 = vunpack.c.l.b16 %v3191
        %v3502 = vunpack.c.l.b16 %v3192
        %v3503 = vunpack.c.l.b16 %v3193
        %v3504 = vunpack.c.l.b16 %v3194
        %v3505 = vunpack.c.l.b16 %v3195
        %v3506 = vunpack.c.l.b16 %v3196
        %v3507 = vunpack.c.l.b16 %v3197
        %v3508 = vunpack.c.l.b16 %v3198
        %v3509 = vunpack.c.l.b16 %v3199
        %v3510 = vunpack.c.l.b16 %v3200
        %v3511 = vunpack.c.l.b16 %v3201
        %v3512 = vunpack.c.l.b16 %v3202
        %v3513 = vunpack.c.l.b16 %v3203
        %v3514 = vunpack.c.l.b16 %v3204
        %v3515 = vunpack.c.l.b16 %v3205
        %v3516 = vunpack.c.l.b16 %v3206
        %v3517 = vunpack.c.l.b16 %v3207
        %v3518 = vunpack.c.l.b16 %v3208
        %v3519 = vunpack.c.l.b16 %v3209
        %v3520 = vunpack.c.l.b16 %v3210
        %v3521 = vunpack.c.l.b16 %v3211
        %v3522 = vunpack.c.l.b16 %v3212
        %v3523 = vunpack.c.l.b16 %v3213
        %v3524 = vunpack.c.l.b16 %v3214
        %v3525 = vunpack.c.l.b16 %v3215
        %v3526 = vunpack.c.l.b16 %v3216
        %v3527 = vunpack.c.l.b16 %v3217
        %v3528 = vunpack.c.l.b16 %v3218
        %v3529 = vunpack.c.l.b16 %v3219
        %v3530 = vunpack.c.l.b16 %v3220
        %v3531 = vpack.c.b16 %v3377, %v3376
        %v3532 = vpack.c.b16 %v3379, %v3378
        %v3533 = vpack.c.b16 %v3381, %v3380
        %v3534 = vpack.c.b16 %v3383, %v3382
        %v3535 = vpack.c.b16 %v3385, %v3384
        %v3536 = vpack.c.b16 %v3387, %v3386
        %v3537 = vpack.c.b16 %v3389, %v3388
        %v3538 = vpack.c.b16 %v3391, %v3390
        %v3539 = vpack.c.b16 %v3393, %v3392
        %v3540 = vpack.c.b16 %v3395, %v3394
        %v3541 = vpack.c.b16 %v3397, %v3396
        %v3542 = vpack.c.b16 %v3399, %v3398
        %v3543 = vpack.c.b16 %v3401, %v3400
        %v3544 = vpack.c.b16 %v3403, %v3402
        %v3545 = vpack.c.b16 %v3405, %v3404
        %v3546 = vpack.c.b16 %v3407, %v3406
        %v3547 = vpack.c.b16 %v3409, %v3408
        %v3548 = vpack.c.b16 %v3411, %v3410
        %v3549 = vpack.c.b16 %v3413, %v3412
        %v3550 = vpack.c.b16 %v3415, %v3414
        %v3551 = vpack.c.b16 %v3417, %v3416
        %v3552 = vpack.c.b16 %v3419, %v3418
        %v3553 = vpack.c.b16 %v3421, %v3420
        %v3554 = vpack.c.b16 %v3423, %v3422
        %v3555 = vpack.c.b16 %v3425, %v3424
        %v3556 = vpack.c.b16 %v3427, %v3426
        %v3557 = vpack.c.b16 %v3429, %v3428
        %v3558 = vpack.c.b16 %v3431, %v3430
        %v3559 = vpack.c.b16 %v3433, %v3432
        %v3560 = vpack.c.b16 %v3435, %v3434
        %v3561 = vpack.c.b16 %v3437, %v3436
        %v3562 = vpack.c.b16 %v3439, %v3438
        %v3563 = vpack.c.b16 %v3441, %v3440
        %v3564 = vpack.c.b16 %v3443, %v3442
        %v3565 = vpack.c.b16 %v3445, %v3444
        %v3566 = vpack.c.b16 %v3447, %v3446
        %v3567 = vpack.c.b16 %v3449, %v3448
        %v3568 = vpack.c.b16 %v3451, %v3450
        %v3569 = vpack.c.b16 %v3453, %v3452
        %v3570 = vpack.c.b16 %v3455, %v3454
        %v3571 = vpack.c.b16 %v3457, %v3456
        %v3572 = vpack.c.b16 %v3459, %v3458
        %v3573 = vpack.c.b16 %v3461, %v3460
        %v3574 = vpack.c.b16 %v3463, %v3462
        %v3575 = vpack.c.b16 %v3465, %v3464
        %v3576 = vpack.c.b16 %v3467, %v3466
        %v3577 = vpack.c.b16 %v3469, %v3468
        %v3578 = vpack.c.b16 %v3471, %v3470
        %v3579 = vpack.c.b16 %v3473, %v3472
        %v3580 = vpack.c.b16 %v3475, %v3474
        %v3581 = vpack.c.b16 %v3477, %v3476
        %v3582 = vpack.c.b16 %v3479, %v3478
        %v3583 = vpack.c.b16 %v3481, %v3480
        %v3584 = vpack.c.b16 %v3483, %v3482
        %v3585 = vpack.c.b16 %v3485, %v3484
        %v3586 = vpack.c.b16 %v3487, %v3486
        %v3587 = vpack.c.b16 %v3489, %v3488
        %v3588 = vpack.c.b16 %v3491, %v3490
        %v3589 = vpack.c.b16 %v3493, %v3492
        %v3590 = vpack.c.b16 %v3495, %v3494
        %v3591 = vpack.c.b16 %v3497, %v3496
        %v3592 = vpack.c.b16 %v3499, %v3498
        %v3593 = vpack.c.b16 %v3501, %v3500
        %v3594 = vpack.c.b16 %v3503, %v3502
        %v3595 = vpack.c.b16 %v3505, %v3504
        %v3596 = vpack.c.b16 %v3507, %v3506
        %v3597 = vpack.c.b16 %v3509, %v3508
        %v3598 = vpack.c.b16 %v3511, %v3510
        %v3599 = vpack.c.b16 %v3513, %v3512
        %v3600 = vpack.c.b16 %v3515, %v3514
        %v3601 = vpack.c.b16 %v3517, %v3516
        %v3602 = vpack.c.b16 %v3519, %v3518
        %v3603 = vpack.c.b16 %v3521, %v3520
        %v3604 = vpack.c.b16 %v3523, %v3522
        %v3605 = vpack.c.b16 %v3525, %v3524
        %v3606 = vpack.c.b16 %v3527, %v3526
        %v3607 = vpack.c.b16 %v3529, %v3528
        %v3608 = vpack.c.b16 %v3530, %v3530
        %v3687 = vand.u32 %v3608, %v2077
        %3689 = vmatpush.bf16.msra.mxu0 %v3538
        %3690 = vmatpush.bf16.msra.mxu0 %v3537
        %3691 = vmatpush.bf16.msra.mxu0 %v3536
        %3692 = vmatpush.bf16.msra.mxu0 %v3535
        %3693 = vmatpush.bf16.msra.mxu0 %v3534
        %3694 = vmatpush.bf16.msra.mxu0 %v3533
        %3695 = vmatpush.bf16.msra.mxu0 %v3532
        %3696 = vmatpush.bf16.msra.mxu0 %v3531
        %3697 = vmatmul.bf16.gmra.mxu0 %v1586
        %v3698 = vpop.f32.mrf.mxu0
        %v3699 = vadd.f32 0.0, %v3698
        %v3700 = vpop.f32.mrf.mxu0
        %3701 = vdwg.mxu0
        %3702 = vmatpush.bf16.msra.mxu0 %v3546
        %3703 = vmatpush.bf16.msra.mxu0 %v3545
        %3704 = vmatpush.bf16.msra.mxu0 %v3544
        %3705 = vmatpush.bf16.msra.mxu0 %v3543
        %3706 = vmatpush.bf16.msra.mxu0 %v3542
        %3707 = vmatpush.bf16.msra.mxu0 %v3541
        %3708 = vmatpush.bf16.msra.mxu0 %v3540
        %3709 = vmatpush.bf16.msra.mxu0 %v3539
        %3710 = vmatmul.bf16.gmra.mxu0 %v1587
        %v3711 = vpop.f32.mrf.mxu0
        %v3712 = vadd.f32 %v3699, %v3711
        %v3713 = vpop.f32.mrf.mxu0
        %3714 = vdwg.mxu0
        %3715 = vmatpush.bf16.msra.mxu0 %v3554
        %3716 = vmatpush.bf16.msra.mxu0 %v3553
        %3717 = vmatpush.bf16.msra.mxu0 %v3552
        %3718 = vmatpush.bf16.msra.mxu0 %v3551
        %3719 = vmatpush.bf16.msra.mxu0 %v3550
        %3720 = vmatpush.bf16.msra.mxu0 %v3549
        %3721 = vmatpush.bf16.msra.mxu0 %v3548
        %3722 = vmatpush.bf16.msra.mxu0 %v3547
        %3723 = vmatmul.bf16.gmra.mxu0 %v1588
        %v3724 = vpop.f32.mrf.mxu0
        %v3725 = vadd.f32 %v3712, %v3724
        %v3726 = vpop.f32.mrf.mxu0
        %3727 = vdwg.mxu0
        %3728 = vmatpush.bf16.msra.mxu0 %v3562
        %3729 = vmatpush.bf16.msra.mxu0 %v3561
        %3730 = vmatpush.bf16.msra.mxu0 %v3560
        %3731 = vmatpush.bf16.msra.mxu0 %v3559
        %3732 = vmatpush.bf16.msra.mxu0 %v3558
        %3733 = vmatpush.bf16.msra.mxu0 %v3557
        %3734 = vmatpush.bf16.msra.mxu0 %v3556
        %3735 = vmatpush.bf16.msra.mxu0 %v3555
        %3736 = vmatmul.bf16.gmra.mxu0 %v1589
        %v3737 = vpop.f32.mrf.mxu0
        %v3738 = vadd.f32 %v3725, %v3737
        %v3739 = vpop.f32.mrf.mxu0
        %3740 = vdwg.mxu0
        %3741 = vmatpush.bf16.msra.mxu0 %v3570
        %3742 = vmatpush.bf16.msra.mxu0 %v3569
        %3743 = vmatpush.bf16.msra.mxu0 %v3568
        %3744 = vmatpush.bf16.msra.mxu0 %v3567
        %3745 = vmatpush.bf16.msra.mxu0 %v3566
        %3746 = vmatpush.bf16.msra.mxu0 %v3565
        %3747 = vmatpush.bf16.msra.mxu0 %v3564
        %3748 = vmatpush.bf16.msra.mxu0 %v3563
        %3749 = vmatmul.bf16.gmra.mxu0 %v1590
        %v3750 = vpop.f32.mrf.mxu0
        %v3751 = vadd.f32 %v3738, %v3750
        %v3752 = vpop.f32.mrf.mxu0
        %3753 = vdwg.mxu0
        %3754 = vmatpush.bf16.msra.mxu0 %v3578
        %3755 = vmatpush.bf16.msra.mxu0 %v3577
        %3756 = vmatpush.bf16.msra.mxu0 %v3576
        %3757 = vmatpush.bf16.msra.mxu0 %v3575
        %3758 = vmatpush.bf16.msra.mxu0 %v3574
        %3759 = vmatpush.bf16.msra.mxu0 %v3573
        %3760 = vmatpush.bf16.msra.mxu0 %v3572
        %3761 = vmatpush.bf16.msra.mxu0 %v3571
        %3762 = vmatmul.bf16.gmra.mxu0 %v1591
        %v3763 = vpop.f32.mrf.mxu0
        %v3764 = vadd.f32 %v3751, %v3763
        %v3765 = vpop.f32.mrf.mxu0
        %3766 = vdwg.mxu0
        %3767 = vmatpush.bf16.msra.mxu0 %v3586
        %3768 = vmatpush.bf16.msra.mxu0 %v3585
        %3769 = vmatpush.bf16.msra.mxu0 %v3584
        %3770 = vmatpush.bf16.msra.mxu0 %v3583
        %3771 = vmatpush.bf16.msra.mxu0 %v3582
        %3772 = vmatpush.bf16.msra.mxu0 %v3581
        %3773 = vmatpush.bf16.msra.mxu0 %v3580
        %3774 = vmatpush.bf16.msra.mxu0 %v3579
        %3775 = vmatmul.bf16.gmra.mxu0 %v1592
        %v3776 = vpop.f32.mrf.mxu0
        %v3777 = vadd.f32 %v3764, %v3776
        %v3778 = vpop.f32.mrf.mxu0
        %3779 = vdwg.mxu0
        %3780 = vmatpush.bf16.msra.mxu0 %v3594
        %3781 = vmatpush.bf16.msra.mxu0 %v3593
        %3782 = vmatpush.bf16.msra.mxu0 %v3592
        %3783 = vmatpush.bf16.msra.mxu0 %v3591
        %3784 = vmatpush.bf16.msra.mxu0 %v3590
        %3785 = vmatpush.bf16.msra.mxu0 %v3589
        %3786 = vmatpush.bf16.msra.mxu0 %v3588
        %3787 = vmatpush.bf16.msra.mxu0 %v3587
        %3788 = vmatmul.bf16.gmra.mxu0 %v1593
        %v3789 = vpop.f32.mrf.mxu0
        %v3790 = vadd.f32 %v3777, %v3789
        %v3791 = vpop.f32.mrf.mxu0
        %3792 = vdwg.mxu0
        %3793 = vmatpush.bf16.msra.mxu0 %v3602
        %3794 = vmatpush.bf16.msra.mxu0 %v3601
        %3795 = vmatpush.bf16.msra.mxu0 %v3600
        %3796 = vmatpush.bf16.msra.mxu0 %v3599
        %3797 = vmatpush.bf16.msra.mxu0 %v3598
        %3798 = vmatpush.bf16.msra.mxu0 %v3597
        %3799 = vmatpush.bf16.msra.mxu0 %v3596
        %3800 = vmatpush.bf16.msra.mxu0 %v3595
        %3801 = vmatmul.bf16.gmra.mxu0 %v1594
        %v3802 = vpop.f32.mrf.mxu0
        %v3803 = vadd.f32 %v3790, %v3802
        %v3804 = vpop.f32.mrf.mxu0
        %3805 = vdwg.mxu0
        %3806 = vmatpush.bf16.msra.mxu0 0
        %3807 = vmatpush.bf16.msra.mxu0 0
        %3808 = vmatpush.bf16.msra.mxu0 %v3687
        %3809 = vmatpush.bf16.msra.mxu0 %v3607
        %3810 = vmatpush.bf16.msra.mxu0 %v3606
        %3811 = vmatpush.bf16.msra.mxu0 %v3605
        %3812 = vmatpush.bf16.msra.mxu0 %v3604
        %3813 = vmatpush.bf16.msra.mxu0 %v3603
        %3814 = vmatmul.bf16.gmra.mxu0 %v2072
        %v3815 = vpop.f32.mrf.mxu0
        %v3816 = vadd.f32 %v3803, %v3815
        %v3817 = vpop.f32.mrf.mxu0
        %3818 = vdwg.mxu0
        %v3835 = vunpack.c.l.b16 %v3050
        %v3836 = vunpack.c.l.b16 %v3051
        %v3837 = vunpack.c.l.b16 %v3052
        %v3838 = vunpack.c.l.b16 %v3053
        %v3839 = vunpack.c.l.b16 %v3054
        %v3840 = vunpack.c.l.b16 %v3055
        %v3841 = vunpack.c.l.b16 %v3056
        %v3842 = vunpack.c.l.b16 %v3057
        %v3843 = vunpack.c.l.b16 %v3058
        %v3844 = vunpack.c.l.b16 %v3059
        %v3845 = vunpack.c.l.b16 %v3060
        %v3846 = vunpack.c.l.b16 %v3061
        %v3847 = vunpack.c.l.b16 %v3062
        %v3848 = vunpack.c.l.b16 %v3063
        %v3849 = vunpack.c.l.b16 %v3064
        %v3850 = vunpack.c.l.b16 %v3065
        %v3851 = vpack.c.b16 %v3836, %v3835
        %v3852 = vpack.c.b16 %v3838, %v3837
        %v3853 = vpack.c.b16 %v3840, %v3839
        %v3854 = vpack.c.b16 %v3842, %v3841
        %v3855 = vpack.c.b16 %v3844, %v3843
        %v3856 = vpack.c.b16 %v3846, %v3845
        %v3857 = vpack.c.b16 %v3848, %v3847
        %v3858 = vpack.c.b16 %v3850, %v3849
        %3867 = vmatpush.bf16.msra.mxu0 %v3858
        %3868 = vmatpush.bf16.msra.mxu0 %v3857
        %3869 = vmatpush.bf16.msra.mxu0 %v3856
        %3870 = vmatpush.bf16.msra.mxu0 %v3855
        %3871 = vmatpush.bf16.msra.mxu0 %v3854
        %3872 = vmatpush.bf16.msra.mxu0 %v3853
        %3873 = vmatpush.bf16.msra.mxu0 %v3852
        %3874 = vmatpush.bf16.msra.mxu0 %v3851
        %3875 = vmatmul.bf16.gmra.mxu0 %v3049
        %v3876 = vpop.f32.mrf.mxu0
        %v3877 = vadd.f32 %v3816, %v3876
        %v3878 = vpop.f32.mrf.mxu0
        %3879 = vdwg.mxu0
        %v3880 = vld [vmem:[%s10] sm:$0x7]
        %v3881 = vperm.slane %v3880, 0
        %v3882 = vadd.f32 %v3877, %v3881
        %v3883 = vmax.f32 %v3882, 0.0
        %3884 = vadd.xlane.f32.xlu0 %v3883
        %v3885 = vpop.xlane.xlu0 %3884
        %v3886 = vmul.f32 %v3885, %v3026
        %v3887 = vsub.f32 %v3883, %v3886
        %v3888 = vmul.f32 %v3887, %v3887
        %3889 = vadd.xlane.f32.xlu0 %v3888
        %v3890 = vpop.xlane.xlu0 %3889
        %v3891 = vmul.f32 %v3890, %v3026
        %v3892 = vadd.f32 %v3891, 1e-05
        %v3893 = vrsqrt.pop %v3892
        %v3894 = vmul.f32 %v3893, %v3892
        %v3895 = vmul.f32 %v3894, %v3893
        %v3896 = vmul.f32 0.5, %v3895
        %v3897 = vsub.f32 1.5, %v3896
        %v3898 = vmul.f32 %v3893, %v3897
        %vm3899 = vweird.f32 %v3892
        %vm3900 = vweird.f32 %v3893
        %vm3901 = vmor %vm3899, %vm3900
        %v3902 = vsel %vm3901, %v3893, %v3898
        %v3903 = vmul.f32 %v3887, %v3902
        %v3904 = vperm.slane %v3880, 1
        %v3905 = vmul.f32 %v3903, %v3904
        %v3906 = vperm.slane %v3880, 2
        %v3907 = vadd.f32 %v3905, %v3906
        %v3908 = vpack.c.bf16 %v3907, %v3907
        %v3909 = vld [vmem:[%s11] sm:$0xf]
        %v3910 = vld [vmem:[%s11 + $0x4] sm:$0xf]
        %v3911 = vld [vmem:[%s11 + $0x8] sm:$0xf]
        %v3912 = vld [vmem:[%s11 + $0xc] sm:$0xf]
        %v3913 = vld [vmem:[%s11 + $0x10] sm:$0xf]
        %v3914 = vld [vmem:[%s11 + $0x14] sm:$0xf]
        %v3915 = vld [vmem:[%s11 + $0x18] sm:$0xf]
        %v3916 = vld [vmem:[%s11 + $0x1c] sm:$0xf]
        %v3917 = vld [vmem:[%s11 + $0x20] sm:$0xf]
        %v3918 = vld [vmem:[%s11 + $0x24] sm:$0xf]
        %v3919 = vld [vmem:[%s11 + $0x28] sm:$0xf]
        %v3920 = vld [vmem:[%s11 + $0x2c] sm:$0xf]
        %v3921 = vld [vmem:[%s11 + $0x30] sm:$0xf]
        %v3922 = vld [vmem:[%s11 + $0x34] sm:$0xf]
        %v3923 = vld [vmem:[%s11 + $0x38] sm:$0xf]
        %v3924 = vld [vmem:[%s11 + $0x3c] sm:$0xf]
        %v3941 = vunpack.c.l.b16 %v3909
        %v3942 = vunpack.c.l.b16 %v3910
        %v3943 = vunpack.c.l.b16 %v3911
        %v3944 = vunpack.c.l.b16 %v3912
        %v3945 = vunpack.c.l.b16 %v3913
        %v3946 = vunpack.c.l.b16 %v3914
        %v3947 = vunpack.c.l.b16 %v3915
        %v3948 = vunpack.c.l.b16 %v3916
        %v3949 = vunpack.c.l.b16 %v3917
        %v3950 = vunpack.c.l.b16 %v3918
        %v3951 = vunpack.c.l.b16 %v3919
        %v3952 = vunpack.c.l.b16 %v3920
        %v3953 = vunpack.c.l.b16 %v3921
        %v3954 = vunpack.c.l.b16 %v3922
        %v3955 = vunpack.c.l.b16 %v3923
        %v3956 = vunpack.c.l.b16 %v3924
        %v3957 = vpack.c.b16 %v3942, %v3941
        %v3958 = vpack.c.b16 %v3944, %v3943
        %v3959 = vpack.c.b16 %v3946, %v3945
        %v3960 = vpack.c.b16 %v3948, %v3947
        %v3961 = vpack.c.b16 %v3950, %v3949
        %v3962 = vpack.c.b16 %v3952, %v3951
        %v3963 = vpack.c.b16 %v3954, %v3953
        %v3964 = vpack.c.b16 %v3956, %v3955
        %3973 = vmatpush.bf16.msra.mxu0 %v3964
        %3974 = vmatpush.bf16.msra.mxu0 %v3963
        %3975 = vmatpush.bf16.msra.mxu0 %v3962
        %3976 = vmatpush.bf16.msra.mxu0 %v3961
        %3977 = vmatpush.bf16.msra.mxu0 %v3960
        %3978 = vmatpush.bf16.msra.mxu0 %v3959
        %3979 = vmatpush.bf16.msra.mxu0 %v3958
        %3980 = vmatpush.bf16.msra.mxu0 %v3957
        %3981 = vmatmul.bf16.gmra.mxu0 %v3908
        %v3982 = vpop.f32.mrf.mxu0
        %v3983 = vadd.f32 0.0, %v3982
        %v3984 = vpop.f32.mrf.mxu0
        %3985 = vdwg.mxu0
        %3986 = vst [vmem:[%s556] sm:$0xff] %v3983
        %v3987 = vld [vmem:[%s12] sm:$0xf]
        %v3988 = vld [vmem:[%s12 + $0x4] sm:$0xf]
        %v3989 = vld [vmem:[%s12 + $0x8] sm:$0xf]
        %v3990 = vld [vmem:[%s12 + $0xc] sm:$0xf]
        %v3991 = vld [vmem:[%s12 + $0x10] sm:$0xf]
        %v3992 = vld [vmem:[%s12 + $0x14] sm:$0xf]
        %v3993 = vld [vmem:[%s12 + $0x18] sm:$0xf]
        %v3994 = vld [vmem:[%s12 + $0x1c] sm:$0xf]
        %v3995 = vld [vmem:[%s12 + $0x20] sm:$0xf]
        %v3996 = vld [vmem:[%s12 + $0x24] sm:$0xf]
        %v3997 = vld [vmem:[%s12 + $0x28] sm:$0xf]
        %v3998 = vld [vmem:[%s12 + $0x2c] sm:$0xf]
        %v3999 = vld [vmem:[%s12 + $0x30] sm:$0xf]
        %v4000 = vld [vmem:[%s12 + $0x34] sm:$0xf]
        %v4001 = vld [vmem:[%s12 + $0x38] sm:$0xf]
        %v4002 = vld [vmem:[%s12 + $0x3c] sm:$0xf]
        %v4003 = vld [vmem:[%s13] sm:$0x1]
        %v4005 = vperm.slane %v4003, 0
        %v4023 = vunpack.c.l.b16 %v3987
        %v4024 = vunpack.c.l.b16 %v3988
        %v4025 = vunpack.c.l.b16 %v3989
        %v4026 = vunpack.c.l.b16 %v3990
        %v4027 = vunpack.c.l.b16 %v3991
        %v4028 = vunpack.c.l.b16 %v3992
        %v4029 = vunpack.c.l.b16 %v3993
        %v4030 = vunpack.c.l.b16 %v3994
        %v4031 = vunpack.c.l.b16 %v3995
        %v4032 = vunpack.c.l.b16 %v3996
        %v4033 = vunpack.c.l.b16 %v3997
        %v4034 = vunpack.c.l.b16 %v3998
        %v4035 = vunpack.c.l.b16 %v3999
        %v4036 = vunpack.c.l.b16 %v4000
        %v4037 = vunpack.c.l.b16 %v4001
        %v4038 = vunpack.c.l.b16 %v4002
        %v4039 = vpack.c.b16 %v4024, %v4023
        %v4040 = vpack.c.b16 %v4026, %v4025
        %v4041 = vpack.c.b16 %v4028, %v4027
        %v4042 = vpack.c.b16 %v4030, %v4029
        %v4043 = vpack.c.b16 %v4032, %v4031
        %v4044 = vpack.c.b16 %v4034, %v4033
        %v4045 = vpack.c.b16 %v4036, %v4035
        %v4046 = vpack.c.b16 %v4038, %v4037
        %4055 = vmatpush.bf16.msra.mxu0 %v4046
        %4056 = vmatpush.bf16.msra.mxu0 %v4045
        %4057 = vmatpush.bf16.msra.mxu0 %v4044
        %4058 = vmatpush.bf16.msra.mxu0 %v4043
        %4059 = vmatpush.bf16.msra.mxu0 %v4042
        %4060 = vmatpush.bf16.msra.mxu0 %v4041
        %4061 = vmatpush.bf16.msra.mxu0 %v4040
        %4062 = vmatpush.bf16.msra.mxu0 %v4039
        %4063 = vmatmul.bf16.gmra.mxu0 %v3908
        %v4064 = vpop.f32.mrf.mxu0
        %v4065 = vadd.f32 %v4005, %v4064
        %v4066 = vpop.f32.mrf.mxu0
        %4067 = vdwg.mxu0
        %4068 = vst [vmem:[%s560] sm:$0xff] %v4065
        %s4069 = sand.u32 %s343, 1
        %s4070 = scalar_lea.sflag [#allocation3], %s4069
        %s4071 = sand.u32 %s343, 1
        %s4072 = smul.addr %s4071, 8
        %s4073 = scalar_lea.vmem [#allocation2], %s4072
        %p4074 = scmp.lt.s32.totalorder %s31, 1
        %s4075 = scalar_select %p4074, %s31, 1
        %s4076 = smul.addr %s4075, 8
        %s4077 = scalar_lea.vmem %s15, %s4076
        %p4078 = scmp.lt.s32.totalorder %s31, 1
        %s4079 = scalar_select %p4078, %s31, 1
        %s4080 = smul.addr %s4079, 8
        %s4081 = scalar_lea.vmem %s16, %s4080
        // Predicated region
        $region77: #{qa_forward.2} parent=75 // pred_check
          %p4082 = pneg %p353
        $region78: #{qa_forward.2} parent=75 // pred_check_branch
          %4084 = sbr.rel (%p4082) target = $region80
        $region79: #{qa_forward.2} parent=75 // pred_region
          %4086 = vsyncadd %s4070, 0
          %s4087 = smul.addr %s31, 8
          %s4088 = scalar_lea.hbm %s14, %s4087
          %s4090 = sshll.u32 %s4073, 4
          %s4091 = int_to_ptr.vmem [resolvable:$true] %s4090
          %s4092 = sshll.u32 %s4088, 4
          %s4093 = int_to_ptr.hbm [resolvable:$true] %s4092
          %4095 = dma.vmem_to_hbm [thread:$0]  %s4091, 128, %s4093, %s4070
        $region80: #{qa_forward.2} parent=75 // pred_fallthru
          _
        // Predicated region
        $region81: #{qa_forward.2} parent=75 // pred_check
          %p4096 = pneg %p379
        $region82: #{qa_forward.2} parent=75 // pred_check_branch
          %4098 = sbr.rel (%p4096) target = $region84
        $region83: #{qa_forward.2} parent=75 // pred_region
          _
        $region84: #{qa_forward.2} parent=75 // pred_fallthru
          _
        // Predicated region
        $region85: #{qa_forward.2} parent=75 // pred_check
          %p4099 = pneg %p405
        $region86: #{qa_forward.2} parent=75 // pred_check_branch
          %4101 = sbr.rel (%p4099) target = $region88
        $region87: #{qa_forward.2} parent=75 // pred_region
          _
        $region88: #{qa_forward.2} parent=75 // pred_fallthru
          _
      $region76: #{qa_forward.2} parent=5 // pred_fallthru
        _
      %p4102 = scmp.le.s32.totalorder 2, %s26
      // Predicated region
      $region89: #{qa_forward.2} parent=5 // pred_check
        %p4103 = pneg %p4102
      $region90: #{qa_forward.2} parent=5 // pred_check_branch
        %4105 = sbr.rel (%p4103) target = $region92
      $region91: #{qa_forward.2} parent=5 // pred_region
        %s4106 = ssub.s32 %s26, 2
        // Predicated region
        $region93: #{qa_forward.2} parent=91 // pred_check
          %p4107 = pneg %p359
        $region94: #{qa_forward.2} parent=91 // pred_check_branch
          %4109 = sbr.rel (%p4107) target = $region96
        $region95: #{qa_forward.2} parent=91 // pred_region
          %s4110 = sand.u32 %s344, 1
          %s4111 = scalar_lea.sflag [#allocation3], %s4110
          %s4112 = sand.u32 %s344, 1
          %s4113 = smul.addr %s4112, 8
          %s4114 = scalar_lea.vmem [#allocation2], %s4113
          %4116 = dma.done %s4111, 128
        $region96: #{qa_forward.2} parent=91 // pred_fallthru
          _
        // Predicated region
        $region97: #{qa_forward.2} parent=91 // pred_check
          %p4117 = pneg %p385
        $region98: #{qa_forward.2} parent=91 // pred_check_branch
          %4119 = sbr.rel (%p4117) target = $region100
        $region99: #{qa_forward.2} parent=91 // pred_region
          %p4120 = scmp.lt.s32.totalorder %s32, 1
          %s4121 = scalar_select %p4120, %s32, 1
          %s4122 = smul.addr %s4121, 8
          %s4123 = scalar_lea.vmem %s15, %s4122
        $region100: #{qa_forward.2} parent=91 // pred_fallthru
          _
        // Predicated region
        $region101: #{qa_forward.2} parent=91 // pred_check
          %p4124 = pneg %p411
        $region102: #{qa_forward.2} parent=91 // pred_check_branch
          %4126 = sbr.rel (%p4124) target = $region104
        $region103: #{qa_forward.2} parent=91 // pred_region
          %p4127 = scmp.lt.s32.totalorder %s32, 1
          %s4128 = scalar_select %p4127, %s32, 1
          %s4129 = smul.addr %s4128, 8
          %s4130 = scalar_lea.vmem %s16, %s4129
        $region104: #{qa_forward.2} parent=91 // pred_fallthru
          _
      $region92: #{qa_forward.2} parent=5 // pred_fallthru
        _
    $region6: #{qa_forward.2} parent=1 // loop_footer
      %s30 = sadd.s32 1, %s26
    $region7: #{qa_forward.2} parent=1 // loop_footer_branch
      %25 = sbr.rel target = $region3
    $region8: #{qa_forward.2} parent=1 // loop_exit
      _
    %4131 = vsyncpa [#allocation3], 1
    %s4132 = scalar_lea.sflag [#allocation3], 1
    %4133 = vsyncpa %s4132, 1

</llo_original>
